<compile_context>
chip_gen: v5e
topology: v5e:2x2
jax: 0.10.0
libtpu: 0.0.40
codegen_flags: <defaults>
</compile_context>

<pallas_src>
import jax
import jax.numpy as jnp
from jax import lax
from jax.experimental import pallas as pl
from jax.experimental.pallas import tpu as pltpu


# -----------------------------------------------------------------------------
# Fused kernel: temporal conv -> BN -> ReLU -> depthwise conv -> BN -> ReLU ->
#               (pointwise conv ∘ flatten ∘ FC)  for one batch tile.
# -----------------------------------------------------------------------------
def _make_kernel(L, Lp):
    need_wrap_fix = (Lp == L)   # no pad lanes -> fix roll wrap lanes explicitly

    def kernel(x_ref, w1_ref, wde_ref, wdo_ref, wce_ref, wco_ref, bc_ref, out_ref):
        f32 = jnp.float32
        x = x_ref[...]                               # (Bt, Lp), zero-padded past L
        Bt = x.shape[0]
        NCp = out_ref.shape[1]

        # k=3 / pad=1 shifts via lane rolls (XLU; shared by all 16 channels).
        x_m = pltpu.roll(x, 1, 1)                    # x[l-1]
        x_p = pltpu.roll(x, Lp - 1, 1)               # x[l+1]

        lane = lax.broadcasted_iota(jnp.int32, (1, Lp), 1)
        if need_wrap_fix:
            # No pad lanes: zero the single wrapped lane of each rolled operand.
            mleft = (lane >= 1).astype(f32)          # conv zero-pad: x[-1] = 0
            mright = (lane < (L - 1)).astype(f32)    # conv zero-pad: x[L]  = 0
            x_m = x_m * mleft
            x_p = x_p * mright
            mvalid = None
        else:
            # Pad lanes exist: one {0,1} mask multiplied into the stage-1 output
            # keeps them exactly zero, so the stage-2 roll wrap-around also lands
            # on zero lanes (exact Conv1d zero-padding semantics).
            mvalid = (lane < L).astype(f32)

        acc = jnp.zeros((Bt, NCp), f32)              # single f32 logits accumulator
        for g in range(16):                          # 16 conv groups, unrolled
            # --- temporal conv (1->16) channel g; conv bias + eval BN1 folded --
            t = (w1_ref[0, g] * x_m + w1_ref[1, g] * x + w1_ref[2, g] * x_p
                 + w1_ref[3, g])
            t = jnp.maximum(t, 0.0)                  # ReLU (dropout = identity, eval)
            if mvalid is not None:
                t = t * mvalid
            # --- depthwise k=3 shifts (shared by this group's 2 output channels)
            t_m = pltpu.roll(t, 1, 1)
            t_p = pltpu.roll(t, Lp - 1, 1)
            if need_wrap_fix:
                t_m = t_m * mleft
                t_p = t_p * mright
            # --- depthwise conv (group g -> channels 2g, 2g+1) + BN2 + ReLU ----
            d_e = jnp.maximum(wde_ref[0, g] * t_m + wde_ref[1, g] * t
                              + wde_ref[2, g] * t_p + wde_ref[3, g], 0.0)
            d_o = jnp.maximum(wdo_ref[0, g] * t_m + wdo_ref[1, g] * t
                              + wdo_ref[2, g] * t_p + wdo_ref[3, g], 0.0)
            # --- pointwise 1x1 conv ∘ flatten ∘ FC, composed into WCE / WCO:
            #     bf16 MXU operands, f32 accumulation.  Garbage lanes l >= L of
            #     d_* hit zero rows of the L-padded weight, so they contribute 0.
            acc = acc + jnp.dot(d_e.astype(jnp.bfloat16), wce_ref[g],
                                preferred_element_type=f32)
            acc = acc + jnp.dot(d_o.astype(jnp.bfloat16), wco_ref[g],
                                preferred_element_type=f32)

        out_ref[...] = acc + bc_ref[...]             # (Bt, NCp), lane-dense

    return kernel


def pick_batch_tile(B):
    """Prefer large tiles, but keep grid >= 2 when possible (v7x: 2 TensorCores)."""
    candidates = (512, 256, 128, 64, 32, 16, 8)
    for bt in candidates:
        if B % bt == 0 and B // bt >= 2:
            return bt
    for bt in candidates:
        if B % bt == 0:
            return bt
    return B   # tiny / odd batches: one tile = whole batch (block == full array)


def eegnet_forward_pallas(x2, W1S, WDES, WDOS, WCE, WCO, BCONST, *, L, Bt):
    """x2: (B, Lp) zero-padded input.  Returns (B, NCp) lane-padded logits."""
    B, Lp = x2.shape
    NCp = WCE.shape[-1]
    assert B % Bt == 0 and Lp % 128 == 0 and NCp % 128 == 0 and Lp >= L

    smem = pl.BlockSpec(memory_space=pltpu.MemorySpace.SMEM)

    def const_spec(shape):   # resident weight: constant index_map, single buffer
        nd = len(shape)
        return pl.BlockSpec(shape, lambda i, _nd=nd: (0,) * _nd,
                            pipeline_mode=pl.Buffered(1))

    # Rough VMEM working-set estimate (bytes): double-buffered x / out tiles,
    # single-buffered bf16 weights, headroom for temporaries + accumulator.
    est = (2 * Bt * Lp * 4 + 2 * Bt * NCp * 4
           + (WCE.size + WCO.size) * 2 + BCONST.size * 4
           + 12 * Bt * Lp * 4 + Bt * NCp * 4)
    vmem_limit = int(min(64 * 1024 * 1024, max(32 * 1024 * 1024, 2 * est)))

    return pl.pallas_call(
        _make_kernel(L, Lp),
        out_shape=jax.ShapeDtypeStruct((B, NCp), jnp.float32),
        grid=(B // Bt,),
        in_specs=[
            pl.BlockSpec((Bt, Lp), lambda i: (i, 0)),   # x batch tile
            smem, smem, smem,                           # (4,16) tap/shift tables
            const_spec(WCE.shape),                      # (16, Lp, NCp) bf16
            const_spec(WCO.shape),                      # (16, Lp, NCp) bf16
            const_spec(BCONST.shape),                   # (1, NCp) f32
        ],
        out_specs=pl.BlockSpec((Bt, NCp), lambda i: (i, 0)),
        compiler_params=pltpu.CompilerParams(
            dimension_semantics=("parallel",),
            vmem_limit_bytes=vmem_limit),
    )(x2, W1S, WDES, WDOS, WCE, WCO, BCONST)


# -----------------------------------------------------------------------------
# Host-side parameter packing (one-time weight preprocessing, plain JAX).
# -----------------------------------------------------------------------------
def pack_params(w1, b1, s1, t1, wd, bd, s2, t2, wp, bp, wf, bf, *, L, Lp, NCp):
    hi = lax.Precision.HIGHEST
    NC = wf.shape[0]

    # Stage 1: temporal conv (1 -> 16); conv bias + eval-mode BN1 folded.
    w1f = w1[:, 0, :] * s1[:, None]                           # (16, 3) taps
    sh1 = b1 * s1 + t1                                        # (16,)
    W1S = jnp.concatenate([w1f.T, sh1[None, :]], axis=0)      # (4, 16)  -> SMEM

    # Stage 2: depthwise conv (16 -> 32, groups=16): outputs 2g / 2g+1 read input g.
    wdf = wd[:, 0, :] * s2[:, None]                           # (32, 3)
    sh2 = bd * s2 + t2                                        # (32,)
    WDES = jnp.concatenate([wdf[0::2].T, sh2[0::2][None, :]], axis=0)   # (4, 16)
    WDOS = jnp.concatenate([wdf[1::2].T, sh2[1::2][None, :]], axis=0)   # (4, 16)

    # Stage 3: pointwise 1x1 conv composed into flatten + FC (all linear):
    #   logits[n] = sum_{c,l} d[c,l] * (sum_o wf3[n,o,l] * wp2[o,c])
    #             + (bf[n] + sum_{o,l} wf3[n,o,l] * bp[o])
    wf3 = wf.reshape(NC, 32, L)                               # (NC, 32, L)
    wp2 = wp[:, :, 0]                                         # (32, 32)
    wcomb = jnp.einsum("nol,oc->cln", wf3, wp2, precision=hi)     # (32, L, NC)
    wcomb_p = jnp.zeros((32, Lp, NCp), jnp.float32).at[:, :L, :NC].set(wcomb)
    WCE = wcomb_p[0::2].astype(jnp.bfloat16)                  # (16, Lp, NCp)
    WCO = wcomb_p[1::2].astype(jnp.bfloat16)                  # (16, Lp, NCp)
    bconst = bf + jnp.einsum("nol,o->n", wf3, bp, precision=hi)   # (NC,)
    BCONST = jnp.zeros((1, NCp), jnp.float32).at[0, :NC].set(bconst)
    return W1S, WDES, WDOS, WCE, WCO, BCONST


# -----------------------------------------------------------------------------
# Pure-JAX reference (unfused ops, same eval-mode semantics) for correctness.
# -----------------------------------------------------------------------------
def reference_forward(x, w1, b1, s1, t1, wd, bd, s2, t2, wp, bp, wf, bf):
    dn = ("NCH", "OIH", "NCH")
    hi = lax.Precision.HIGHEST
    y = lax.conv_general_dilated(x, w1, (1,), [(1, 1)], dimension_numbers=dn,
                                 precision=hi)
    y = y + b1[None, :, None]
    y = y * s1[None, :, None] + t1[None, :, None]
    y = jnp.maximum(y, 0.0)
    y = lax.conv_general_dilated(y, wd, (1,), [(1, 1)], dimension_numbers=dn,
                                 feature_group_count=16, precision=hi)
    y = y + bd[None, :, None]
    y = y * s2[None, :, None] + t2[None, :, None]
    y = jnp.maximum(y, 0.0)
    y = lax.conv_general_dilated(y, wp, (1,), [(0, 0)], dimension_numbers=dn,
                                 precision=hi)
    y = y + bp[None, :, None]
    flat = y.reshape(y.shape[0], -1)
    return jnp.dot(flat, wf.T, precision=hi) + bf


if __name__ == "__main__":
    B, L, NC = 2, 16, 4          # batch, sequence length, num_classes
    EPS = 1e-5

    key = jax.random.PRNGKey(0)
    ks = jax.random.split(key, 17)

    # Input: (B, 1, L)  (PyTorch NCL)
    x = jax.random.normal(ks[0], (B, 1, L), jnp.float32)

    # ---- deterministic parameter init (shapes from EEGNet.__init__) ----------
    w1 = 0.3 * jax.random.normal(ks[1], (16, 1, 3), jnp.float32)    # temporal_conv
    b1 = 0.1 * jax.random.normal(ks[2], (16,), jnp.float32)
    g1_gamma = 1.0 + 0.1 * jax.random.normal(ks[3], (16,), jnp.float32)   # bn1
    g1_beta = 0.1 * jax.random.normal(ks[4], (16,), jnp.float32)
    g1_mean = 0.1 * jax.random.normal(ks[5], (16,), jnp.float32)
    g1_var = jnp.abs(1.0 + 0.1 * jax.random.normal(ks[6], (16,), jnp.float32))

    wd = 0.3 * jax.random.normal(ks[7], (32, 1, 3), jnp.float32)    # depthwise_conv
    bd = 0.1 * jax.random.normal(ks[8], (32,), jnp.float32)
    g2_gamma = 1.0 + 0.1 * jax.random.normal(ks[9], (32,), jnp.float32)   # bn2
    g2_beta = 0.1 * jax.random.normal(ks[10], (32,), jnp.float32)
    g2_mean = 0.1 * jax.random.normal(ks[11], (32,), jnp.float32)
    g2_var = jnp.abs(1.0 + 0.1 * jax.random.normal(ks[12], (32,), jnp.float32))

    wp = 0.2 * jax.random.normal(ks[13], (32, 32, 1), jnp.float32)  # pointwise_conv
    bp = 0.1 * jax.random.normal(ks[14], (32,), jnp.float32)

    wf = 0.05 * jax.random.normal(ks[15], (NC, 32 * L), jnp.float32)  # fc (lazy in torch)
    bf = 0.1 * jax.random.normal(ks[16], (NC,), jnp.float32)

    # ---- fold BatchNorm (eval mode) into per-channel scale / shift -----------
    s1 = g1_gamma / jnp.sqrt(g1_var + EPS)
    t1 = g1_beta - g1_mean * s1
    s2 = g2_gamma / jnp.sqrt(g2_var + EPS)
    t2 = g2_beta - g2_mean * s2

    # ---- lane / class padding and parameter packing ---------------------------
    Lp = pl.cdiv(L, 128) * 128            # lane-dense seq; roll wrap handled in-kernel
    NCp = pl.cdiv(NC, 128) * 128          # lane-dense logits
    x2 = jnp.pad(x[:, 0, :], ((0, 0), (0, Lp - L)))              # (B, Lp)
    packed = pack_params(w1, b1, s1, t1, wd, bd, s2, t2, wp, bp, wf, bf,
                         L=L, Lp=Lp, NCp=NCp)
    Bt = pick_batch_tile(B)

    # ---- run the fused Pallas kernel ------------------------------------------
    logits_pad = eegnet_forward_pallas(x2, *packed, L=L, Bt=Bt)   # (B, NCp)
    logits = jax.block_until_ready(logits_pad[:, :NC])            # (B, NC)

    # ---- correctness check vs pure-JAX reference ------------------------------
    with jax.default_matmul_precision("float32"):
        ref = reference_forward(x, w1, b1, s1, t1, wd, bd, s2, t2, wp, bp, wf, bf)
    ref = jax.block_until_ready(ref)

    # The in-kernel contraction deliberately uses bf16 MXU operands with f32
    # accumulation (per perf review), hence the mildly relaxed tolerance.
    err = float(jnp.max(jnp.abs(logits - ref)))
    if not bool(jnp.allclose(logits, ref, atol=2e-2, rtol=2e-2)):
        raise AssertionError(f"mismatch: max abs err = {err}")

    print("KERNEL_OK")
</pallas_src>

<mosaic_0001>
module attributes {stable_mosaic.version = 11 : i64} {
  func.func @kernel(%arg0: i32, %arg1: memref<2x128xf32, #tpu.memory_space<vmem>>, %arg2: memref<4x16xf32, #tpu.memory_space<smem>>, %arg3: memref<4x16xf32, #tpu.memory_space<smem>>, %arg4: memref<4x16xf32, #tpu.memory_space<smem>>, %arg5: memref<16x128x128xbf16, #tpu.memory_space<vmem>>, %arg6: memref<16x128x128xbf16, #tpu.memory_space<vmem>>, %arg7: memref<1x128xf32, #tpu.memory_space<vmem>>, %arg8: memref<2x128xf32, #tpu.memory_space<vmem>>) attributes {dimension_semantics = [#tpu.dimension_semantics<parallel>], iteration_bounds = array<i64: 1>, scalar_prefetch = 0 : i64, scratch_operands = 0 : i64, tpu.core_type = #tpu.core_type<tc>, window_params = [{transform_indices = @transform_0, window_bounds = array<i64: 2, 128>}, {transform_indices = @transform_1, window_bounds = array<i64: 4, 16>}, {transform_indices = @transform_2, window_bounds = array<i64: 4, 16>}, {transform_indices = @transform_3, window_bounds = array<i64: 4, 16>}, {pipeline_mode = #tpu.pipeline_mode<synchronous>, transform_indices = @transform_4, window_bounds = array<i64: 16, 128, 128>}, {pipeline_mode = #tpu.pipeline_mode<synchronous>, transform_indices = @transform_5, window_bounds = array<i64: 16, 128, 128>}, {pipeline_mode = #tpu.pipeline_mode<synchronous>, transform_indices = @transform_6, window_bounds = array<i64: 1, 128>}, {transform_indices = @transform_7, window_bounds = array<i64: 2, 128>}]} {
    %c0 = arith.constant 0 : index
    %c0_0 = arith.constant 0 : index
    %0 = vector.load %arg1[%c0, %c0_0] : memref<2x128xf32, #tpu.memory_space<vmem>>, vector<2x128xf32>
    %c1_i32 = arith.constant 1 : i32
    %1 = tpu.dynamic_rotate %0 by %c1_i32 dim 1 : vector<2x128xf32>, i32 -> vector<2x128xf32>
    %c127_i32 = arith.constant 127 : i32
    %2 = tpu.dynamic_rotate %0 by %c127_i32 dim 1 : vector<2x128xf32>, i32 -> vector<2x128xf32>
    %3 = tpu.iota {dimensions = array<i32: 1>} : vector<1x128xi32>
    %c16_i32 = arith.constant 16 : i32
    %4 = vector.broadcast %c16_i32 : i32 to vector<1x128xi32>
    %5 = arith.cmpi slt, %3, %4 : vector<1x128xi32>
    %6 = arith.extui %5 : vector<1x128xi1> to vector<1x128xi32>
    %7 = arith.sitofp %6 : vector<1x128xi32> to vector<1x128xf32>
    %cst = arith.constant 0.000000e+00 : f32
    %8 = vector.broadcast %cst : f32 to vector<2x128xf32>
    %c0_1 = arith.constant 0 : index
    %c0_2 = arith.constant 0 : index
    %9 = memref.load %arg2[%c0_1, %c0_2] : memref<4x16xf32, #tpu.memory_space<smem>>
    %10 = vector.broadcast %9 : f32 to vector<2x128xf32>
    %11 = arith.mulf %10, %1 : vector<2x128xf32>
    %c1 = arith.constant 1 : index
    %c0_3 = arith.constant 0 : index
    %12 = memref.load %arg2[%c1, %c0_3] : memref<4x16xf32, #tpu.memory_space<smem>>
    %13 = vector.broadcast %12 : f32 to vector<2x128xf32>
    %14 = arith.mulf %13, %0 : vector<2x128xf32>
    %15 = arith.addf %11, %14 : vector<2x128xf32>
    %c2 = arith.constant 2 : index
    %c0_4 = arith.constant 0 : index
    %16 = memref.load %arg2[%c2, %c0_4] : memref<4x16xf32, #tpu.memory_space<smem>>
    %17 = vector.broadcast %16 : f32 to vector<2x128xf32>
    %18 = arith.mulf %17, %2 : vector<2x128xf32>
    %19 = arith.addf %15, %18 : vector<2x128xf32>
    %c3 = arith.constant 3 : index
    %c0_5 = arith.constant 0 : index
    %20 = memref.load %arg2[%c3, %c0_5] : memref<4x16xf32, #tpu.memory_space<smem>>
    %21 = vector.broadcast %20 : f32 to vector<2x128xf32>
    %22 = arith.addf %19, %21 : vector<2x128xf32>
    %cst_6 = arith.constant 0.000000e+00 : f32
    %23 = vector.broadcast %cst_6 : f32 to vector<2x128xf32>
    %24 = arith.maximumf %22, %23 : vector<2x128xf32>
    %25 = vector.broadcast %7 : vector<1x128xf32> to vector<2x128xf32>
    %26 = arith.mulf %24, %25 : vector<2x128xf32>
    %c1_i32_7 = arith.constant 1 : i32
    %27 = tpu.dynamic_rotate %26 by %c1_i32_7 dim 1 : vector<2x128xf32>, i32 -> vector<2x128xf32>
    %c127_i32_8 = arith.constant 127 : i32
    %28 = tpu.dynamic_rotate %26 by %c127_i32_8 dim 1 : vector<2x128xf32>, i32 -> vector<2x128xf32>
    %c0_9 = arith.constant 0 : index
    %c0_10 = arith.constant 0 : index
    %29 = memref.load %arg3[%c0_9, %c0_10] : memref<4x16xf32, #tpu.memory_space<smem>>
    %30 = vector.broadcast %29 : f32 to vector<2x128xf32>
    %31 = arith.mulf %30, %27 : vector<2x128xf32>
    %c1_11 = arith.constant 1 : index
    %c0_12 = arith.constant 0 : index
    %32 = memref.load %arg3[%c1_11, %c0_12] : memref<4x16xf32, #tpu.memory_space<smem>>
    %33 = vector.broadcast %32 : f32 to vector<2x128xf32>
    %34 = arith.mulf %33, %26 : vector<2x128xf32>
    %35 = arith.addf %31, %34 : vector<2x128xf32>
    %c2_13 = arith.constant 2 : index
    %c0_14 = arith.constant 0 : index
    %36 = memref.load %arg3[%c2_13, %c0_14] : memref<4x16xf32, #tpu.memory_space<smem>>
    %37 = vector.broadcast %36 : f32 to vector<2x128xf32>
    %38 = arith.mulf %37, %28 : vector<2x128xf32>
    %39 = arith.addf %35, %38 : vector<2x128xf32>
    %c3_15 = arith.constant 3 : index
    %c0_16 = arith.constant 0 : index
    %40 = memref.load %arg3[%c3_15, %c0_16] : memref<4x16xf32, #tpu.memory_space<smem>>
    %41 = vector.broadcast %40 : f32 to vector<2x128xf32>
    %42 = arith.addf %39, %41 : vector<2x128xf32>
    %cst_17 = arith.constant 0.000000e+00 : f32
    %43 = vector.broadcast %cst_17 : f32 to vector<2x128xf32>
    %44 = arith.maximumf %42, %43 : vector<2x128xf32>
    %c0_18 = arith.constant 0 : index
    %c0_19 = arith.constant 0 : index
    %45 = memref.load %arg4[%c0_18, %c0_19] : memref<4x16xf32, #tpu.memory_space<smem>>
    %46 = vector.broadcast %45 : f32 to vector<2x128xf32>
    %47 = arith.mulf %46, %27 : vector<2x128xf32>
    %c1_20 = arith.constant 1 : index
    %c0_21 = arith.constant 0 : index
    %48 = memref.load %arg4[%c1_20, %c0_21] : memref<4x16xf32, #tpu.memory_space<smem>>
    %49 = vector.broadcast %48 : f32 to vector<2x128xf32>
    %50 = arith.mulf %49, %26 : vector<2x128xf32>
    %51 = arith.addf %47, %50 : vector<2x128xf32>
    %c2_22 = arith.constant 2 : index
    %c0_23 = arith.constant 0 : index
    %52 = memref.load %arg4[%c2_22, %c0_23] : memref<4x16xf32, #tpu.memory_space<smem>>
    %53 = vector.broadcast %52 : f32 to vector<2x128xf32>
    %54 = arith.mulf %53, %28 : vector<2x128xf32>
    %55 = arith.addf %51, %54 : vector<2x128xf32>
    %c3_24 = arith.constant 3 : index
    %c0_25 = arith.constant 0 : index
    %56 = memref.load %arg4[%c3_24, %c0_25] : memref<4x16xf32, #tpu.memory_space<smem>>
    %57 = vector.broadcast %56 : f32 to vector<2x128xf32>
    %58 = arith.addf %55, %57 : vector<2x128xf32>
    %cst_26 = arith.constant 0.000000e+00 : f32
    %59 = vector.broadcast %cst_26 : f32 to vector<2x128xf32>
    %60 = arith.maximumf %58, %59 : vector<2x128xf32>
    %61 = arith.truncf %44 : vector<2x128xf32> to vector<2x128xbf16>
    %c0_27 = arith.constant 0 : index
    %c0_28 = arith.constant 0 : index
    %c0_29 = arith.constant 0 : index
    %62 = vector.load %arg5[%c0_27, %c0_28, %c0_29] : memref<16x128x128xbf16, #tpu.memory_space<vmem>>, vector<1x128x128xbf16>
    %63 = vector.shape_cast %62 : vector<1x128x128xbf16> to vector<128x128xbf16>
    %cst_30 = arith.constant dense<0.000000e+00> : vector<2x128xf32>
    %64 = tpu.matmul %61, %63, %cst_30 {dimension_numbers = #tpu.dot_dimension_numbers<[1], [0], [0], [1], [0, 0, 1, 1], [], []>} : vector<2x128xbf16>, vector<128x128xbf16>, vector<2x128xf32> -> vector<2x128xf32>
    %65 = arith.addf %8, %64 : vector<2x128xf32>
    %66 = arith.truncf %60 : vector<2x128xf32> to vector<2x128xbf16>
    %c0_31 = arith.constant 0 : index
    %c0_32 = arith.constant 0 : index
    %c0_33 = arith.constant 0 : index
    %67 = vector.load %arg6[%c0_31, %c0_32, %c0_33] : memref<16x128x128xbf16, #tpu.memory_space<vmem>>, vector<1x128x128xbf16>
    %68 = vector.shape_cast %67 : vector<1x128x128xbf16> to vector<128x128xbf16>
    %cst_34 = arith.constant dense<0.000000e+00> : vector<2x128xf32>
    %69 = tpu.matmul %66, %68, %cst_34 {dimension_numbers = #tpu.dot_dimension_numbers<[1], [0], [0], [1], [0, 0, 1, 1], [], []>} : vector<2x128xbf16>, vector<128x128xbf16>, vector<2x128xf32> -> vector<2x128xf32>
    %70 = arith.addf %65, %69 : vector<2x128xf32>
    %c0_35 = arith.constant 0 : index
    %c1_36 = arith.constant 1 : index
    %71 = memref.load %arg2[%c0_35, %c1_36] : memref<4x16xf32, #tpu.memory_space<smem>>
    %72 = vector.broadcast %71 : f32 to vector<2x128xf32>
    %73 = arith.mulf %72, %1 : vector<2x128xf32>
    %c1_37 = arith.constant 1 : index
    %c1_38 = arith.constant 1 : index
    %74 = memref.load %arg2[%c1_37, %c1_38] : memref<4x16xf32, #tpu.memory_space<smem>>
    %75 = vector.broadcast %74 : f32 to vector<2x128xf32>
    %76 = arith.mulf %75, %0 : vector<2x128xf32>
    %77 = arith.addf %73, %76 : vector<2x128xf32>
    %c2_39 = arith.constant 2 : index
    %c1_40 = arith.constant 1 : index
    %78 = memref.load %arg2[%c2_39, %c1_40] : memref<4x16xf32, #tpu.memory_space<smem>>
    %79 = vector.broadcast %78 : f32 to vector<2x128xf32>
    %80 = arith.mulf %79, %2 : vector<2x128xf32>
    %81 = arith.addf %77, %80 : vector<2x128xf32>
    %c3_41 = arith.constant 3 : index
    %c1_42 = arith.constant 1 : index
    %82 = memref.load %arg2[%c3_41, %c1_42] : memref<4x16xf32, #tpu.memory_space<smem>>
    %83 = vector.broadcast %82 : f32 to vector<2x128xf32>
    %84 = arith.addf %81, %83 : vector<2x128xf32>
    %cst_43 = arith.constant 0.000000e+00 : f32
    %85 = vector.broadcast %cst_43 : f32 to vector<2x128xf32>
    %86 = arith.maximumf %84, %85 : vector<2x128xf32>
    %87 = vector.broadcast %7 : vector<1x128xf32> to vector<2x128xf32>
    %88 = arith.mulf %86, %87 : vector<2x128xf32>
    %c1_i32_44 = arith.constant 1 : i32
    %89 = tpu.dynamic_rotate %88 by %c1_i32_44 dim 1 : vector<2x128xf32>, i32 -> vector<2x128xf32>
    %c127_i32_45 = arith.constant 127 : i32
    %90 = tpu.dynamic_rotate %88 by %c127_i32_45 dim 1 : vector<2x128xf32>, i32 -> vector<2x128xf32>
    %c0_46 = arith.constant 0 : index
    %c1_47 = arith.constant 1 : index
    %91 = memref.load %arg3[%c0_46, %c1_47] : memref<4x16xf32, #tpu.memory_space<smem>>
    %92 = vector.broadcast %91 : f32 to vector<2x128xf32>
    %93 = arith.mulf %92, %89 : vector<2x128xf32>
    %c1_48 = arith.constant 1 : index
    %c1_49 = arith.constant 1 : index
    %94 = memref.load %arg3[%c1_48, %c1_49] : memref<4x16xf32, #tpu.memory_space<smem>>
    %95 = vector.broadcast %94 : f32 to vector<2x128xf32>
    %96 = arith.mulf %95, %88 : vector<2x128xf32>
    %97 = arith.addf %93, %96 : vector<2x128xf32>
    %c2_50 = arith.constant 2 : index
    %c1_51 = arith.constant 1 : index
    %98 = memref.load %arg3[%c2_50, %c1_51] : memref<4x16xf32, #tpu.memory_space<smem>>
    %99 = vector.broadcast %98 : f32 to vector<2x128xf32>
    %100 = arith.mulf %99, %90 : vector<2x128xf32>
    %101 = arith.addf %97, %100 : vector<2x128xf32>
    %c3_52 = arith.constant 3 : index
    %c1_53 = arith.constant 1 : index
    %102 = memref.load %arg3[%c3_52, %c1_53] : memref<4x16xf32, #tpu.memory_space<smem>>
    %103 = vector.broadcast %102 : f32 to vector<2x128xf32>
    %104 = arith.addf %101, %103 : vector<2x128xf32>
    %cst_54 = arith.constant 0.000000e+00 : f32
    %105 = vector.broadcast %cst_54 : f32 to vector<2x128xf32>
    %106 = arith.maximumf %104, %105 : vector<2x128xf32>
    %c0_55 = arith.constant 0 : index
    %c1_56 = arith.constant 1 : index
    %107 = memref.load %arg4[%c0_55, %c1_56] : memref<4x16xf32, #tpu.memory_space<smem>>
    %108 = vector.broadcast %107 : f32 to vector<2x128xf32>
    %109 = arith.mulf %108, %89 : vector<2x128xf32>
    %c1_57 = arith.constant 1 : index
    %c1_58 = arith.constant 1 : index
    %110 = memref.load %arg4[%c1_57, %c1_58] : memref<4x16xf32, #tpu.memory_space<smem>>
    %111 = vector.broadcast %110 : f32 to vector<2x128xf32>
    %112 = arith.mulf %111, %88 : vector<2x128xf32>
    %113 = arith.addf %109, %112 : vector<2x128xf32>
    %c2_59 = arith.constant 2 : index
    %c1_60 = arith.constant 1 : index
    %114 = memref.load %arg4[%c2_59, %c1_60] : memref<4x16xf32, #tpu.memory_space<smem>>
    %115 = vector.broadcast %114 : f32 to vector<2x128xf32>
    %116 = arith.mulf %115, %90 : vector<2x128xf32>
    %117 = arith.addf %113, %116 : vector<2x128xf32>
    %c3_61 = arith.constant 3 : index
    %c1_62 = arith.constant 1 : index
    %118 = memref.load %arg4[%c3_61, %c1_62] : memref<4x16xf32, #tpu.memory_space<smem>>
    %119 = vector.broadcast %118 : f32 to vector<2x128xf32>
    %120 = arith.addf %117, %119 : vector<2x128xf32>
    %cst_63 = arith.constant 0.000000e+00 : f32
    %121 = vector.broadcast %cst_63 : f32 to vector<2x128xf32>
    %122 = arith.maximumf %120, %121 : vector<2x128xf32>
    %123 = arith.truncf %106 : vector<2x128xf32> to vector<2x128xbf16>
    %c1_64 = arith.constant 1 : index
    %c0_65 = arith.constant 0 : index
    %c0_66 = arith.constant 0 : index
    %124 = vector.load %arg5[%c1_64, %c0_65, %c0_66] : memref<16x128x128xbf16, #tpu.memory_space<vmem>>, vector<1x128x128xbf16>
    %125 = vector.shape_cast %124 : vector<1x128x128xbf16> to vector<128x128xbf16>
    %cst_67 = arith.constant dense<0.000000e+00> : vector<2x128xf32>
    %126 = tpu.matmul %123, %125, %cst_67 {dimension_numbers = #tpu.dot_dimension_numbers<[1], [0], [0], [1], [0, 0, 1, 1], [], []>} : vector<2x128xbf16>, vector<128x128xbf16>, vector<2x128xf32> -> vector<2x128xf32>
    %127 = arith.addf %70, %126 : vector<2x128xf32>
    %128 = arith.truncf %122 : vector<2x128xf32> to vector<2x128xbf16>
    %c1_68 = arith.constant 1 : index
    %c0_69 = arith.constant 0 : index
    %c0_70 = arith.constant 0 : index
    %129 = vector.load %arg6[%c1_68, %c0_69, %c0_70] : memref<16x128x128xbf16, #tpu.memory_space<vmem>>, vector<1x128x128xbf16>
    %130 = vector.shape_cast %129 : vector<1x128x128xbf16> to vector<128x128xbf16>
    %cst_71 = arith.constant dense<0.000000e+00> : vector<2x128xf32>
    %131 = tpu.matmul %128, %130, %cst_71 {dimension_numbers = #tpu.dot_dimension_numbers<[1], [0], [0], [1], [0, 0, 1, 1], [], []>} : vector<2x128xbf16>, vector<128x128xbf16>, vector<2x128xf32> -> vector<2x128xf32>
    %132 = arith.addf %127, %131 : vector<2x128xf32>
    %c0_72 = arith.constant 0 : index
    %c2_73 = arith.constant 2 : index
    %133 = memref.load %arg2[%c0_72, %c2_73] : memref<4x16xf32, #tpu.memory_space<smem>>
    %134 = vector.broadcast %133 : f32 to vector<2x128xf32>
    %135 = arith.mulf %134, %1 : vector<2x128xf32>
    %c1_74 = arith.constant 1 : index
    %c2_75 = arith.constant 2 : index
    %136 = memref.load %arg2[%c1_74, %c2_75] : memref<4x16xf32, #tpu.memory_space<smem>>
    %137 = vector.broadcast %136 : f32 to vector<2x128xf32>
    %138 = arith.mulf %137, %0 : vector<2x128xf32>
    %139 = arith.addf %135, %138 : vector<2x128xf32>
    %c2_76 = arith.constant 2 : index
    %c2_77 = arith.constant 2 : index
    %140 = memref.load %arg2[%c2_76, %c2_77] : memref<4x16xf32, #tpu.memory_space<smem>>
    %141 = vector.broadcast %140 : f32 to vector<2x128xf32>
    %142 = arith.mulf %141, %2 : vector<2x128xf32>
    %143 = arith.addf %139, %142 : vector<2x128xf32>
    %c3_78 = arith.constant 3 : index
    %c2_79 = arith.constant 2 : index
    %144 = memref.load %arg2[%c3_78, %c2_79] : memref<4x16xf32, #tpu.memory_space<smem>>
    %145 = vector.broadcast %144 : f32 to vector<2x128xf32>
    %146 = arith.addf %143, %145 : vector<2x128xf32>
    %cst_80 = arith.constant 0.000000e+00 : f32
    %147 = vector.broadcast %cst_80 : f32 to vector<2x128xf32>
    %148 = arith.maximumf %146, %147 : vector<2x128xf32>
    %149 = vector.broadcast %7 : vector<1x128xf32> to vector<2x128xf32>
    %150 = arith.mulf %148, %149 : vector<2x128xf32>
    %c1_i32_81 = arith.constant 1 : i32
    %151 = tpu.dynamic_rotate %150 by %c1_i32_81 dim 1 : vector<2x128xf32>, i32 -> vector<2x128xf32>
    %c127_i32_82 = arith.constant 127 : i32
    %152 = tpu.dynamic_rotate %150 by %c127_i32_82 dim 1 : vector<2x128xf32>, i32 -> vector<2x128xf32>
    %c0_83 = arith.constant 0 : index
    %c2_84 = arith.constant 2 : index
    %153 = memref.load %arg3[%c0_83, %c2_84] : memref<4x16xf32, #tpu.memory_space<smem>>
    %154 = vector.broadcast %153 : f32 to vector<2x128xf32>
    %155 = arith.mulf %154, %151 : vector<2x128xf32>
    %c1_85 = arith.constant 1 : index
    %c2_86 = arith.constant 2 : index
    %156 = memref.load %arg3[%c1_85, %c2_86] : memref<4x16xf32, #tpu.memory_space<smem>>
    %157 = vector.broadcast %156 : f32 to vector<2x128xf32>
    %158 = arith.mulf %157, %150 : vector<2x128xf32>
    %159 = arith.addf %155, %158 : vector<2x128xf32>
    %c2_87 = arith.constant 2 : index
    %c2_88 = arith.constant 2 : index
    %160 = memref.load %arg3[%c2_87, %c2_88] : memref<4x16xf32, #tpu.memory_space<smem>>
    %161 = vector.broadcast %160 : f32 to vector<2x128xf32>
    %162 = arith.mulf %161, %152 : vector<2x128xf32>
    %163 = arith.addf %159, %162 : vector<2x128xf32>
    %c3_89 = arith.constant 3 : index
    %c2_90 = arith.constant 2 : index
    %164 = memref.load %arg3[%c3_89, %c2_90] : memref<4x16xf32, #tpu.memory_space<smem>>
    %165 = vector.broadcast %164 : f32 to vector<2x128xf32>
    %166 = arith.addf %163, %165 : vector<2x128xf32>
    %cst_91 = arith.constant 0.000000e+00 : f32
    %167 = vector.broadcast %cst_91 : f32 to vector<2x128xf32>
    %168 = arith.maximumf %166, %167 : vector<2x128xf32>
    %c0_92 = arith.constant 0 : index
    %c2_93 = arith.constant 2 : index
    %169 = memref.load %arg4[%c0_92, %c2_93] : memref<4x16xf32, #tpu.memory_space<smem>>
    %170 = vector.broadcast %169 : f32 to vector<2x128xf32>
    %171 = arith.mulf %170, %151 : vector<2x128xf32>
    %c1_94 = arith.constant 1 : index
    %c2_95 = arith.constant 2 : index
    %172 = memref.load %arg4[%c1_94, %c2_95] : memref<4x16xf32, #tpu.memory_space<smem>>
    %173 = vector.broadcast %172 : f32 to vector<2x128xf32>
    %174 = arith.mulf %173, %150 : vector<2x128xf32>
    %175 = arith.addf %171, %174 : vector<2x128xf32>
    %c2_96 = arith.constant 2 : index
    %c2_97 = arith.constant 2 : index
    %176 = memref.load %arg4[%c2_96, %c2_97] : memref<4x16xf32, #tpu.memory_space<smem>>
    %177 = vector.broadcast %176 : f32 to vector<2x128xf32>
    %178 = arith.mulf %177, %152 : vector<2x128xf32>
    %179 = arith.addf %175, %178 : vector<2x128xf32>
    %c3_98 = arith.constant 3 : index
    %c2_99 = arith.constant 2 : index
    %180 = memref.load %arg4[%c3_98, %c2_99] : memref<4x16xf32, #tpu.memory_space<smem>>
    %181 = vector.broadcast %180 : f32 to vector<2x128xf32>
    %182 = arith.addf %179, %181 : vector<2x128xf32>
    %cst_100 = arith.constant 0.000000e+00 : f32
    %183 = vector.broadcast %cst_100 : f32 to vector<2x128xf32>
    %184 = arith.maximumf %182, %183 : vector<2x128xf32>
    %185 = arith.truncf %168 : vector<2x128xf32> to vector<2x128xbf16>
    %c2_101 = arith.constant 2 : index
    %c0_102 = arith.constant 0 : index
    %c0_103 = arith.constant 0 : index
    %186 = vector.load %arg5[%c2_101, %c0_102, %c0_103] : memref<16x128x128xbf16, #tpu.memory_space<vmem>>, vector<1x128x128xbf16>
    %187 = vector.shape_cast %186 : vector<1x128x128xbf16> to vector<128x128xbf16>
    %cst_104 = arith.constant dense<0.000000e+00> : vector<2x128xf32>
    %188 = tpu.matmul %185, %187, %cst_104 {dimension_numbers = #tpu.dot_dimension_numbers<[1], [0], [0], [1], [0, 0, 1, 1], [], []>} : vector<2x128xbf16>, vector<128x128xbf16>, vector<2x128xf32> -> vector<2x128xf32>
    %189 = arith.addf %132, %188 : vector<2x128xf32>
    %190 = arith.truncf %184 : vector<2x128xf32> to vector<2x128xbf16>
    %c2_105 = arith.constant 2 : index
    %c0_106 = arith.constant 0 : index
    %c0_107 = arith.constant 0 : index
    %191 = vector.load %arg6[%c2_105, %c0_106, %c0_107] : memref<16x128x128xbf16, #tpu.memory_space<vmem>>, vector<1x128x128xbf16>
    %192 = vector.shape_cast %191 : vector<1x128x128xbf16> to vector<128x128xbf16>
    %cst_108 = arith.constant dense<0.000000e+00> : vector<2x128xf32>
    %193 = tpu.matmul %190, %192, %cst_108 {dimension_numbers = #tpu.dot_dimension_numbers<[1], [0], [0], [1], [0, 0, 1, 1], [], []>} : vector<2x128xbf16>, vector<128x128xbf16>, vector<2x128xf32> -> vector<2x128xf32>
    %194 = arith.addf %189, %193 : vector<2x128xf32>
    %c0_109 = arith.constant 0 : index
    %c3_110 = arith.constant 3 : index
    %195 = memref.load %arg2[%c0_109, %c3_110] : memref<4x16xf32, #tpu.memory_space<smem>>
    %196 = vector.broadcast %195 : f32 to vector<2x128xf32>
    %197 = arith.mulf %196, %1 : vector<2x128xf32>
    %c1_111 = arith.constant 1 : index
    %c3_112 = arith.constant 3 : index
    %198 = memref.load %arg2[%c1_111, %c3_112] : memref<4x16xf32, #tpu.memory_space<smem>>
    %199 = vector.broadcast %198 : f32 to vector<2x128xf32>
    %200 = arith.mulf %199, %0 : vector<2x128xf32>
    %201 = arith.addf %197, %200 : vector<2x128xf32>
    %c2_113 = arith.constant 2 : index
    %c3_114 = arith.constant 3 : index
    %202 = memref.load %arg2[%c2_113, %c3_114] : memref<4x16xf32, #tpu.memory_space<smem>>
    %203 = vector.broadcast %202 : f32 to vector<2x128xf32>
    %204 = arith.mulf %203, %2 : vector<2x128xf32>
    %205 = arith.addf %201, %204 : vector<2x128xf32>
    %c3_115 = arith.constant 3 : index
    %c3_116 = arith.constant 3 : index
    %206 = memref.load %arg2[%c3_115, %c3_116] : memref<4x16xf32, #tpu.memory_space<smem>>
    %207 = vector.broadcast %206 : f32 to vector<2x128xf32>
    %208 = arith.addf %205, %207 : vector<2x128xf32>
    %cst_117 = arith.constant 0.000000e+00 : f32
    %209 = vector.broadcast %cst_117 : f32 to vector<2x128xf32>
    %210 = arith.maximumf %208, %209 : vector<2x128xf32>
    %211 = vector.broadcast %7 : vector<1x128xf32> to vector<2x128xf32>
    %212 = arith.mulf %210, %211 : vector<2x128xf32>
    %c1_i32_118 = arith.constant 1 : i32
    %213 = tpu.dynamic_rotate %212 by %c1_i32_118 dim 1 : vector<2x128xf32>, i32 -> vector<2x128xf32>
    %c127_i32_119 = arith.constant 127 : i32
    %214 = tpu.dynamic_rotate %212 by %c127_i32_119 dim 1 : vector<2x128xf32>, i32 -> vector<2x128xf32>
    %c0_120 = arith.constant 0 : index
    %c3_121 = arith.constant 3 : index
    %215 = memref.load %arg3[%c0_120, %c3_121] : memref<4x16xf32, #tpu.memory_space<smem>>
    %216 = vector.broadcast %215 : f32 to vector<2x128xf32>
    %217 = arith.mulf %216, %213 : vector<2x128xf32>
    %c1_122 = arith.constant 1 : index
    %c3_123 = arith.constant 3 : index
    %218 = memref.load %arg3[%c1_122, %c3_123] : memref<4x16xf32, #tpu.memory_space<smem>>
    %219 = vector.broadcast %218 : f32 to vector<2x128xf32>
    %220 = arith.mulf %219, %212 : vector<2x128xf32>
    %221 = arith.addf %217, %220 : vector<2x128xf32>
    %c2_124 = arith.constant 2 : index
    %c3_125 = arith.constant 3 : index
    %222 = memref.load %arg3[%c2_124, %c3_125] : memref<4x16xf32, #tpu.memory_space<smem>>
    %223 = vector.broadcast %222 : f32 to vector<2x128xf32>
    %224 = arith.mulf %223, %214 : vector<2x128xf32>
    %225 = arith.addf %221, %224 : vector<2x128xf32>
    %c3_126 = arith.constant 3 : index
    %c3_127 = arith.constant 3 : index
    %226 = memref.load %arg3[%c3_126, %c3_127] : memref<4x16xf32, #tpu.memory_space<smem>>
    %227 = vector.broadcast %226 : f32 to vector<2x128xf32>
    %228 = arith.addf %225, %227 : vector<2x128xf32>
    %cst_128 = arith.constant 0.000000e+00 : f32
    %229 = vector.broadcast %cst_128 : f32 to vector<2x128xf32>
    %230 = arith.maximumf %228, %229 : vector<2x128xf32>
    %c0_129 = arith.constant 0 : index
    %c3_130 = arith.constant 3 : index
    %231 = memref.load %arg4[%c0_129, %c3_130] : memref<4x16xf32, #tpu.memory_space<smem>>
    %232 = vector.broadcast %231 : f32 to vector<2x128xf32>
    %233 = arith.mulf %232, %213 : vector<2x128xf32>
    %c1_131 = arith.constant 1 : index
    %c3_132 = arith.constant 3 : index
    %234 = memref.load %arg4[%c1_131, %c3_132] : memref<4x16xf32, #tpu.memory_space<smem>>
    %235 = vector.broadcast %234 : f32 to vector<2x128xf32>
    %236 = arith.mulf %235, %212 : vector<2x128xf32>
    %237 = arith.addf %233, %236 : vector<2x128xf32>
    %c2_133 = arith.constant 2 : index
    %c3_134 = arith.constant 3 : index
    %238 = memref.load %arg4[%c2_133, %c3_134] : memref<4x16xf32, #tpu.memory_space<smem>>
    %239 = vector.broadcast %238 : f32 to vector<2x128xf32>
    %240 = arith.mulf %239, %214 : vector<2x128xf32>
    %241 = arith.addf %237, %240 : vector<2x128xf32>
    %c3_135 = arith.constant 3 : index
    %c3_136 = arith.constant 3 : index
    %242 = memref.load %arg4[%c3_135, %c3_136] : memref<4x16xf32, #tpu.memory_space<smem>>
    %243 = vector.broadcast %242 : f32 to vector<2x128xf32>
    %244 = arith.addf %241, %243 : vector<2x128xf32>
    %cst_137 = arith.constant 0.000000e+00 : f32
    %245 = vector.broadcast %cst_137 : f32 to vector<2x128xf32>
    %246 = arith.maximumf %244, %245 : vector<2x128xf32>
    %247 = arith.truncf %230 : vector<2x128xf32> to vector<2x128xbf16>
    %c3_138 = arith.constant 3 : index
    %c0_139 = arith.constant 0 : index
    %c0_140 = arith.constant 0 : index
    %248 = vector.load %arg5[%c3_138, %c0_139, %c0_140] : memref<16x128x128xbf16, #tpu.memory_space<vmem>>, vector<1x128x128xbf16>
    %249 = vector.shape_cast %248 : vector<1x128x128xbf16> to vector<128x128xbf16>
    %cst_141 = arith.constant dense<0.000000e+00> : vector<2x128xf32>
    %250 = tpu.matmul %247, %249, %cst_141 {dimension_numbers = #tpu.dot_dimension_numbers<[1], [0], [0], [1], [0, 0, 1, 1], [], []>} : vector<2x128xbf16>, vector<128x128xbf16>, vector<2x128xf32> -> vector<2x128xf32>
    %251 = arith.addf %194, %250 : vector<2x128xf32>
    %252 = arith.truncf %246 : vector<2x128xf32> to vector<2x128xbf16>
    %c3_142 = arith.constant 3 : index
    %c0_143 = arith.constant 0 : index
    %c0_144 = arith.constant 0 : index
    %253 = vector.load %arg6[%c3_142, %c0_143, %c0_144] : memref<16x128x128xbf16, #tpu.memory_space<vmem>>, vector<1x128x128xbf16>
    %254 = vector.shape_cast %253 : vector<1x128x128xbf16> to vector<128x128xbf16>
    %cst_145 = arith.constant dense<0.000000e+00> : vector<2x128xf32>
    %255 = tpu.matmul %252, %254, %cst_145 {dimension_numbers = #tpu.dot_dimension_numbers<[1], [0], [0], [1], [0, 0, 1, 1], [], []>} : vector<2x128xbf16>, vector<128x128xbf16>, vector<2x128xf32> -> vector<2x128xf32>
    %256 = arith.addf %251, %255 : vector<2x128xf32>
    %c0_146 = arith.constant 0 : index
    %c4 = arith.constant 4 : index
    %257 = memref.load %arg2[%c0_146, %c4] : memref<4x16xf32, #tpu.memory_space<smem>>
    %258 = vector.broadcast %257 : f32 to vector<2x128xf32>
    %259 = arith.mulf %258, %1 : vector<2x128xf32>
    %c1_147 = arith.constant 1 : index
    %c4_148 = arith.constant 4 : index
    %260 = memref.load %arg2[%c1_147, %c4_148] : memref<4x16xf32, #tpu.memory_space<smem>>
    %261 = vector.broadcast %260 : f32 to vector<2x128xf32>
    %262 = arith.mulf %261, %0 : vector<2x128xf32>
    %263 = arith.addf %259, %262 : vector<2x128xf32>
    %c2_149 = arith.constant 2 : index
    %c4_150 = arith.constant 4 : index
    %264 = memref.load %arg2[%c2_149, %c4_150] : memref<4x16xf32, #tpu.memory_space<smem>>
    %265 = vector.broadcast %264 : f32 to vector<2x128xf32>
    %266 = arith.mulf %265, %2 : vector<2x128xf32>
    %267 = arith.addf %263, %266 : vector<2x128xf32>
    %c3_151 = arith.constant 3 : index
    %c4_152 = arith.constant 4 : index
    %268 = memref.load %arg2[%c3_151, %c4_152] : memref<4x16xf32, #tpu.memory_space<smem>>
    %269 = vector.broadcast %268 : f32 to vector<2x128xf32>
    %270 = arith.addf %267, %269 : vector<2x128xf32>
    %cst_153 = arith.constant 0.000000e+00 : f32
    %271 = vector.broadcast %cst_153 : f32 to vector<2x128xf32>
    %272 = arith.maximumf %270, %271 : vector<2x128xf32>
    %273 = vector.broadcast %7 : vector<1x128xf32> to vector<2x128xf32>
    %274 = arith.mulf %272, %273 : vector<2x128xf32>
    %c1_i32_154 = arith.constant 1 : i32
    %275 = tpu.dynamic_rotate %274 by %c1_i32_154 dim 1 : vector<2x128xf32>, i32 -> vector<2x128xf32>
    %c127_i32_155 = arith.constant 127 : i32
    %276 = tpu.dynamic_rotate %274 by %c127_i32_155 dim 1 : vector<2x128xf32>, i32 -> vector<2x128xf32>
    %c0_156 = arith.constant 0 : index
    %c4_157 = arith.constant 4 : index
    %277 = memref.load %arg3[%c0_156, %c4_157] : memref<4x16xf32, #tpu.memory_space<smem>>
    %278 = vector.broadcast %277 : f32 to vector<2x128xf32>
    %279 = arith.mulf %278, %275 : vector<2x128xf32>
    %c1_158 = arith.constant 1 : index
    %c4_159 = arith.constant 4 : index
    %280 = memref.load %arg3[%c1_158, %c4_159] : memref<4x16xf32, #tpu.memory_space<smem>>
    %281 = vector.broadcast %280 : f32 to vector<2x128xf32>
    %282 = arith.mulf %281, %274 : vector<2x128xf32>
    %283 = arith.addf %279, %282 : vector<2x128xf32>
    %c2_160 = arith.constant 2 : index
    %c4_161 = arith.constant 4 : index
    %284 = memref.load %arg3[%c2_160, %c4_161] : memref<4x16xf32, #tpu.memory_space<smem>>
    %285 = vector.broadcast %284 : f32 to vector<2x128xf32>
    %286 = arith.mulf %285, %276 : vector<2x128xf32>
    %287 = arith.addf %283, %286 : vector<2x128xf32>
    %c3_162 = arith.constant 3 : index
    %c4_163 = arith.constant 4 : index
    %288 = memref.load %arg3[%c3_162, %c4_163] : memref<4x16xf32, #tpu.memory_space<smem>>
    %289 = vector.broadcast %288 : f32 to vector<2x128xf32>
    %290 = arith.addf %287, %289 : vector<2x128xf32>
    %cst_164 = arith.constant 0.000000e+00 : f32
    %291 = vector.broadcast %cst_164 : f32 to vector<2x128xf32>
    %292 = arith.maximumf %290, %291 : vector<2x128xf32>
    %c0_165 = arith.constant 0 : index
    %c4_166 = arith.constant 4 : index
    %293 = memref.load %arg4[%c0_165, %c4_166] : memref<4x16xf32, #tpu.memory_space<smem>>
    %294 = vector.broadcast %293 : f32 to vector<2x128xf32>
    %295 = arith.mulf %294, %275 : vector<2x128xf32>
    %c1_167 = arith.constant 1 : index
    %c4_168 = arith.constant 4 : index
    %296 = memref.load %arg4[%c1_167, %c4_168] : memref<4x16xf32, #tpu.memory_space<smem>>
    %297 = vector.broadcast %296 : f32 to vector<2x128xf32>
    %298 = arith.mulf %297, %274 : vector<2x128xf32>
    %299 = arith.addf %295, %298 : vector<2x128xf32>
    %c2_169 = arith.constant 2 : index
    %c4_170 = arith.constant 4 : index
    %300 = memref.load %arg4[%c2_169, %c4_170] : memref<4x16xf32, #tpu.memory_space<smem>>
    %301 = vector.broadcast %300 : f32 to vector<2x128xf32>
    %302 = arith.mulf %301, %276 : vector<2x128xf32>
    %303 = arith.addf %299, %302 : vector<2x128xf32>
    %c3_171 = arith.constant 3 : index
    %c4_172 = arith.constant 4 : index
    %304 = memref.load %arg4[%c3_171, %c4_172] : memref<4x16xf32, #tpu.memory_space<smem>>
    %305 = vector.broadcast %304 : f32 to vector<2x128xf32>
    %306 = arith.addf %303, %305 : vector<2x128xf32>
    %cst_173 = arith.constant 0.000000e+00 : f32
    %307 = vector.broadcast %cst_173 : f32 to vector<2x128xf32>
    %308 = arith.maximumf %306, %307 : vector<2x128xf32>
    %309 = arith.truncf %292 : vector<2x128xf32> to vector<2x128xbf16>
    %c4_174 = arith.constant 4 : index
    %c0_175 = arith.constant 0 : index
    %c0_176 = arith.constant 0 : index
    %310 = vector.load %arg5[%c4_174, %c0_175, %c0_176] : memref<16x128x128xbf16, #tpu.memory_space<vmem>>, vector<1x128x128xbf16>
    %311 = vector.shape_cast %310 : vector<1x128x128xbf16> to vector<128x128xbf16>
    %cst_177 = arith.constant dense<0.000000e+00> : vector<2x128xf32>
    %312 = tpu.matmul %309, %311, %cst_177 {dimension_numbers = #tpu.dot_dimension_numbers<[1], [0], [0], [1], [0, 0, 1, 1], [], []>} : vector<2x128xbf16>, vector<128x128xbf16>, vector<2x128xf32> -> vector<2x128xf32>
    %313 = arith.addf %256, %312 : vector<2x128xf32>
    %314 = arith.truncf %308 : vector<2x128xf32> to vector<2x128xbf16>
    %c4_178 = arith.constant 4 : index
    %c0_179 = arith.constant 0 : index
    %c0_180 = arith.constant 0 : index
    %315 = vector.load %arg6[%c4_178, %c0_179, %c0_180] : memref<16x128x128xbf16, #tpu.memory_space<vmem>>, vector<1x128x128xbf16>
    %316 = vector.shape_cast %315 : vector<1x128x128xbf16> to vector<128x128xbf16>
    %cst_181 = arith.constant dense<0.000000e+00> : vector<2x128xf32>
    %317 = tpu.matmul %314, %316, %cst_181 {dimension_numbers = #tpu.dot_dimension_numbers<[1], [0], [0], [1], [0, 0, 1, 1], [], []>} : vector<2x128xbf16>, vector<128x128xbf16>, vector<2x128xf32> -> vector<2x128xf32>
    %318 = arith.addf %313, %317 : vector<2x128xf32>
    %c0_182 = arith.constant 0 : index
    %c5 = arith.constant 5 : index
    %319 = memref.load %arg2[%c0_182, %c5] : memref<4x16xf32, #tpu.memory_space<smem>>
    %320 = vector.broadcast %319 : f32 to vector<2x128xf32>
    %321 = arith.mulf %320, %1 : vector<2x128xf32>
    %c1_183 = arith.constant 1 : index
    %c5_184 = arith.constant 5 : index
    %322 = memref.load %arg2[%c1_183, %c5_184] : memref<4x16xf32, #tpu.memory_space<smem>>
    %323 = vector.broadcast %322 : f32 to vector<2x128xf32>
    %324 = arith.mulf %323, %0 : vector<2x128xf32>
    %325 = arith.addf %321, %324 : vector<2x128xf32>
    %c2_185 = arith.constant 2 : index
    %c5_186 = arith.constant 5 : index
    %326 = memref.load %arg2[%c2_185, %c5_186] : memref<4x16xf32, #tpu.memory_space<smem>>
    %327 = vector.broadcast %326 : f32 to vector<2x128xf32>
    %328 = arith.mulf %327, %2 : vector<2x128xf32>
    %329 = arith.addf %325, %328 : vector<2x128xf32>
    %c3_187 = arith.constant 3 : index
    %c5_188 = arith.constant 5 : index
    %330 = memref.load %arg2[%c3_187, %c5_188] : memref<4x16xf32, #tpu.memory_space<smem>>
    %331 = vector.broadcast %330 : f32 to vector<2x128xf32>
    %332 = arith.addf %329, %331 : vector<2x128xf32>
    %cst_189 = arith.constant 0.000000e+00 : f32
    %333 = vector.broadcast %cst_189 : f32 to vector<2x128xf32>
    %334 = arith.maximumf %332, %333 : vector<2x128xf32>
    %335 = vector.broadcast %7 : vector<1x128xf32> to vector<2x128xf32>
    %336 = arith.mulf %334, %335 : vector<2x128xf32>
    %c1_i32_190 = arith.constant 1 : i32
    %337 = tpu.dynamic_rotate %336 by %c1_i32_190 dim 1 : vector<2x128xf32>, i32 -> vector<2x128xf32>
    %c127_i32_191 = arith.constant 127 : i32
    %338 = tpu.dynamic_rotate %336 by %c127_i32_191 dim 1 : vector<2x128xf32>, i32 -> vector<2x128xf32>
    %c0_192 = arith.constant 0 : index
    %c5_193 = arith.constant 5 : index
    %339 = memref.load %arg3[%c0_192, %c5_193] : memref<4x16xf32, #tpu.memory_space<smem>>
    %340 = vector.broadcast %339 : f32 to vector<2x128xf32>
    %341 = arith.mulf %340, %337 : vector<2x128xf32>
    %c1_194 = arith.constant 1 : index
    %c5_195 = arith.constant 5 : index
    %342 = memref.load %arg3[%c1_194, %c5_195] : memref<4x16xf32, #tpu.memory_space<smem>>
    %343 = vector.broadcast %342 : f32 to vector<2x128xf32>
    %344 = arith.mulf %343, %336 : vector<2x128xf32>
    %345 = arith.addf %341, %344 : vector<2x128xf32>
    %c2_196 = arith.constant 2 : index
    %c5_197 = arith.constant 5 : index
    %346 = memref.load %arg3[%c2_196, %c5_197] : memref<4x16xf32, #tpu.memory_space<smem>>
    %347 = vector.broadcast %346 : f32 to vector<2x128xf32>
    %348 = arith.mulf %347, %338 : vector<2x128xf32>
    %349 = arith.addf %345, %348 : vector<2x128xf32>
    %c3_198 = arith.constant 3 : index
    %c5_199 = arith.constant 5 : index
    %350 = memref.load %arg3[%c3_198, %c5_199] : memref<4x16xf32, #tpu.memory_space<smem>>
    %351 = vector.broadcast %350 : f32 to vector<2x128xf32>
    %352 = arith.addf %349, %351 : vector<2x128xf32>
    %cst_200 = arith.constant 0.000000e+00 : f32
    %353 = vector.broadcast %cst_200 : f32 to vector<2x128xf32>
    %354 = arith.maximumf %352, %353 : vector<2x128xf32>
    %c0_201 = arith.constant 0 : index
    %c5_202 = arith.constant 5 : index
    %355 = memref.load %arg4[%c0_201, %c5_202] : memref<4x16xf32, #tpu.memory_space<smem>>
    %356 = vector.broadcast %355 : f32 to vector<2x128xf32>
    %357 = arith.mulf %356, %337 : vector<2x128xf32>
    %c1_203 = arith.constant 1 : index
    %c5_204 = arith.constant 5 : index
    %358 = memref.load %arg4[%c1_203, %c5_204] : memref<4x16xf32, #tpu.memory_space<smem>>
    %359 = vector.broadcast %358 : f32 to vector<2x128xf32>
    %360 = arith.mulf %359, %336 : vector<2x128xf32>
    %361 = arith.addf %357, %360 : vector<2x128xf32>
    %c2_205 = arith.constant 2 : index
    %c5_206 = arith.constant 5 : index
    %362 = memref.load %arg4[%c2_205, %c5_206] : memref<4x16xf32, #tpu.memory_space<smem>>
    %363 = vector.broadcast %362 : f32 to vector<2x128xf32>
    %364 = arith.mulf %363, %338 : vector<2x128xf32>
    %365 = arith.addf %361, %364 : vector<2x128xf32>
    %c3_207 = arith.constant 3 : index
    %c5_208 = arith.constant 5 : index
    %366 = memref.load %arg4[%c3_207, %c5_208] : memref<4x16xf32, #tpu.memory_space<smem>>
    %367 = vector.broadcast %366 : f32 to vector<2x128xf32>
    %368 = arith.addf %365, %367 : vector<2x128xf32>
    %cst_209 = arith.constant 0.000000e+00 : f32
    %369 = vector.broadcast %cst_209 : f32 to vector<2x128xf32>
    %370 = arith.maximumf %368, %369 : vector<2x128xf32>
    %371 = arith.truncf %354 : vector<2x128xf32> to vector<2x128xbf16>
    %c5_210 = arith.constant 5 : index
    %c0_211 = arith.constant 0 : index
    %c0_212 = arith.constant 0 : index
    %372 = vector.load %arg5[%c5_210, %c0_211, %c0_212] : memref<16x128x128xbf16, #tpu.memory_space<vmem>>, vector<1x128x128xbf16>
    %373 = vector.shape_cast %372 : vector<1x128x128xbf16> to vector<128x128xbf16>
    %cst_213 = arith.constant dense<0.000000e+00> : vector<2x128xf32>
    %374 = tpu.matmul %371, %373, %cst_213 {dimension_numbers = #tpu.dot_dimension_numbers<[1], [0], [0], [1], [0, 0, 1, 1], [], []>} : vector<2x128xbf16>, vector<128x128xbf16>, vector<2x128xf32> -> vector<2x128xf32>
    %375 = arith.addf %318, %374 : vector<2x128xf32>
    %376 = arith.truncf %370 : vector<2x128xf32> to vector<2x128xbf16>
    %c5_214 = arith.constant 5 : index
    %c0_215 = arith.constant 0 : index
    %c0_216 = arith.constant 0 : index
    %377 = vector.load %arg6[%c5_214, %c0_215, %c0_216] : memref<16x128x128xbf16, #tpu.memory_space<vmem>>, vector<1x128x128xbf16>
    %378 = vector.shape_cast %377 : vector<1x128x128xbf16> to vector<128x128xbf16>
    %cst_217 = arith.constant dense<0.000000e+00> : vector<2x128xf32>
    %379 = tpu.matmul %376, %378, %cst_217 {dimension_numbers = #tpu.dot_dimension_numbers<[1], [0], [0], [1], [0, 0, 1, 1], [], []>} : vector<2x128xbf16>, vector<128x128xbf16>, vector<2x128xf32> -> vector<2x128xf32>
    %380 = arith.addf %375, %379 : vector<2x128xf32>
    %c0_218 = arith.constant 0 : index
    %c6 = arith.constant 6 : index
    %381 = memref.load %arg2[%c0_218, %c6] : memref<4x16xf32, #tpu.memory_space<smem>>
    %382 = vector.broadcast %381 : f32 to vector<2x128xf32>
    %383 = arith.mulf %382, %1 : vector<2x128xf32>
    %c1_219 = arith.constant 1 : index
    %c6_220 = arith.constant 6 : index
    %384 = memref.load %arg2[%c1_219, %c6_220] : memref<4x16xf32, #tpu.memory_space<smem>>
    %385 = vector.broadcast %384 : f32 to vector<2x128xf32>
    %386 = arith.mulf %385, %0 : vector<2x128xf32>
    %387 = arith.addf %383, %386 : vector<2x128xf32>
    %c2_221 = arith.constant 2 : index
    %c6_222 = arith.constant 6 : index
    %388 = memref.load %arg2[%c2_221, %c6_222] : memref<4x16xf32, #tpu.memory_space<smem>>
    %389 = vector.broadcast %388 : f32 to vector<2x128xf32>
    %390 = arith.mulf %389, %2 : vector<2x128xf32>
    %391 = arith.addf %387, %390 : vector<2x128xf32>
    %c3_223 = arith.constant 3 : index
    %c6_224 = arith.constant 6 : index
    %392 = memref.load %arg2[%c3_223, %c6_224] : memref<4x16xf32, #tpu.memory_space<smem>>
    %393 = vector.broadcast %392 : f32 to vector<2x128xf32>
    %394 = arith.addf %391, %393 : vector<2x128xf32>
    %cst_225 = arith.constant 0.000000e+00 : f32
    %395 = vector.broadcast %cst_225 : f32 to vector<2x128xf32>
    %396 = arith.maximumf %394, %395 : vector<2x128xf32>
    %397 = vector.broadcast %7 : vector<1x128xf32> to vector<2x128xf32>
    %398 = arith.mulf %396, %397 : vector<2x128xf32>
    %c1_i32_226 = arith.constant 1 : i32
    %399 = tpu.dynamic_rotate %398 by %c1_i32_226 dim 1 : vector<2x128xf32>, i32 -> vector<2x128xf32>
    %c127_i32_227 = arith.constant 127 : i32
    %400 = tpu.dynamic_rotate %398 by %c127_i32_227 dim 1 : vector<2x128xf32>, i32 -> vector<2x128xf32>
    %c0_228 = arith.constant 0 : index
    %c6_229 = arith.constant 6 : index
    %401 = memref.load %arg3[%c0_228, %c6_229] : memref<4x16xf32, #tpu.memory_space<smem>>
    %402 = vector.broadcast %401 : f32 to vector<2x128xf32>
    %403 = arith.mulf %402, %399 : vector<2x128xf32>
    %c1_230 = arith.constant 1 : index
    %c6_231 = arith.constant 6 : index
    %404 = memref.load %arg3[%c1_230, %c6_231] : memref<4x16xf32, #tpu.memory_space<smem>>
    %405 = vector.broadcast %404 : f32 to vector<2x128xf32>
    %406 = arith.mulf %405, %398 : vector<2x128xf32>
    %407 = arith.addf %403, %406 : vector<2x128xf32>
    %c2_232 = arith.constant 2 : index
    %c6_233 = arith.constant 6 : index
    %408 = memref.load %arg3[%c2_232, %c6_233] : memref<4x16xf32, #tpu.memory_space<smem>>
    %409 = vector.broadcast %408 : f32 to vector<2x128xf32>
    %410 = arith.mulf %409, %400 : vector<2x128xf32>
    %411 = arith.addf %407, %410 : vector<2x128xf32>
    %c3_234 = arith.constant 3 : index
    %c6_235 = arith.constant 6 : index
    %412 = memref.load %arg3[%c3_234, %c6_235] : memref<4x16xf32, #tpu.memory_space<smem>>
    %413 = vector.broadcast %412 : f32 to vector<2x128xf32>
    %414 = arith.addf %411, %413 : vector<2x128xf32>
    %cst_236 = arith.constant 0.000000e+00 : f32
    %415 = vector.broadcast %cst_236 : f32 to vector<2x128xf32>
    %416 = arith.maximumf %414, %415 : vector<2x128xf32>
    %c0_237 = arith.constant 0 : index
    %c6_238 = arith.constant 6 : index
    %417 = memref.load %arg4[%c0_237, %c6_238] : memref<4x16xf32, #tpu.memory_space<smem>>
    %418 = vector.broadcast %417 : f32 to vector<2x128xf32>
    %419 = arith.mulf %418, %399 : vector<2x128xf32>
    %c1_239 = arith.constant 1 : index
    %c6_240 = arith.constant 6 : index
    %420 = memref.load %arg4[%c1_239, %c6_240] : memref<4x16xf32, #tpu.memory_space<smem>>
    %421 = vector.broadcast %420 : f32 to vector<2x128xf32>
    %422 = arith.mulf %421, %398 : vector<2x128xf32>
    %423 = arith.addf %419, %422 : vector<2x128xf32>
    %c2_241 = arith.constant 2 : index
    %c6_242 = arith.constant 6 : index
    %424 = memref.load %arg4[%c2_241, %c6_242] : memref<4x16xf32, #tpu.memory_space<smem>>
    %425 = vector.broadcast %424 : f32 to vector<2x128xf32>
    %426 = arith.mulf %425, %400 : vector<2x128xf32>
    %427 = arith.addf %423, %426 : vector<2x128xf32>
    %c3_243 = arith.constant 3 : index
    %c6_244 = arith.constant 6 : index
    %428 = memref.load %arg4[%c3_243, %c6_244] : memref<4x16xf32, #tpu.memory_space<smem>>
    %429 = vector.broadcast %428 : f32 to vector<2x128xf32>
    %430 = arith.addf %427, %429 : vector<2x128xf32>
    %cst_245 = arith.constant 0.000000e+00 : f32
    %431 = vector.broadcast %cst_245 : f32 to vector<2x128xf32>
    %432 = arith.maximumf %430, %431 : vector<2x128xf32>
    %433 = arith.truncf %416 : vector<2x128xf32> to vector<2x128xbf16>
    %c6_246 = arith.constant 6 : index
    %c0_247 = arith.constant 0 : index
    %c0_248 = arith.constant 0 : index
    %434 = vector.load %arg5[%c6_246, %c0_247, %c0_248] : memref<16x128x128xbf16, #tpu.memory_space<vmem>>, vector<1x128x128xbf16>
    %435 = vector.shape_cast %434 : vector<1x128x128xbf16> to vector<128x128xbf16>
    %cst_249 = arith.constant dense<0.000000e+00> : vector<2x128xf32>
    %436 = tpu.matmul %433, %435, %cst_249 {dimension_numbers = #tpu.dot_dimension_numbers<[1], [0], [0], [1], [0, 0, 1, 1], [], []>} : vector<2x128xbf16>, vector<128x128xbf16>, vector<2x128xf32> -> vector<2x128xf32>
    %437 = arith.addf %380, %436 : vector<2x128xf32>
    %438 = arith.truncf %432 : vector<2x128xf32> to vector<2x128xbf16>
    %c6_250 = arith.constant 6 : index
    %c0_251 = arith.constant 0 : index
    %c0_252 = arith.constant 0 : index
    %439 = vector.load %arg6[%c6_250, %c0_251, %c0_252] : memref<16x128x128xbf16, #tpu.memory_space<vmem>>, vector<1x128x128xbf16>
    %440 = vector.shape_cast %439 : vector<1x128x128xbf16> to vector<128x128xbf16>
    %cst_253 = arith.constant dense<0.000000e+00> : vector<2x128xf32>
    %441 = tpu.matmul %438, %440, %cst_253 {dimension_numbers = #tpu.dot_dimension_numbers<[1], [0], [0], [1], [0, 0, 1, 1], [], []>} : vector<2x128xbf16>, vector<128x128xbf16>, vector<2x128xf32> -> vector<2x128xf32>
    %442 = arith.addf %437, %441 : vector<2x128xf32>
    %c0_254 = arith.constant 0 : index
    %c7 = arith.constant 7 : index
    %443 = memref.load %arg2[%c0_254, %c7] : memref<4x16xf32, #tpu.memory_space<smem>>
    %444 = vector.broadcast %443 : f32 to vector<2x128xf32>
    %445 = arith.mulf %444, %1 : vector<2x128xf32>
    %c1_255 = arith.constant 1 : index
    %c7_256 = arith.constant 7 : index
    %446 = memref.load %arg2[%c1_255, %c7_256] : memref<4x16xf32, #tpu.memory_space<smem>>
    %447 = vector.broadcast %446 : f32 to vector<2x128xf32>
    %448 = arith.mulf %447, %0 : vector<2x128xf32>
    %449 = arith.addf %445, %448 : vector<2x128xf32>
    %c2_257 = arith.constant 2 : index
    %c7_258 = arith.constant 7 : index
    %450 = memref.load %arg2[%c2_257, %c7_258] : memref<4x16xf32, #tpu.memory_space<smem>>
    %451 = vector.broadcast %450 : f32 to vector<2x128xf32>
    %452 = arith.mulf %451, %2 : vector<2x128xf32>
    %453 = arith.addf %449, %452 : vector<2x128xf32>
    %c3_259 = arith.constant 3 : index
    %c7_260 = arith.constant 7 : index
    %454 = memref.load %arg2[%c3_259, %c7_260] : memref<4x16xf32, #tpu.memory_space<smem>>
    %455 = vector.broadcast %454 : f32 to vector<2x128xf32>
    %456 = arith.addf %453, %455 : vector<2x128xf32>
    %cst_261 = arith.constant 0.000000e+00 : f32
    %457 = vector.broadcast %cst_261 : f32 to vector<2x128xf32>
    %458 = arith.maximumf %456, %457 : vector<2x128xf32>
    %459 = vector.broadcast %7 : vector<1x128xf32> to vector<2x128xf32>
    %460 = arith.mulf %458, %459 : vector<2x128xf32>
    %c1_i32_262 = arith.constant 1 : i32
    %461 = tpu.dynamic_rotate %460 by %c1_i32_262 dim 1 : vector<2x128xf32>, i32 -> vector<2x128xf32>
    %c127_i32_263 = arith.constant 127 : i32
    %462 = tpu.dynamic_rotate %460 by %c127_i32_263 dim 1 : vector<2x128xf32>, i32 -> vector<2x128xf32>
    %c0_264 = arith.constant 0 : index
    %c7_265 = arith.constant 7 : index
    %463 = memref.load %arg3[%c0_264, %c7_265] : memref<4x16xf32, #tpu.memory_space<smem>>
    %464 = vector.broadcast %463 : f32 to vector<2x128xf32>
    %465 = arith.mulf %464, %461 : vector<2x128xf32>
    %c1_266 = arith.constant 1 : index
    %c7_267 = arith.constant 7 : index
    %466 = memref.load %arg3[%c1_266, %c7_267] : memref<4x16xf32, #tpu.memory_space<smem>>
    %467 = vector.broadcast %466 : f32 to vector<2x128xf32>
    %468 = arith.mulf %467, %460 : vector<2x128xf32>
    %469 = arith.addf %465, %468 : vector<2x128xf32>
    %c2_268 = arith.constant 2 : index
    %c7_269 = arith.constant 7 : index
    %470 = memref.load %arg3[%c2_268, %c7_269] : memref<4x16xf32, #tpu.memory_space<smem>>
    %471 = vector.broadcast %470 : f32 to vector<2x128xf32>
    %472 = arith.mulf %471, %462 : vector<2x128xf32>
    %473 = arith.addf %469, %472 : vector<2x128xf32>
    %c3_270 = arith.constant 3 : index
    %c7_271 = arith.constant 7 : index
    %474 = memref.load %arg3[%c3_270, %c7_271] : memref<4x16xf32, #tpu.memory_space<smem>>
    %475 = vector.broadcast %474 : f32 to vector<2x128xf32>
    %476 = arith.addf %473, %475 : vector<2x128xf32>
    %cst_272 = arith.constant 0.000000e+00 : f32
    %477 = vector.broadcast %cst_272 : f32 to vector<2x128xf32>
    %478 = arith.maximumf %476, %477 : vector<2x128xf32>
    %c0_273 = arith.constant 0 : index
    %c7_274 = arith.constant 7 : index
    %479 = memref.load %arg4[%c0_273, %c7_274] : memref<4x16xf32, #tpu.memory_space<smem>>
    %480 = vector.broadcast %479 : f32 to vector<2x128xf32>
    %481 = arith.mulf %480, %461 : vector<2x128xf32>
    %c1_275 = arith.constant 1 : index
    %c7_276 = arith.constant 7 : index
    %482 = memref.load %arg4[%c1_275, %c7_276] : memref<4x16xf32, #tpu.memory_space<smem>>
    %483 = vector.broadcast %482 : f32 to vector<2x128xf32>
    %484 = arith.mulf %483, %460 : vector<2x128xf32>
    %485 = arith.addf %481, %484 : vector<2x128xf32>
    %c2_277 = arith.constant 2 : index
    %c7_278 = arith.constant 7 : index
    %486 = memref.load %arg4[%c2_277, %c7_278] : memref<4x16xf32, #tpu.memory_space<smem>>
    %487 = vector.broadcast %486 : f32 to vector<2x128xf32>
    %488 = arith.mulf %487, %462 : vector<2x128xf32>
    %489 = arith.addf %485, %488 : vector<2x128xf32>
    %c3_279 = arith.constant 3 : index
    %c7_280 = arith.constant 7 : index
    %490 = memref.load %arg4[%c3_279, %c7_280] : memref<4x16xf32, #tpu.memory_space<smem>>
    %491 = vector.broadcast %490 : f32 to vector<2x128xf32>
    %492 = arith.addf %489, %491 : vector<2x128xf32>
    %cst_281 = arith.constant 0.000000e+00 : f32
    %493 = vector.broadcast %cst_281 : f32 to vector<2x128xf32>
    %494 = arith.maximumf %492, %493 : vector<2x128xf32>
    %495 = arith.truncf %478 : vector<2x128xf32> to vector<2x128xbf16>
    %c7_282 = arith.constant 7 : index
    %c0_283 = arith.constant 0 : index
    %c0_284 = arith.constant 0 : index
    %496 = vector.load %arg5[%c7_282, %c0_283, %c0_284] : memref<16x128x128xbf16, #tpu.memory_space<vmem>>, vector<1x128x128xbf16>
    %497 = vector.shape_cast %496 : vector<1x128x128xbf16> to vector<128x128xbf16>
    %cst_285 = arith.constant dense<0.000000e+00> : vector<2x128xf32>
    %498 = tpu.matmul %495, %497, %cst_285 {dimension_numbers = #tpu.dot_dimension_numbers<[1], [0], [0], [1], [0, 0, 1, 1], [], []>} : vector<2x128xbf16>, vector<128x128xbf16>, vector<2x128xf32> -> vector<2x128xf32>
    %499 = arith.addf %442, %498 : vector<2x128xf32>
    %500 = arith.truncf %494 : vector<2x128xf32> to vector<2x128xbf16>
    %c7_286 = arith.constant 7 : index
    %c0_287 = arith.constant 0 : index
    %c0_288 = arith.constant 0 : index
    %501 = vector.load %arg6[%c7_286, %c0_287, %c0_288] : memref<16x128x128xbf16, #tpu.memory_space<vmem>>, vector<1x128x128xbf16>
    %502 = vector.shape_cast %501 : vector<1x128x128xbf16> to vector<128x128xbf16>
    %cst_289 = arith.constant dense<0.000000e+00> : vector<2x128xf32>
    %503 = tpu.matmul %500, %502, %cst_289 {dimension_numbers = #tpu.dot_dimension_numbers<[1], [0], [0], [1], [0, 0, 1, 1], [], []>} : vector<2x128xbf16>, vector<128x128xbf16>, vector<2x128xf32> -> vector<2x128xf32>
    %504 = arith.addf %499, %503 : vector<2x128xf32>
    %c0_290 = arith.constant 0 : index
    %c8 = arith.constant 8 : index
    %505 = memref.load %arg2[%c0_290, %c8] : memref<4x16xf32, #tpu.memory_space<smem>>
    %506 = vector.broadcast %505 : f32 to vector<2x128xf32>
    %507 = arith.mulf %506, %1 : vector<2x128xf32>
    %c1_291 = arith.constant 1 : index
    %c8_292 = arith.constant 8 : index
    %508 = memref.load %arg2[%c1_291, %c8_292] : memref<4x16xf32, #tpu.memory_space<smem>>
    %509 = vector.broadcast %508 : f32 to vector<2x128xf32>
    %510 = arith.mulf %509, %0 : vector<2x128xf32>
    %511 = arith.addf %507, %510 : vector<2x128xf32>
    %c2_293 = arith.constant 2 : index
    %c8_294 = arith.constant 8 : index
    %512 = memref.load %arg2[%c2_293, %c8_294] : memref<4x16xf32, #tpu.memory_space<smem>>
    %513 = vector.broadcast %512 : f32 to vector<2x128xf32>
    %514 = arith.mulf %513, %2 : vector<2x128xf32>
    %515 = arith.addf %511, %514 : vector<2x128xf32>
    %c3_295 = arith.constant 3 : index
    %c8_296 = arith.constant 8 : index
    %516 = memref.load %arg2[%c3_295, %c8_296] : memref<4x16xf32, #tpu.memory_space<smem>>
    %517 = vector.broadcast %516 : f32 to vector<2x128xf32>
    %518 = arith.addf %515, %517 : vector<2x128xf32>
    %cst_297 = arith.constant 0.000000e+00 : f32
    %519 = vector.broadcast %cst_297 : f32 to vector<2x128xf32>
    %520 = arith.maximumf %518, %519 : vector<2x128xf32>
    %521 = vector.broadcast %7 : vector<1x128xf32> to vector<2x128xf32>
    %522 = arith.mulf %520, %521 : vector<2x128xf32>
    %c1_i32_298 = arith.constant 1 : i32
    %523 = tpu.dynamic_rotate %522 by %c1_i32_298 dim 1 : vector<2x128xf32>, i32 -> vector<2x128xf32>
    %c127_i32_299 = arith.constant 127 : i32
    %524 = tpu.dynamic_rotate %522 by %c127_i32_299 dim 1 : vector<2x128xf32>, i32 -> vector<2x128xf32>
    %c0_300 = arith.constant 0 : index
    %c8_301 = arith.constant 8 : index
    %525 = memref.load %arg3[%c0_300, %c8_301] : memref<4x16xf32, #tpu.memory_space<smem>>
    %526 = vector.broadcast %525 : f32 to vector<2x128xf32>
    %527 = arith.mulf %526, %523 : vector<2x128xf32>
    %c1_302 = arith.constant 1 : index
    %c8_303 = arith.constant 8 : index
    %528 = memref.load %arg3[%c1_302, %c8_303] : memref<4x16xf32, #tpu.memory_space<smem>>
    %529 = vector.broadcast %528 : f32 to vector<2x128xf32>
    %530 = arith.mulf %529, %522 : vector<2x128xf32>
    %531 = arith.addf %527, %530 : vector<2x128xf32>
    %c2_304 = arith.constant 2 : index
    %c8_305 = arith.constant 8 : index
    %532 = memref.load %arg3[%c2_304, %c8_305] : memref<4x16xf32, #tpu.memory_space<smem>>
    %533 = vector.broadcast %532 : f32 to vector<2x128xf32>
    %534 = arith.mulf %533, %524 : vector<2x128xf32>
    %535 = arith.addf %531, %534 : vector<2x128xf32>
    %c3_306 = arith.constant 3 : index
    %c8_307 = arith.constant 8 : index
    %536 = memref.load %arg3[%c3_306, %c8_307] : memref<4x16xf32, #tpu.memory_space<smem>>
    %537 = vector.broadcast %536 : f32 to vector<2x128xf32>
    %538 = arith.addf %535, %537 : vector<2x128xf32>
    %cst_308 = arith.constant 0.000000e+00 : f32
    %539 = vector.broadcast %cst_308 : f32 to vector<2x128xf32>
    %540 = arith.maximumf %538, %539 : vector<2x128xf32>
    %c0_309 = arith.constant 0 : index
    %c8_310 = arith.constant 8 : index
    %541 = memref.load %arg4[%c0_309, %c8_310] : memref<4x16xf32, #tpu.memory_space<smem>>
    %542 = vector.broadcast %541 : f32 to vector<2x128xf32>
    %543 = arith.mulf %542, %523 : vector<2x128xf32>
    %c1_311 = arith.constant 1 : index
    %c8_312 = arith.constant 8 : index
    %544 = memref.load %arg4[%c1_311, %c8_312] : memref<4x16xf32, #tpu.memory_space<smem>>
    %545 = vector.broadcast %544 : f32 to vector<2x128xf32>
    %546 = arith.mulf %545, %522 : vector<2x128xf32>
    %547 = arith.addf %543, %546 : vector<2x128xf32>
    %c2_313 = arith.constant 2 : index
    %c8_314 = arith.constant 8 : index
    %548 = memref.load %arg4[%c2_313, %c8_314] : memref<4x16xf32, #tpu.memory_space<smem>>
    %549 = vector.broadcast %548 : f32 to vector<2x128xf32>
    %550 = arith.mulf %549, %524 : vector<2x128xf32>
    %551 = arith.addf %547, %550 : vector<2x128xf32>
    %c3_315 = arith.constant 3 : index
    %c8_316 = arith.constant 8 : index
    %552 = memref.load %arg4[%c3_315, %c8_316] : memref<4x16xf32, #tpu.memory_space<smem>>
    %553 = vector.broadcast %552 : f32 to vector<2x128xf32>
    %554 = arith.addf %551, %553 : vector<2x128xf32>
    %cst_317 = arith.constant 0.000000e+00 : f32
    %555 = vector.broadcast %cst_317 : f32 to vector<2x128xf32>
    %556 = arith.maximumf %554, %555 : vector<2x128xf32>
    %557 = arith.truncf %540 : vector<2x128xf32> to vector<2x128xbf16>
    %c8_318 = arith.constant 8 : index
    %c0_319 = arith.constant 0 : index
    %c0_320 = arith.constant 0 : index
    %558 = vector.load %arg5[%c8_318, %c0_319, %c0_320] : memref<16x128x128xbf16, #tpu.memory_space<vmem>>, vector<1x128x128xbf16>
    %559 = vector.shape_cast %558 : vector<1x128x128xbf16> to vector<128x128xbf16>
    %cst_321 = arith.constant dense<0.000000e+00> : vector<2x128xf32>
    %560 = tpu.matmul %557, %559, %cst_321 {dimension_numbers = #tpu.dot_dimension_numbers<[1], [0], [0], [1], [0, 0, 1, 1], [], []>} : vector<2x128xbf16>, vector<128x128xbf16>, vector<2x128xf32> -> vector<2x128xf32>
    %561 = arith.addf %504, %560 : vector<2x128xf32>
    %562 = arith.truncf %556 : vector<2x128xf32> to vector<2x128xbf16>
    %c8_322 = arith.constant 8 : index
    %c0_323 = arith.constant 0 : index
    %c0_324 = arith.constant 0 : index
    %563 = vector.load %arg6[%c8_322, %c0_323, %c0_324] : memref<16x128x128xbf16, #tpu.memory_space<vmem>>, vector<1x128x128xbf16>
    %564 = vector.shape_cast %563 : vector<1x128x128xbf16> to vector<128x128xbf16>
    %cst_325 = arith.constant dense<0.000000e+00> : vector<2x128xf32>
    %565 = tpu.matmul %562, %564, %cst_325 {dimension_numbers = #tpu.dot_dimension_numbers<[1], [0], [0], [1], [0, 0, 1, 1], [], []>} : vector<2x128xbf16>, vector<128x128xbf16>, vector<2x128xf32> -> vector<2x128xf32>
    %566 = arith.addf %561, %565 : vector<2x128xf32>
    %c0_326 = arith.constant 0 : index
    %c9 = arith.constant 9 : index
    %567 = memref.load %arg2[%c0_326, %c9] : memref<4x16xf32, #tpu.memory_space<smem>>
    %568 = vector.broadcast %567 : f32 to vector<2x128xf32>
    %569 = arith.mulf %568, %1 : vector<2x128xf32>
    %c1_327 = arith.constant 1 : index
    %c9_328 = arith.constant 9 : index
    %570 = memref.load %arg2[%c1_327, %c9_328] : memref<4x16xf32, #tpu.memory_space<smem>>
    %571 = vector.broadcast %570 : f32 to vector<2x128xf32>
    %572 = arith.mulf %571, %0 : vector<2x128xf32>
    %573 = arith.addf %569, %572 : vector<2x128xf32>
    %c2_329 = arith.constant 2 : index
    %c9_330 = arith.constant 9 : index
    %574 = memref.load %arg2[%c2_329, %c9_330] : memref<4x16xf32, #tpu.memory_space<smem>>
    %575 = vector.broadcast %574 : f32 to vector<2x128xf32>
    %576 = arith.mulf %575, %2 : vector<2x128xf32>
    %577 = arith.addf %573, %576 : vector<2x128xf32>
    %c3_331 = arith.constant 3 : index
    %c9_332 = arith.constant 9 : index
    %578 = memref.load %arg2[%c3_331, %c9_332] : memref<4x16xf32, #tpu.memory_space<smem>>
    %579 = vector.broadcast %578 : f32 to vector<2x128xf32>
    %580 = arith.addf %577, %579 : vector<2x128xf32>
    %cst_333 = arith.constant 0.000000e+00 : f32
    %581 = vector.broadcast %cst_333 : f32 to vector<2x128xf32>
    %582 = arith.maximumf %580, %581 : vector<2x128xf32>
    %583 = vector.broadcast %7 : vector<1x128xf32> to vector<2x128xf32>
    %584 = arith.mulf %582, %583 : vector<2x128xf32>
    %c1_i32_334 = arith.constant 1 : i32
    %585 = tpu.dynamic_rotate %584 by %c1_i32_334 dim 1 : vector<2x128xf32>, i32 -> vector<2x128xf32>
    %c127_i32_335 = arith.constant 127 : i32
    %586 = tpu.dynamic_rotate %584 by %c127_i32_335 dim 1 : vector<2x128xf32>, i32 -> vector<2x128xf32>
    %c0_336 = arith.constant 0 : index
    %c9_337 = arith.constant 9 : index
    %587 = memref.load %arg3[%c0_336, %c9_337] : memref<4x16xf32, #tpu.memory_space<smem>>
    %588 = vector.broadcast %587 : f32 to vector<2x128xf32>
    %589 = arith.mulf %588, %585 : vector<2x128xf32>
    %c1_338 = arith.constant 1 : index
    %c9_339 = arith.constant 9 : index
    %590 = memref.load %arg3[%c1_338, %c9_339] : memref<4x16xf32, #tpu.memory_space<smem>>
    %591 = vector.broadcast %590 : f32 to vector<2x128xf32>
    %592 = arith.mulf %591, %584 : vector<2x128xf32>
    %593 = arith.addf %589, %592 : vector<2x128xf32>
    %c2_340 = arith.constant 2 : index
    %c9_341 = arith.constant 9 : index
    %594 = memref.load %arg3[%c2_340, %c9_341] : memref<4x16xf32, #tpu.memory_space<smem>>
    %595 = vector.broadcast %594 : f32 to vector<2x128xf32>
    %596 = arith.mulf %595, %586 : vector<2x128xf32>
    %597 = arith.addf %593, %596 : vector<2x128xf32>
    %c3_342 = arith.constant 3 : index
    %c9_343 = arith.constant 9 : index
    %598 = memref.load %arg3[%c3_342, %c9_343] : memref<4x16xf32, #tpu.memory_space<smem>>
    %599 = vector.broadcast %598 : f32 to vector<2x128xf32>
    %600 = arith.addf %597, %599 : vector<2x128xf32>
    %cst_344 = arith.constant 0.000000e+00 : f32
    %601 = vector.broadcast %cst_344 : f32 to vector<2x128xf32>
    %602 = arith.maximumf %600, %601 : vector<2x128xf32>
    %c0_345 = arith.constant 0 : index
    %c9_346 = arith.constant 9 : index
    %603 = memref.load %arg4[%c0_345, %c9_346] : memref<4x16xf32, #tpu.memory_space<smem>>
    %604 = vector.broadcast %603 : f32 to vector<2x128xf32>
    %605 = arith.mulf %604, %585 : vector<2x128xf32>
    %c1_347 = arith.constant 1 : index
    %c9_348 = arith.constant 9 : index
    %606 = memref.load %arg4[%c1_347, %c9_348] : memref<4x16xf32, #tpu.memory_space<smem>>
    %607 = vector.broadcast %606 : f32 to vector<2x128xf32>
    %608 = arith.mulf %607, %584 : vector<2x128xf32>
    %609 = arith.addf %605, %608 : vector<2x128xf32>
    %c2_349 = arith.constant 2 : index
    %c9_350 = arith.constant 9 : index
    %610 = memref.load %arg4[%c2_349, %c9_350] : memref<4x16xf32, #tpu.memory_space<smem>>
    %611 = vector.broadcast %610 : f32 to vector<2x128xf32>
    %612 = arith.mulf %611, %586 : vector<2x128xf32>
    %613 = arith.addf %609, %612 : vector<2x128xf32>
    %c3_351 = arith.constant 3 : index
    %c9_352 = arith.constant 9 : index
    %614 = memref.load %arg4[%c3_351, %c9_352] : memref<4x16xf32, #tpu.memory_space<smem>>
    %615 = vector.broadcast %614 : f32 to vector<2x128xf32>
    %616 = arith.addf %613, %615 : vector<2x128xf32>
    %cst_353 = arith.constant 0.000000e+00 : f32
    %617 = vector.broadcast %cst_353 : f32 to vector<2x128xf32>
    %618 = arith.maximumf %616, %617 : vector<2x128xf32>
    %619 = arith.truncf %602 : vector<2x128xf32> to vector<2x128xbf16>
    %c9_354 = arith.constant 9 : index
    %c0_355 = arith.constant 0 : index
    %c0_356 = arith.constant 0 : index
    %620 = vector.load %arg5[%c9_354, %c0_355, %c0_356] : memref<16x128x128xbf16, #tpu.memory_space<vmem>>, vector<1x128x128xbf16>
    %621 = vector.shape_cast %620 : vector<1x128x128xbf16> to vector<128x128xbf16>
    %cst_357 = arith.constant dense<0.000000e+00> : vector<2x128xf32>
    %622 = tpu.matmul %619, %621, %cst_357 {dimension_numbers = #tpu.dot_dimension_numbers<[1], [0], [0], [1], [0, 0, 1, 1], [], []>} : vector<2x128xbf16>, vector<128x128xbf16>, vector<2x128xf32> -> vector<2x128xf32>
    %623 = arith.addf %566, %622 : vector<2x128xf32>
    %624 = arith.truncf %618 : vector<2x128xf32> to vector<2x128xbf16>
    %c9_358 = arith.constant 9 : index
    %c0_359 = arith.constant 0 : index
    %c0_360 = arith.constant 0 : index
    %625 = vector.load %arg6[%c9_358, %c0_359, %c0_360] : memref<16x128x128xbf16, #tpu.memory_space<vmem>>, vector<1x128x128xbf16>
    %626 = vector.shape_cast %625 : vector<1x128x128xbf16> to vector<128x128xbf16>
    %cst_361 = arith.constant dense<0.000000e+00> : vector<2x128xf32>
    %627 = tpu.matmul %624, %626, %cst_361 {dimension_numbers = #tpu.dot_dimension_numbers<[1], [0], [0], [1], [0, 0, 1, 1], [], []>} : vector<2x128xbf16>, vector<128x128xbf16>, vector<2x128xf32> -> vector<2x128xf32>
    %628 = arith.addf %623, %627 : vector<2x128xf32>
    %c0_362 = arith.constant 0 : index
    %c10 = arith.constant 10 : index
    %629 = memref.load %arg2[%c0_362, %c10] : memref<4x16xf32, #tpu.memory_space<smem>>
    %630 = vector.broadcast %629 : f32 to vector<2x128xf32>
    %631 = arith.mulf %630, %1 : vector<2x128xf32>
    %c1_363 = arith.constant 1 : index
    %c10_364 = arith.constant 10 : index
    %632 = memref.load %arg2[%c1_363, %c10_364] : memref<4x16xf32, #tpu.memory_space<smem>>
    %633 = vector.broadcast %632 : f32 to vector<2x128xf32>
    %634 = arith.mulf %633, %0 : vector<2x128xf32>
    %635 = arith.addf %631, %634 : vector<2x128xf32>
    %c2_365 = arith.constant 2 : index
    %c10_366 = arith.constant 10 : index
    %636 = memref.load %arg2[%c2_365, %c10_366] : memref<4x16xf32, #tpu.memory_space<smem>>
    %637 = vector.broadcast %636 : f32 to vector<2x128xf32>
    %638 = arith.mulf %637, %2 : vector<2x128xf32>
    %639 = arith.addf %635, %638 : vector<2x128xf32>
    %c3_367 = arith.constant 3 : index
    %c10_368 = arith.constant 10 : index
    %640 = memref.load %arg2[%c3_367, %c10_368] : memref<4x16xf32, #tpu.memory_space<smem>>
    %641 = vector.broadcast %640 : f32 to vector<2x128xf32>
    %642 = arith.addf %639, %641 : vector<2x128xf32>
    %cst_369 = arith.constant 0.000000e+00 : f32
    %643 = vector.broadcast %cst_369 : f32 to vector<2x128xf32>
    %644 = arith.maximumf %642, %643 : vector<2x128xf32>
    %645 = vector.broadcast %7 : vector<1x128xf32> to vector<2x128xf32>
    %646 = arith.mulf %644, %645 : vector<2x128xf32>
    %c1_i32_370 = arith.constant 1 : i32
    %647 = tpu.dynamic_rotate %646 by %c1_i32_370 dim 1 : vector<2x128xf32>, i32 -> vector<2x128xf32>
    %c127_i32_371 = arith.constant 127 : i32
    %648 = tpu.dynamic_rotate %646 by %c127_i32_371 dim 1 : vector<2x128xf32>, i32 -> vector<2x128xf32>
    %c0_372 = arith.constant 0 : index
    %c10_373 = arith.constant 10 : index
    %649 = memref.load %arg3[%c0_372, %c10_373] : memref<4x16xf32, #tpu.memory_space<smem>>
    %650 = vector.broadcast %649 : f32 to vector<2x128xf32>
    %651 = arith.mulf %650, %647 : vector<2x128xf32>
    %c1_374 = arith.constant 1 : index
    %c10_375 = arith.constant 10 : index
    %652 = memref.load %arg3[%c1_374, %c10_375] : memref<4x16xf32, #tpu.memory_space<smem>>
    %653 = vector.broadcast %652 : f32 to vector<2x128xf32>
    %654 = arith.mulf %653, %646 : vector<2x128xf32>
    %655 = arith.addf %651, %654 : vector<2x128xf32>
    %c2_376 = arith.constant 2 : index
    %c10_377 = arith.constant 10 : index
    %656 = memref.load %arg3[%c2_376, %c10_377] : memref<4x16xf32, #tpu.memory_space<smem>>
    %657 = vector.broadcast %656 : f32 to vector<2x128xf32>
    %658 = arith.mulf %657, %648 : vector<2x128xf32>
    %659 = arith.addf %655, %658 : vector<2x128xf32>
    %c3_378 = arith.constant 3 : index
    %c10_379 = arith.constant 10 : index
    %660 = memref.load %arg3[%c3_378, %c10_379] : memref<4x16xf32, #tpu.memory_space<smem>>
    %661 = vector.broadcast %660 : f32 to vector<2x128xf32>
    %662 = arith.addf %659, %661 : vector<2x128xf32>
    %cst_380 = arith.constant 0.000000e+00 : f32
    %663 = vector.broadcast %cst_380 : f32 to vector<2x128xf32>
    %664 = arith.maximumf %662, %663 : vector<2x128xf32>
    %c0_381 = arith.constant 0 : index
    %c10_382 = arith.constant 10 : index
    %665 = memref.load %arg4[%c0_381, %c10_382] : memref<4x16xf32, #tpu.memory_space<smem>>
    %666 = vector.broadcast %665 : f32 to vector<2x128xf32>
    %667 = arith.mulf %666, %647 : vector<2x128xf32>
    %c1_383 = arith.constant 1 : index
    %c10_384 = arith.constant 10 : index
    %668 = memref.load %arg4[%c1_383, %c10_384] : memref<4x16xf32, #tpu.memory_space<smem>>
    %669 = vector.broadcast %668 : f32 to vector<2x128xf32>
    %670 = arith.mulf %669, %646 : vector<2x128xf32>
    %671 = arith.addf %667, %670 : vector<2x128xf32>
    %c2_385 = arith.constant 2 : index
    %c10_386 = arith.constant 10 : index
    %672 = memref.load %arg4[%c2_385, %c10_386] : memref<4x16xf32, #tpu.memory_space<smem>>
    %673 = vector.broadcast %672 : f32 to vector<2x128xf32>
    %674 = arith.mulf %673, %648 : vector<2x128xf32>
    %675 = arith.addf %671, %674 : vector<2x128xf32>
    %c3_387 = arith.constant 3 : index
    %c10_388 = arith.constant 10 : index
    %676 = memref.load %arg4[%c3_387, %c10_388] : memref<4x16xf32, #tpu.memory_space<smem>>
    %677 = vector.broadcast %676 : f32 to vector<2x128xf32>
    %678 = arith.addf %675, %677 : vector<2x128xf32>
    %cst_389 = arith.constant 0.000000e+00 : f32
    %679 = vector.broadcast %cst_389 : f32 to vector<2x128xf32>
    %680 = arith.maximumf %678, %679 : vector<2x128xf32>
    %681 = arith.truncf %664 : vector<2x128xf32> to vector<2x128xbf16>
    %c10_390 = arith.constant 10 : index
    %c0_391 = arith.constant 0 : index
    %c0_392 = arith.constant 0 : index
    %682 = vector.load %arg5[%c10_390, %c0_391, %c0_392] : memref<16x128x128xbf16, #tpu.memory_space<vmem>>, vector<1x128x128xbf16>
    %683 = vector.shape_cast %682 : vector<1x128x128xbf16> to vector<128x128xbf16>
    %cst_393 = arith.constant dense<0.000000e+00> : vector<2x128xf32>
    %684 = tpu.matmul %681, %683, %cst_393 {dimension_numbers = #tpu.dot_dimension_numbers<[1], [0], [0], [1], [0, 0, 1, 1], [], []>} : vector<2x128xbf16>, vector<128x128xbf16>, vector<2x128xf32> -> vector<2x128xf32>
    %685 = arith.addf %628, %684 : vector<2x128xf32>
    %686 = arith.truncf %680 : vector<2x128xf32> to vector<2x128xbf16>
    %c10_394 = arith.constant 10 : index
    %c0_395 = arith.constant 0 : index
    %c0_396 = arith.constant 0 : index
    %687 = vector.load %arg6[%c10_394, %c0_395, %c0_396] : memref<16x128x128xbf16, #tpu.memory_space<vmem>>, vector<1x128x128xbf16>
    %688 = vector.shape_cast %687 : vector<1x128x128xbf16> to vector<128x128xbf16>
    %cst_397 = arith.constant dense<0.000000e+00> : vector<2x128xf32>
    %689 = tpu.matmul %686, %688, %cst_397 {dimension_numbers = #tpu.dot_dimension_numbers<[1], [0], [0], [1], [0, 0, 1, 1], [], []>} : vector<2x128xbf16>, vector<128x128xbf16>, vector<2x128xf32> -> vector<2x128xf32>
    %690 = arith.addf %685, %689 : vector<2x128xf32>
    %c0_398 = arith.constant 0 : index
    %c11 = arith.constant 11 : index
    %691 = memref.load %arg2[%c0_398, %c11] : memref<4x16xf32, #tpu.memory_space<smem>>
    %692 = vector.broadcast %691 : f32 to vector<2x128xf32>
    %693 = arith.mulf %692, %1 : vector<2x128xf32>
    %c1_399 = arith.constant 1 : index
    %c11_400 = arith.constant 11 : index
    %694 = memref.load %arg2[%c1_399, %c11_400] : memref<4x16xf32, #tpu.memory_space<smem>>
    %695 = vector.broadcast %694 : f32 to vector<2x128xf32>
    %696 = arith.mulf %695, %0 : vector<2x128xf32>
    %697 = arith.addf %693, %696 : vector<2x128xf32>
    %c2_401 = arith.constant 2 : index
    %c11_402 = arith.constant 11 : index
    %698 = memref.load %arg2[%c2_401, %c11_402] : memref<4x16xf32, #tpu.memory_space<smem>>
    %699 = vector.broadcast %698 : f32 to vector<2x128xf32>
    %700 = arith.mulf %699, %2 : vector<2x128xf32>
    %701 = arith.addf %697, %700 : vector<2x128xf32>
    %c3_403 = arith.constant 3 : index
    %c11_404 = arith.constant 11 : index
    %702 = memref.load %arg2[%c3_403, %c11_404] : memref<4x16xf32, #tpu.memory_space<smem>>
    %703 = vector.broadcast %702 : f32 to vector<2x128xf32>
    %704 = arith.addf %701, %703 : vector<2x128xf32>
    %cst_405 = arith.constant 0.000000e+00 : f32
    %705 = vector.broadcast %cst_405 : f32 to vector<2x128xf32>
    %706 = arith.maximumf %704, %705 : vector<2x128xf32>
    %707 = vector.broadcast %7 : vector<1x128xf32> to vector<2x128xf32>
    %708 = arith.mulf %706, %707 : vector<2x128xf32>
    %c1_i32_406 = arith.constant 1 : i32
    %709 = tpu.dynamic_rotate %708 by %c1_i32_406 dim 1 : vector<2x128xf32>, i32 -> vector<2x128xf32>
    %c127_i32_407 = arith.constant 127 : i32
    %710 = tpu.dynamic_rotate %708 by %c127_i32_407 dim 1 : vector<2x128xf32>, i32 -> vector<2x128xf32>
    %c0_408 = arith.constant 0 : index
    %c11_409 = arith.constant 11 : index
    %711 = memref.load %arg3[%c0_408, %c11_409] : memref<4x16xf32, #tpu.memory_space<smem>>
    %712 = vector.broadcast %711 : f32 to vector<2x128xf32>
    %713 = arith.mulf %712, %709 : vector<2x128xf32>
    %c1_410 = arith.constant 1 : index
    %c11_411 = arith.constant 11 : index
    %714 = memref.load %arg3[%c1_410, %c11_411] : memref<4x16xf32, #tpu.memory_space<smem>>
    %715 = vector.broadcast %714 : f32 to vector<2x128xf32>
    %716 = arith.mulf %715, %708 : vector<2x128xf32>
    %717 = arith.addf %713, %716 : vector<2x128xf32>
    %c2_412 = arith.constant 2 : index
    %c11_413 = arith.constant 11 : index
    %718 = memref.load %arg3[%c2_412, %c11_413] : memref<4x16xf32, #tpu.memory_space<smem>>
    %719 = vector.broadcast %718 : f32 to vector<2x128xf32>
    %720 = arith.mulf %719, %710 : vector<2x128xf32>
    %721 = arith.addf %717, %720 : vector<2x128xf32>
    %c3_414 = arith.constant 3 : index
    %c11_415 = arith.constant 11 : index
    %722 = memref.load %arg3[%c3_414, %c11_415] : memref<4x16xf32, #tpu.memory_space<smem>>
    %723 = vector.broadcast %722 : f32 to vector<2x128xf32>
    %724 = arith.addf %721, %723 : vector<2x128xf32>
    %cst_416 = arith.constant 0.000000e+00 : f32
    %725 = vector.broadcast %cst_416 : f32 to vector<2x128xf32>
    %726 = arith.maximumf %724, %725 : vector<2x128xf32>
    %c0_417 = arith.constant 0 : index
    %c11_418 = arith.constant 11 : index
    %727 = memref.load %arg4[%c0_417, %c11_418] : memref<4x16xf32, #tpu.memory_space<smem>>
    %728 = vector.broadcast %727 : f32 to vector<2x128xf32>
    %729 = arith.mulf %728, %709 : vector<2x128xf32>
    %c1_419 = arith.constant 1 : index
    %c11_420 = arith.constant 11 : index
    %730 = memref.load %arg4[%c1_419, %c11_420] : memref<4x16xf32, #tpu.memory_space<smem>>
    %731 = vector.broadcast %730 : f32 to vector<2x128xf32>
    %732 = arith.mulf %731, %708 : vector<2x128xf32>
    %733 = arith.addf %729, %732 : vector<2x128xf32>
    %c2_421 = arith.constant 2 : index
    %c11_422 = arith.constant 11 : index
    %734 = memref.load %arg4[%c2_421, %c11_422] : memref<4x16xf32, #tpu.memory_space<smem>>
    %735 = vector.broadcast %734 : f32 to vector<2x128xf32>
    %736 = arith.mulf %735, %710 : vector<2x128xf32>
    %737 = arith.addf %733, %736 : vector<2x128xf32>
    %c3_423 = arith.constant 3 : index
    %c11_424 = arith.constant 11 : index
    %738 = memref.load %arg4[%c3_423, %c11_424] : memref<4x16xf32, #tpu.memory_space<smem>>
    %739 = vector.broadcast %738 : f32 to vector<2x128xf32>
    %740 = arith.addf %737, %739 : vector<2x128xf32>
    %cst_425 = arith.constant 0.000000e+00 : f32
    %741 = vector.broadcast %cst_425 : f32 to vector<2x128xf32>
    %742 = arith.maximumf %740, %741 : vector<2x128xf32>
    %743 = arith.truncf %726 : vector<2x128xf32> to vector<2x128xbf16>
    %c11_426 = arith.constant 11 : index
    %c0_427 = arith.constant 0 : index
    %c0_428 = arith.constant 0 : index
    %744 = vector.load %arg5[%c11_426, %c0_427, %c0_428] : memref<16x128x128xbf16, #tpu.memory_space<vmem>>, vector<1x128x128xbf16>
    %745 = vector.shape_cast %744 : vector<1x128x128xbf16> to vector<128x128xbf16>
    %cst_429 = arith.constant dense<0.000000e+00> : vector<2x128xf32>
    %746 = tpu.matmul %743, %745, %cst_429 {dimension_numbers = #tpu.dot_dimension_numbers<[1], [0], [0], [1], [0, 0, 1, 1], [], []>} : vector<2x128xbf16>, vector<128x128xbf16>, vector<2x128xf32> -> vector<2x128xf32>
    %747 = arith.addf %690, %746 : vector<2x128xf32>
    %748 = arith.truncf %742 : vector<2x128xf32> to vector<2x128xbf16>
    %c11_430 = arith.constant 11 : index
    %c0_431 = arith.constant 0 : index
    %c0_432 = arith.constant 0 : index
    %749 = vector.load %arg6[%c11_430, %c0_431, %c0_432] : memref<16x128x128xbf16, #tpu.memory_space<vmem>>, vector<1x128x128xbf16>
    %750 = vector.shape_cast %749 : vector<1x128x128xbf16> to vector<128x128xbf16>
    %cst_433 = arith.constant dense<0.000000e+00> : vector<2x128xf32>
    %751 = tpu.matmul %748, %750, %cst_433 {dimension_numbers = #tpu.dot_dimension_numbers<[1], [0], [0], [1], [0, 0, 1, 1], [], []>} : vector<2x128xbf16>, vector<128x128xbf16>, vector<2x128xf32> -> vector<2x128xf32>
    %752 = arith.addf %747, %751 : vector<2x128xf32>
    %c0_434 = arith.constant 0 : index
    %c12 = arith.constant 12 : index
    %753 = memref.load %arg2[%c0_434, %c12] : memref<4x16xf32, #tpu.memory_space<smem>>
    %754 = vector.broadcast %753 : f32 to vector<2x128xf32>
    %755 = arith.mulf %754, %1 : vector<2x128xf32>
    %c1_435 = arith.constant 1 : index
    %c12_436 = arith.constant 12 : index
    %756 = memref.load %arg2[%c1_435, %c12_436] : memref<4x16xf32, #tpu.memory_space<smem>>
    %757 = vector.broadcast %756 : f32 to vector<2x128xf32>
    %758 = arith.mulf %757, %0 : vector<2x128xf32>
    %759 = arith.addf %755, %758 : vector<2x128xf32>
    %c2_437 = arith.constant 2 : index
    %c12_438 = arith.constant 12 : index
    %760 = memref.load %arg2[%c2_437, %c12_438] : memref<4x16xf32, #tpu.memory_space<smem>>
    %761 = vector.broadcast %760 : f32 to vector<2x128xf32>
    %762 = arith.mulf %761, %2 : vector<2x128xf32>
    %763 = arith.addf %759, %762 : vector<2x128xf32>
    %c3_439 = arith.constant 3 : index
    %c12_440 = arith.constant 12 : index
    %764 = memref.load %arg2[%c3_439, %c12_440] : memref<4x16xf32, #tpu.memory_space<smem>>
    %765 = vector.broadcast %764 : f32 to vector<2x128xf32>
    %766 = arith.addf %763, %765 : vector<2x128xf32>
    %cst_441 = arith.constant 0.000000e+00 : f32
    %767 = vector.broadcast %cst_441 : f32 to vector<2x128xf32>
    %768 = arith.maximumf %766, %767 : vector<2x128xf32>
    %769 = vector.broadcast %7 : vector<1x128xf32> to vector<2x128xf32>
    %770 = arith.mulf %768, %769 : vector<2x128xf32>
    %c1_i32_442 = arith.constant 1 : i32
    %771 = tpu.dynamic_rotate %770 by %c1_i32_442 dim 1 : vector<2x128xf32>, i32 -> vector<2x128xf32>
    %c127_i32_443 = arith.constant 127 : i32
    %772 = tpu.dynamic_rotate %770 by %c127_i32_443 dim 1 : vector<2x128xf32>, i32 -> vector<2x128xf32>
    %c0_444 = arith.constant 0 : index
    %c12_445 = arith.constant 12 : index
    %773 = memref.load %arg3[%c0_444, %c12_445] : memref<4x16xf32, #tpu.memory_space<smem>>
    %774 = vector.broadcast %773 : f32 to vector<2x128xf32>
    %775 = arith.mulf %774, %771 : vector<2x128xf32>
    %c1_446 = arith.constant 1 : index
    %c12_447 = arith.constant 12 : index
    %776 = memref.load %arg3[%c1_446, %c12_447] : memref<4x16xf32, #tpu.memory_space<smem>>
    %777 = vector.broadcast %776 : f32 to vector<2x128xf32>
    %778 = arith.mulf %777, %770 : vector<2x128xf32>
    %779 = arith.addf %775, %778 : vector<2x128xf32>
    %c2_448 = arith.constant 2 : index
    %c12_449 = arith.constant 12 : index
    %780 = memref.load %arg3[%c2_448, %c12_449] : memref<4x16xf32, #tpu.memory_space<smem>>
    %781 = vector.broadcast %780 : f32 to vector<2x128xf32>
    %782 = arith.mulf %781, %772 : vector<2x128xf32>
    %783 = arith.addf %779, %782 : vector<2x128xf32>
    %c3_450 = arith.constant 3 : index
    %c12_451 = arith.constant 12 : index
    %784 = memref.load %arg3[%c3_450, %c12_451] : memref<4x16xf32, #tpu.memory_space<smem>>
    %785 = vector.broadcast %784 : f32 to vector<2x128xf32>
    %786 = arith.addf %783, %785 : vector<2x128xf32>
    %cst_452 = arith.constant 0.000000e+00 : f32
    %787 = vector.broadcast %cst_452 : f32 to vector<2x128xf32>
    %788 = arith.maximumf %786, %787 : vector<2x128xf32>
    %c0_453 = arith.constant 0 : index
    %c12_454 = arith.constant 12 : index
    %789 = memref.load %arg4[%c0_453, %c12_454] : memref<4x16xf32, #tpu.memory_space<smem>>
    %790 = vector.broadcast %789 : f32 to vector<2x128xf32>
    %791 = arith.mulf %790, %771 : vector<2x128xf32>
    %c1_455 = arith.constant 1 : index
    %c12_456 = arith.constant 12 : index
    %792 = memref.load %arg4[%c1_455, %c12_456] : memref<4x16xf32, #tpu.memory_space<smem>>
    %793 = vector.broadcast %792 : f32 to vector<2x128xf32>
    %794 = arith.mulf %793, %770 : vector<2x128xf32>
    %795 = arith.addf %791, %794 : vector<2x128xf32>
    %c2_457 = arith.constant 2 : index
    %c12_458 = arith.constant 12 : index
    %796 = memref.load %arg4[%c2_457, %c12_458] : memref<4x16xf32, #tpu.memory_space<smem>>
    %797 = vector.broadcast %796 : f32 to vector<2x128xf32>
    %798 = arith.mulf %797, %772 : vector<2x128xf32>
    %799 = arith.addf %795, %798 : vector<2x128xf32>
    %c3_459 = arith.constant 3 : index
    %c12_460 = arith.constant 12 : index
    %800 = memref.load %arg4[%c3_459, %c12_460] : memref<4x16xf32, #tpu.memory_space<smem>>
    %801 = vector.broadcast %800 : f32 to vector<2x128xf32>
    %802 = arith.addf %799, %801 : vector<2x128xf32>
    %cst_461 = arith.constant 0.000000e+00 : f32
    %803 = vector.broadcast %cst_461 : f32 to vector<2x128xf32>
    %804 = arith.maximumf %802, %803 : vector<2x128xf32>
    %805 = arith.truncf %788 : vector<2x128xf32> to vector<2x128xbf16>
    %c12_462 = arith.constant 12 : index
    %c0_463 = arith.constant 0 : index
    %c0_464 = arith.constant 0 : index
    %806 = vector.load %arg5[%c12_462, %c0_463, %c0_464] : memref<16x128x128xbf16, #tpu.memory_space<vmem>>, vector<1x128x128xbf16>
    %807 = vector.shape_cast %806 : vector<1x128x128xbf16> to vector<128x128xbf16>
    %cst_465 = arith.constant dense<0.000000e+00> : vector<2x128xf32>
    %808 = tpu.matmul %805, %807, %cst_465 {dimension_numbers = #tpu.dot_dimension_numbers<[1], [0], [0], [1], [0, 0, 1, 1], [], []>} : vector<2x128xbf16>, vector<128x128xbf16>, vector<2x128xf32> -> vector<2x128xf32>
    %809 = arith.addf %752, %808 : vector<2x128xf32>
    %810 = arith.truncf %804 : vector<2x128xf32> to vector<2x128xbf16>
    %c12_466 = arith.constant 12 : index
    %c0_467 = arith.constant 0 : index
    %c0_468 = arith.constant 0 : index
    %811 = vector.load %arg6[%c12_466, %c0_467, %c0_468] : memref<16x128x128xbf16, #tpu.memory_space<vmem>>, vector<1x128x128xbf16>
    %812 = vector.shape_cast %811 : vector<1x128x128xbf16> to vector<128x128xbf16>
    %cst_469 = arith.constant dense<0.000000e+00> : vector<2x128xf32>
    %813 = tpu.matmul %810, %812, %cst_469 {dimension_numbers = #tpu.dot_dimension_numbers<[1], [0], [0], [1], [0, 0, 1, 1], [], []>} : vector<2x128xbf16>, vector<128x128xbf16>, vector<2x128xf32> -> vector<2x128xf32>
    %814 = arith.addf %809, %813 : vector<2x128xf32>
    %c0_470 = arith.constant 0 : index
    %c13 = arith.constant 13 : index
    %815 = memref.load %arg2[%c0_470, %c13] : memref<4x16xf32, #tpu.memory_space<smem>>
    %816 = vector.broadcast %815 : f32 to vector<2x128xf32>
    %817 = arith.mulf %816, %1 : vector<2x128xf32>
    %c1_471 = arith.constant 1 : index
    %c13_472 = arith.constant 13 : index
    %818 = memref.load %arg2[%c1_471, %c13_472] : memref<4x16xf32, #tpu.memory_space<smem>>
    %819 = vector.broadcast %818 : f32 to vector<2x128xf32>
    %820 = arith.mulf %819, %0 : vector<2x128xf32>
    %821 = arith.addf %817, %820 : vector<2x128xf32>
    %c2_473 = arith.constant 2 : index
    %c13_474 = arith.constant 13 : index
    %822 = memref.load %arg2[%c2_473, %c13_474] : memref<4x16xf32, #tpu.memory_space<smem>>
    %823 = vector.broadcast %822 : f32 to vector<2x128xf32>
    %824 = arith.mulf %823, %2 : vector<2x128xf32>
    %825 = arith.addf %821, %824 : vector<2x128xf32>
    %c3_475 = arith.constant 3 : index
    %c13_476 = arith.constant 13 : index
    %826 = memref.load %arg2[%c3_475, %c13_476] : memref<4x16xf32, #tpu.memory_space<smem>>
    %827 = vector.broadcast %826 : f32 to vector<2x128xf32>
    %828 = arith.addf %825, %827 : vector<2x128xf32>
    %cst_477 = arith.constant 0.000000e+00 : f32
    %829 = vector.broadcast %cst_477 : f32 to vector<2x128xf32>
    %830 = arith.maximumf %828, %829 : vector<2x128xf32>
    %831 = vector.broadcast %7 : vector<1x128xf32> to vector<2x128xf32>
    %832 = arith.mulf %830, %831 : vector<2x128xf32>
    %c1_i32_478 = arith.constant 1 : i32
    %833 = tpu.dynamic_rotate %832 by %c1_i32_478 dim 1 : vector<2x128xf32>, i32 -> vector<2x128xf32>
    %c127_i32_479 = arith.constant 127 : i32
    %834 = tpu.dynamic_rotate %832 by %c127_i32_479 dim 1 : vector<2x128xf32>, i32 -> vector<2x128xf32>
    %c0_480 = arith.constant 0 : index
    %c13_481 = arith.constant 13 : index
    %835 = memref.load %arg3[%c0_480, %c13_481] : memref<4x16xf32, #tpu.memory_space<smem>>
    %836 = vector.broadcast %835 : f32 to vector<2x128xf32>
    %837 = arith.mulf %836, %833 : vector<2x128xf32>
    %c1_482 = arith.constant 1 : index
    %c13_483 = arith.constant 13 : index
    %838 = memref.load %arg3[%c1_482, %c13_483] : memref<4x16xf32, #tpu.memory_space<smem>>
    %839 = vector.broadcast %838 : f32 to vector<2x128xf32>
    %840 = arith.mulf %839, %832 : vector<2x128xf32>
    %841 = arith.addf %837, %840 : vector<2x128xf32>
    %c2_484 = arith.constant 2 : index
    %c13_485 = arith.constant 13 : index
    %842 = memref.load %arg3[%c2_484, %c13_485] : memref<4x16xf32, #tpu.memory_space<smem>>
    %843 = vector.broadcast %842 : f32 to vector<2x128xf32>
    %844 = arith.mulf %843, %834 : vector<2x128xf32>
    %845 = arith.addf %841, %844 : vector<2x128xf32>
    %c3_486 = arith.constant 3 : index
    %c13_487 = arith.constant 13 : index
    %846 = memref.load %arg3[%c3_486, %c13_487] : memref<4x16xf32, #tpu.memory_space<smem>>
    %847 = vector.broadcast %846 : f32 to vector<2x128xf32>
    %848 = arith.addf %845, %847 : vector<2x128xf32>
    %cst_488 = arith.constant 0.000000e+00 : f32
    %849 = vector.broadcast %cst_488 : f32 to vector<2x128xf32>
    %850 = arith.maximumf %848, %849 : vector<2x128xf32>
    %c0_489 = arith.constant 0 : index
    %c13_490 = arith.constant 13 : index
    %851 = memref.load %arg4[%c0_489, %c13_490] : memref<4x16xf32, #tpu.memory_space<smem>>
    %852 = vector.broadcast %851 : f32 to vector<2x128xf32>
    %853 = arith.mulf %852, %833 : vector<2x128xf32>
    %c1_491 = arith.constant 1 : index
    %c13_492 = arith.constant 13 : index
    %854 = memref.load %arg4[%c1_491, %c13_492] : memref<4x16xf32, #tpu.memory_space<smem>>
    %855 = vector.broadcast %854 : f32 to vector<2x128xf32>
    %856 = arith.mulf %855, %832 : vector<2x128xf32>
    %857 = arith.addf %853, %856 : vector<2x128xf32>
    %c2_493 = arith.constant 2 : index
    %c13_494 = arith.constant 13 : index
    %858 = memref.load %arg4[%c2_493, %c13_494] : memref<4x16xf32, #tpu.memory_space<smem>>
    %859 = vector.broadcast %858 : f32 to vector<2x128xf32>
    %860 = arith.mulf %859, %834 : vector<2x128xf32>
    %861 = arith.addf %857, %860 : vector<2x128xf32>
    %c3_495 = arith.constant 3 : index
    %c13_496 = arith.constant 13 : index
    %862 = memref.load %arg4[%c3_495, %c13_496] : memref<4x16xf32, #tpu.memory_space<smem>>
    %863 = vector.broadcast %862 : f32 to vector<2x128xf32>
    %864 = arith.addf %861, %863 : vector<2x128xf32>
    %cst_497 = arith.constant 0.000000e+00 : f32
    %865 = vector.broadcast %cst_497 : f32 to vector<2x128xf32>
    %866 = arith.maximumf %864, %865 : vector<2x128xf32>
    %867 = arith.truncf %850 : vector<2x128xf32> to vector<2x128xbf16>
    %c13_498 = arith.constant 13 : index
    %c0_499 = arith.constant 0 : index
    %c0_500 = arith.constant 0 : index
    %868 = vector.load %arg5[%c13_498, %c0_499, %c0_500] : memref<16x128x128xbf16, #tpu.memory_space<vmem>>, vector<1x128x128xbf16>
    %869 = vector.shape_cast %868 : vector<1x128x128xbf16> to vector<128x128xbf16>
    %cst_501 = arith.constant dense<0.000000e+00> : vector<2x128xf32>
    %870 = tpu.matmul %867, %869, %cst_501 {dimension_numbers = #tpu.dot_dimension_numbers<[1], [0], [0], [1], [0, 0, 1, 1], [], []>} : vector<2x128xbf16>, vector<128x128xbf16>, vector<2x128xf32> -> vector<2x128xf32>
    %871 = arith.addf %814, %870 : vector<2x128xf32>
    %872 = arith.truncf %866 : vector<2x128xf32> to vector<2x128xbf16>
    %c13_502 = arith.constant 13 : index
    %c0_503 = arith.constant 0 : index
    %c0_504 = arith.constant 0 : index
    %873 = vector.load %arg6[%c13_502, %c0_503, %c0_504] : memref<16x128x128xbf16, #tpu.memory_space<vmem>>, vector<1x128x128xbf16>
    %874 = vector.shape_cast %873 : vector<1x128x128xbf16> to vector<128x128xbf16>
    %cst_505 = arith.constant dense<0.000000e+00> : vector<2x128xf32>
    %875 = tpu.matmul %872, %874, %cst_505 {dimension_numbers = #tpu.dot_dimension_numbers<[1], [0], [0], [1], [0, 0, 1, 1], [], []>} : vector<2x128xbf16>, vector<128x128xbf16>, vector<2x128xf32> -> vector<2x128xf32>
    %876 = arith.addf %871, %875 : vector<2x128xf32>
    %c0_506 = arith.constant 0 : index
    %c14 = arith.constant 14 : index
    %877 = memref.load %arg2[%c0_506, %c14] : memref<4x16xf32, #tpu.memory_space<smem>>
    %878 = vector.broadcast %877 : f32 to vector<2x128xf32>
    %879 = arith.mulf %878, %1 : vector<2x128xf32>
    %c1_507 = arith.constant 1 : index
    %c14_508 = arith.constant 14 : index
    %880 = memref.load %arg2[%c1_507, %c14_508] : memref<4x16xf32, #tpu.memory_space<smem>>
    %881 = vector.broadcast %880 : f32 to vector<2x128xf32>
    %882 = arith.mulf %881, %0 : vector<2x128xf32>
    %883 = arith.addf %879, %882 : vector<2x128xf32>
    %c2_509 = arith.constant 2 : index
    %c14_510 = arith.constant 14 : index
    %884 = memref.load %arg2[%c2_509, %c14_510] : memref<4x16xf32, #tpu.memory_space<smem>>
    %885 = vector.broadcast %884 : f32 to vector<2x128xf32>
    %886 = arith.mulf %885, %2 : vector<2x128xf32>
    %887 = arith.addf %883, %886 : vector<2x128xf32>
    %c3_511 = arith.constant 3 : index
    %c14_512 = arith.constant 14 : index
    %888 = memref.load %arg2[%c3_511, %c14_512] : memref<4x16xf32, #tpu.memory_space<smem>>
    %889 = vector.broadcast %888 : f32 to vector<2x128xf32>
    %890 = arith.addf %887, %889 : vector<2x128xf32>
    %cst_513 = arith.constant 0.000000e+00 : f32
    %891 = vector.broadcast %cst_513 : f32 to vector<2x128xf32>
    %892 = arith.maximumf %890, %891 : vector<2x128xf32>
    %893 = vector.broadcast %7 : vector<1x128xf32> to vector<2x128xf32>
    %894 = arith.mulf %892, %893 : vector<2x128xf32>
    %c1_i32_514 = arith.constant 1 : i32
    %895 = tpu.dynamic_rotate %894 by %c1_i32_514 dim 1 : vector<2x128xf32>, i32 -> vector<2x128xf32>
    %c127_i32_515 = arith.constant 127 : i32
    %896 = tpu.dynamic_rotate %894 by %c127_i32_515 dim 1 : vector<2x128xf32>, i32 -> vector<2x128xf32>
    %c0_516 = arith.constant 0 : index
    %c14_517 = arith.constant 14 : index
    %897 = memref.load %arg3[%c0_516, %c14_517] : memref<4x16xf32, #tpu.memory_space<smem>>
    %898 = vector.broadcast %897 : f32 to vector<2x128xf32>
    %899 = arith.mulf %898, %895 : vector<2x128xf32>
    %c1_518 = arith.constant 1 : index
    %c14_519 = arith.constant 14 : index
    %900 = memref.load %arg3[%c1_518, %c14_519] : memref<4x16xf32, #tpu.memory_space<smem>>
    %901 = vector.broadcast %900 : f32 to vector<2x128xf32>
    %902 = arith.mulf %901, %894 : vector<2x128xf32>
    %903 = arith.addf %899, %902 : vector<2x128xf32>
    %c2_520 = arith.constant 2 : index
    %c14_521 = arith.constant 14 : index
    %904 = memref.load %arg3[%c2_520, %c14_521] : memref<4x16xf32, #tpu.memory_space<smem>>
    %905 = vector.broadcast %904 : f32 to vector<2x128xf32>
    %906 = arith.mulf %905, %896 : vector<2x128xf32>
    %907 = arith.addf %903, %906 : vector<2x128xf32>
    %c3_522 = arith.constant 3 : index
    %c14_523 = arith.constant 14 : index
    %908 = memref.load %arg3[%c3_522, %c14_523] : memref<4x16xf32, #tpu.memory_space<smem>>
    %909 = vector.broadcast %908 : f32 to vector<2x128xf32>
    %910 = arith.addf %907, %909 : vector<2x128xf32>
    %cst_524 = arith.constant 0.000000e+00 : f32
    %911 = vector.broadcast %cst_524 : f32 to vector<2x128xf32>
    %912 = arith.maximumf %910, %911 : vector<2x128xf32>
    %c0_525 = arith.constant 0 : index
    %c14_526 = arith.constant 14 : index
    %913 = memref.load %arg4[%c0_525, %c14_526] : memref<4x16xf32, #tpu.memory_space<smem>>
    %914 = vector.broadcast %913 : f32 to vector<2x128xf32>
    %915 = arith.mulf %914, %895 : vector<2x128xf32>
    %c1_527 = arith.constant 1 : index
    %c14_528 = arith.constant 14 : index
    %916 = memref.load %arg4[%c1_527, %c14_528] : memref<4x16xf32, #tpu.memory_space<smem>>
    %917 = vector.broadcast %916 : f32 to vector<2x128xf32>
    %918 = arith.mulf %917, %894 : vector<2x128xf32>
    %919 = arith.addf %915, %918 : vector<2x128xf32>
    %c2_529 = arith.constant 2 : index
    %c14_530 = arith.constant 14 : index
    %920 = memref.load %arg4[%c2_529, %c14_530] : memref<4x16xf32, #tpu.memory_space<smem>>
    %921 = vector.broadcast %920 : f32 to vector<2x128xf32>
    %922 = arith.mulf %921, %896 : vector<2x128xf32>
    %923 = arith.addf %919, %922 : vector<2x128xf32>
    %c3_531 = arith.constant 3 : index
    %c14_532 = arith.constant 14 : index
    %924 = memref.load %arg4[%c3_531, %c14_532] : memref<4x16xf32, #tpu.memory_space<smem>>
    %925 = vector.broadcast %924 : f32 to vector<2x128xf32>
    %926 = arith.addf %923, %925 : vector<2x128xf32>
    %cst_533 = arith.constant 0.000000e+00 : f32
    %927 = vector.broadcast %cst_533 : f32 to vector<2x128xf32>
    %928 = arith.maximumf %926, %927 : vector<2x128xf32>
    %929 = arith.truncf %912 : vector<2x128xf32> to vector<2x128xbf16>
    %c14_534 = arith.constant 14 : index
    %c0_535 = arith.constant 0 : index
    %c0_536 = arith.constant 0 : index
    %930 = vector.load %arg5[%c14_534, %c0_535, %c0_536] : memref<16x128x128xbf16, #tpu.memory_space<vmem>>, vector<1x128x128xbf16>
    %931 = vector.shape_cast %930 : vector<1x128x128xbf16> to vector<128x128xbf16>
    %cst_537 = arith.constant dense<0.000000e+00> : vector<2x128xf32>
    %932 = tpu.matmul %929, %931, %cst_537 {dimension_numbers = #tpu.dot_dimension_numbers<[1], [0], [0], [1], [0, 0, 1, 1], [], []>} : vector<2x128xbf16>, vector<128x128xbf16>, vector<2x128xf32> -> vector<2x128xf32>
    %933 = arith.addf %876, %932 : vector<2x128xf32>
    %934 = arith.truncf %928 : vector<2x128xf32> to vector<2x128xbf16>
    %c14_538 = arith.constant 14 : index
    %c0_539 = arith.constant 0 : index
    %c0_540 = arith.constant 0 : index
    %935 = vector.load %arg6[%c14_538, %c0_539, %c0_540] : memref<16x128x128xbf16, #tpu.memory_space<vmem>>, vector<1x128x128xbf16>
    %936 = vector.shape_cast %935 : vector<1x128x128xbf16> to vector<128x128xbf16>
    %cst_541 = arith.constant dense<0.000000e+00> : vector<2x128xf32>
    %937 = tpu.matmul %934, %936, %cst_541 {dimension_numbers = #tpu.dot_dimension_numbers<[1], [0], [0], [1], [0, 0, 1, 1], [], []>} : vector<2x128xbf16>, vector<128x128xbf16>, vector<2x128xf32> -> vector<2x128xf32>
    %938 = arith.addf %933, %937 : vector<2x128xf32>
    %c0_542 = arith.constant 0 : index
    %c15 = arith.constant 15 : index
    %939 = memref.load %arg2[%c0_542, %c15] : memref<4x16xf32, #tpu.memory_space<smem>>
    %940 = vector.broadcast %939 : f32 to vector<2x128xf32>
    %941 = arith.mulf %940, %1 : vector<2x128xf32>
    %c1_543 = arith.constant 1 : index
    %c15_544 = arith.constant 15 : index
    %942 = memref.load %arg2[%c1_543, %c15_544] : memref<4x16xf32, #tpu.memory_space<smem>>
    %943 = vector.broadcast %942 : f32 to vector<2x128xf32>
    %944 = arith.mulf %943, %0 : vector<2x128xf32>
    %945 = arith.addf %941, %944 : vector<2x128xf32>
    %c2_545 = arith.constant 2 : index
    %c15_546 = arith.constant 15 : index
    %946 = memref.load %arg2[%c2_545, %c15_546] : memref<4x16xf32, #tpu.memory_space<smem>>
    %947 = vector.broadcast %946 : f32 to vector<2x128xf32>
    %948 = arith.mulf %947, %2 : vector<2x128xf32>
    %949 = arith.addf %945, %948 : vector<2x128xf32>
    %c3_547 = arith.constant 3 : index
    %c15_548 = arith.constant 15 : index
    %950 = memref.load %arg2[%c3_547, %c15_548] : memref<4x16xf32, #tpu.memory_space<smem>>
    %951 = vector.broadcast %950 : f32 to vector<2x128xf32>
    %952 = arith.addf %949, %951 : vector<2x128xf32>
    %cst_549 = arith.constant 0.000000e+00 : f32
    %953 = vector.broadcast %cst_549 : f32 to vector<2x128xf32>
    %954 = arith.maximumf %952, %953 : vector<2x128xf32>
    %955 = vector.broadcast %7 : vector<1x128xf32> to vector<2x128xf32>
    %956 = arith.mulf %954, %955 : vector<2x128xf32>
    %c1_i32_550 = arith.constant 1 : i32
    %957 = tpu.dynamic_rotate %956 by %c1_i32_550 dim 1 : vector<2x128xf32>, i32 -> vector<2x128xf32>
    %c127_i32_551 = arith.constant 127 : i32
    %958 = tpu.dynamic_rotate %956 by %c127_i32_551 dim 1 : vector<2x128xf32>, i32 -> vector<2x128xf32>
    %c0_552 = arith.constant 0 : index
    %c15_553 = arith.constant 15 : index
    %959 = memref.load %arg3[%c0_552, %c15_553] : memref<4x16xf32, #tpu.memory_space<smem>>
    %960 = vector.broadcast %959 : f32 to vector<2x128xf32>
    %961 = arith.mulf %960, %957 : vector<2x128xf32>
    %c1_554 = arith.constant 1 : index
    %c15_555 = arith.constant 15 : index
    %962 = memref.load %arg3[%c1_554, %c15_555] : memref<4x16xf32, #tpu.memory_space<smem>>
    %963 = vector.broadcast %962 : f32 to vector<2x128xf32>
    %964 = arith.mulf %963, %956 : vector<2x128xf32>
    %965 = arith.addf %961, %964 : vector<2x128xf32>
    %c2_556 = arith.constant 2 : index
    %c15_557 = arith.constant 15 : index
    %966 = memref.load %arg3[%c2_556, %c15_557] : memref<4x16xf32, #tpu.memory_space<smem>>
    %967 = vector.broadcast %966 : f32 to vector<2x128xf32>
    %968 = arith.mulf %967, %958 : vector<2x128xf32>
    %969 = arith.addf %965, %968 : vector<2x128xf32>
    %c3_558 = arith.constant 3 : index
    %c15_559 = arith.constant 15 : index
    %970 = memref.load %arg3[%c3_558, %c15_559] : memref<4x16xf32, #tpu.memory_space<smem>>
    %971 = vector.broadcast %970 : f32 to vector<2x128xf32>
    %972 = arith.addf %969, %971 : vector<2x128xf32>
    %cst_560 = arith.constant 0.000000e+00 : f32
    %973 = vector.broadcast %cst_560 : f32 to vector<2x128xf32>
    %974 = arith.maximumf %972, %973 : vector<2x128xf32>
    %c0_561 = arith.constant 0 : index
    %c15_562 = arith.constant 15 : index
    %975 = memref.load %arg4[%c0_561, %c15_562] : memref<4x16xf32, #tpu.memory_space<smem>>
    %976 = vector.broadcast %975 : f32 to vector<2x128xf32>
    %977 = arith.mulf %976, %957 : vector<2x128xf32>
    %c1_563 = arith.constant 1 : index
    %c15_564 = arith.constant 15 : index
    %978 = memref.load %arg4[%c1_563, %c15_564] : memref<4x16xf32, #tpu.memory_space<smem>>
    %979 = vector.broadcast %978 : f32 to vector<2x128xf32>
    %980 = arith.mulf %979, %956 : vector<2x128xf32>
    %981 = arith.addf %977, %980 : vector<2x128xf32>
    %c2_565 = arith.constant 2 : index
    %c15_566 = arith.constant 15 : index
    %982 = memref.load %arg4[%c2_565, %c15_566] : memref<4x16xf32, #tpu.memory_space<smem>>
    %983 = vector.broadcast %982 : f32 to vector<2x128xf32>
    %984 = arith.mulf %983, %958 : vector<2x128xf32>
    %985 = arith.addf %981, %984 : vector<2x128xf32>
    %c3_567 = arith.constant 3 : index
    %c15_568 = arith.constant 15 : index
    %986 = memref.load %arg4[%c3_567, %c15_568] : memref<4x16xf32, #tpu.memory_space<smem>>
    %987 = vector.broadcast %986 : f32 to vector<2x128xf32>
    %988 = arith.addf %985, %987 : vector<2x128xf32>
    %cst_569 = arith.constant 0.000000e+00 : f32
    %989 = vector.broadcast %cst_569 : f32 to vector<2x128xf32>
    %990 = arith.maximumf %988, %989 : vector<2x128xf32>
    %991 = arith.truncf %974 : vector<2x128xf32> to vector<2x128xbf16>
    %c15_570 = arith.constant 15 : index
    %c0_571 = arith.constant 0 : index
    %c0_572 = arith.constant 0 : index
    %992 = vector.load %arg5[%c15_570, %c0_571, %c0_572] : memref<16x128x128xbf16, #tpu.memory_space<vmem>>, vector<1x128x128xbf16>
    %993 = vector.shape_cast %992 : vector<1x128x128xbf16> to vector<128x128xbf16>
    %cst_573 = arith.constant dense<0.000000e+00> : vector<2x128xf32>
    %994 = tpu.matmul %991, %993, %cst_573 {dimension_numbers = #tpu.dot_dimension_numbers<[1], [0], [0], [1], [0, 0, 1, 1], [], []>} : vector<2x128xbf16>, vector<128x128xbf16>, vector<2x128xf32> -> vector<2x128xf32>
    %995 = arith.addf %938, %994 : vector<2x128xf32>
    %996 = arith.truncf %990 : vector<2x128xf32> to vector<2x128xbf16>
    %c15_574 = arith.constant 15 : index
    %c0_575 = arith.constant 0 : index
    %c0_576 = arith.constant 0 : index
    %997 = vector.load %arg6[%c15_574, %c0_575, %c0_576] : memref<16x128x128xbf16, #tpu.memory_space<vmem>>, vector<1x128x128xbf16>
    %998 = vector.shape_cast %997 : vector<1x128x128xbf16> to vector<128x128xbf16>
    %cst_577 = arith.constant dense<0.000000e+00> : vector<2x128xf32>
    %999 = tpu.matmul %996, %998, %cst_577 {dimension_numbers = #tpu.dot_dimension_numbers<[1], [0], [0], [1], [0, 0, 1, 1], [], []>} : vector<2x128xbf16>, vector<128x128xbf16>, vector<2x128xf32> -> vector<2x128xf32>
    %1000 = arith.addf %995, %999 : vector<2x128xf32>
    %c0_578 = arith.constant 0 : index
    %c0_579 = arith.constant 0 : index
    %1001 = vector.load %arg7[%c0_578, %c0_579] : memref<1x128xf32, #tpu.memory_space<vmem>>, vector<1x128xf32>
    %1002 = vector.broadcast %1001 : vector<1x128xf32> to vector<2x128xf32>
    %1003 = arith.addf %1000, %1002 : vector<2x128xf32>
    %c0_580 = arith.constant 0 : index
    %c0_581 = arith.constant 0 : index
    %1004 = vector.load %arg8[%c0_580, %c0_581] : memref<2x128xf32, #tpu.memory_space<vmem>>, vector<2x128xf32>
    tpu.vector_store %arg8[%c0_580, %c0_581], %1003 {strides = array<i32>} : memref<2x128xf32, #tpu.memory_space<vmem>>, vector<2x128xf32>,
    return
  }
  func.func @transform_0(%arg0: i32) -> (i32, i32) {
    %c0_i32 = arith.constant 0 : i32
    %c0_i32_0 = arith.constant 0 : i32
    return %arg0, %c0_i32 : i32, i32
  }
  func.func @transform_1(%arg0: i32) -> (i32, i32) {
    %c0_i32 = arith.constant 0 : i32
    %c0_i32_0 = arith.constant 0 : i32
    %c0_i32_1 = arith.constant 0 : i32
    return %c0_i32, %c0_i32_0 : i32, i32
  }
  func.func @transform_2(%arg0: i32) -> (i32, i32) {
    %c0_i32 = arith.constant 0 : i32
    %c0_i32_0 = arith.constant 0 : i32
    %c0_i32_1 = arith.constant 0 : i32
    return %c0_i32, %c0_i32_0 : i32, i32
  }
  func.func @transform_3(%arg0: i32) -> (i32, i32) {
    %c0_i32 = arith.constant 0 : i32
    %c0_i32_0 = arith.constant 0 : i32
    %c0_i32_1 = arith.constant 0 : i32
    return %c0_i32, %c0_i32_0 : i32, i32
  }
  func.func @transform_4(%arg0: i32) -> (i32, i32, i32) {
    %c0_i32 = arith.constant 0 : i32
    %c0_i32_0 = arith.constant 0 : i32
    %c0_i32_1 = arith.constant 0 : i32
    %c0_i32_2 = arith.constant 0 : i32
    return %c0_i32, %c0_i32_0, %c0_i32_1 : i32, i32, i32
  }
  func.func @transform_5(%arg0: i32) -> (i32, i32, i32) {
    %c0_i32 = arith.constant 0 : i32
    %c0_i32_0 = arith.constant 0 : i32
    %c0_i32_1 = arith.constant 0 : i32
    %c0_i32_2 = arith.constant 0 : i32
    return %c0_i32, %c0_i32_0, %c0_i32_1 : i32, i32, i32
  }
  func.func @transform_6(%arg0: i32) -> (i32, i32) {
    %c0_i32 = arith.constant 0 : i32
    %c0_i32_0 = arith.constant 0 : i32
    %c0_i32_1 = arith.constant 0 : i32
    return %c0_i32, %c0_i32_0 : i32, i32
  }
  func.func @transform_7(%arg0: i32) -> (i32, i32) {
    %c0_i32 = arith.constant 0 : i32
    %c0_i32_0 = arith.constant 0 : i32
    return %arg0, %c0_i32 : i32, i32
  }
}

</mosaic_0001>

<llo_original>
// kernel: tpu_custom_call.1
$region0: #{tpu_custom_call.1}
  #allocation0 [shape = 'u32[]', space=smem, size = 0x4, offset = 0x4, fixed_abs, tag = 'smem constant byte address 0x4 - core index']
  #allocation1 [shape = 'u32[72,128]{1,0:T(1,128)}', space=vmem, size = 0x9000, scoped, tag = 'internal scratch']
  %s0 = inlined_call_operand.hbm [shape: f32[2,128], index: 0, kind: input, shape index: {}]
  %s1 = inlined_call_operand.hbm [shape: f32[4,16], index: 1, kind: input, shape index: {}]
  %s2 = inlined_call_operand.hbm [shape: f32[4,16], index: 2, kind: input, shape index: {}]
  %s3 = inlined_call_operand.hbm [shape: f32[4,16], index: 3, kind: input, shape index: {}]
  %s4 = inlined_call_operand.hbm [shape: bf16[16,128,128], index: 4, kind: input, shape index: {}]
  %s5 = inlined_call_operand.hbm [shape: bf16[16,128,128], index: 5, kind: input, shape index: {}]
  %s6 = inlined_call_operand.vmem [shape: f32[1,128], index: 6, kind: input, shape index: {}]
  %s7 = inlined_call_operand.hbm [shape: f32[2,128], index: 7, kind: output, shape index: {}]
  %s8 = sld [smem:[#allocation0]]
  $region62: #{tpu_custom_call.1} parent=0
    _
  %s10 = ssub.s32 1, %s8
  %s11 = scalar_select 0, %s10, %s8
  $region1: #{tpu_custom_call.1} parent=0
    #allocation2 [shape = 'u8[1024]{0}', space=vmem, size = 0x400, scoped, tag = 'input window, operand 0, single buffered']
    #allocation3 [shape = 's32[1]{0}', space=sflag, size = 0x4, scoped, tag = 'scoped memory for tpu_custom_call.1']
    #allocation4 [shape = 's32[1]{0}', space=sflag, size = 0x4, scoped, tag = 'scoped memory for tpu_custom_call.1']
    #allocation5 [shape = 's32[1]{0}', space=sflag, size = 0x4, scoped, tag = 'scoped memory for tpu_custom_call.1']
    #allocation6 [shape = 'u8[2048]{0}', space=smem, size = 0x800, scoped, tag = 'input window, operand 1, single buffered']
    #allocation7 [shape = 'u8[2048]{0}', space=smem, size = 0x800, scoped, tag = 'input window, operand 2, single buffered']
    #allocation8 [shape = 's32[1]{0}', space=sflag, size = 0x4, scoped, tag = 'scoped memory for tpu_custom_call.1']
    #allocation9 [shape = 'u8[2048]{0}', space=smem, size = 0x800, scoped, tag = 'input window, operand 3, single buffered']
    #allocation10 [shape = 'u8[524288]{0}', space=vmem, size = 0x80000, scoped, tag = 'input window, operand 4, single buffered']
    #allocation11 [shape = 's32[1]{0}', space=sflag, size = 0x4, scoped, tag = 'scoped memory for tpu_custom_call.1']
    #allocation12 [shape = 'u8[524288]{0}', space=vmem, size = 0x80000, scoped, tag = 'input window, operand 5, single buffered']
    #allocation13 [shape = 'u8[1024]{0}', space=vmem, size = 0x400, scoped, tag = 'output window, operand 0, single buffered']
    %12 = vsyncpa [#allocation3], 0
    %13 = vsyncpa [#allocation5], 0
    %14 = vsyncpa [#allocation8], 0
    %15 = vsyncpa [#allocation11], 0
    %16 = vsyncpa [#allocation4], 0
    // Predicated region
    $region2: #{tpu_custom_call.1} parent=1 // pred_check
      _
    $region3: #{tpu_custom_call.1} parent=1 // pred_check_branch
      %18 = sbr.rel (0) target = $region5
    $region4: #{tpu_custom_call.1} parent=1 // pred_region
      %20 = vsyncadd [#allocation3], 0
      %s22 = sshll.u32 %s0, 4
      %s23 = int_to_ptr.hbm [resolvable:$true] %s22
      %s24 = sshll.u32 [#allocation2], 4
      %s25 = int_to_ptr.vmem [resolvable:$true] %s24
      %27 = dma.hbm_to_vmem [thread:$0]  %s23, 32, %s25, [#allocation3]
    $region5: #{tpu_custom_call.1} parent=1 // pred_fallthru
      _
    // Predicated region
    $region6: #{tpu_custom_call.1} parent=1 // pred_check
      _
    $region7: #{tpu_custom_call.1} parent=1 // pred_check_branch
      %29 = sbr.rel (0) target = $region9
    $region8: #{tpu_custom_call.1} parent=1 // pred_region
      %31 = vsyncadd [#allocation5], 0
      %s33 = sshll.u32 %s1, 4
      %s34 = int_to_ptr.hbm [resolvable:$true] %s33
      %36 = dma.hbm_to_smem %s34, 64, [#allocation6], [#allocation5]
    $region9: #{tpu_custom_call.1} parent=1 // pred_fallthru
      _
    // Predicated region
    $region10: #{tpu_custom_call.1} parent=1 // pred_check
      _
    $region11: #{tpu_custom_call.1} parent=1 // pred_check_branch
      %38 = sbr.rel (0) target = $region13
    $region12: #{tpu_custom_call.1} parent=1 // pred_region
      %40 = vsyncadd [#allocation8], 0
      %s42 = sshll.u32 %s2, 4
      %s43 = int_to_ptr.hbm [resolvable:$true] %s42
      %45 = dma.hbm_to_smem %s43, 64, [#allocation7], [#allocation8]
    $region13: #{tpu_custom_call.1} parent=1 // pred_fallthru
      _
    // Predicated region
    $region14: #{tpu_custom_call.1} parent=1 // pred_check
      _
    $region15: #{tpu_custom_call.1} parent=1 // pred_check_branch
      %47 = sbr.rel (0) target = $region17
    $region16: #{tpu_custom_call.1} parent=1 // pred_region
      %49 = vsyncadd [#allocation8], 0
      %s51 = sshll.u32 %s3, 4
      %s52 = int_to_ptr.hbm [resolvable:$true] %s51
      %54 = dma.hbm_to_smem %s52, 64, [#allocation9], [#allocation8]
    $region17: #{tpu_custom_call.1} parent=1 // pred_fallthru
      _
    // Predicated region
    $region18: #{tpu_custom_call.1} parent=1 // pred_check
      _
    $region19: #{tpu_custom_call.1} parent=1 // pred_check_branch
      %56 = sbr.rel (0) target = $region21
    $region20: #{tpu_custom_call.1} parent=1 // pred_region
      %58 = vsyncadd [#allocation11], 0
      %s59 = sshll.u32 %s4, 4
      %s60 = int_to_ptr.hbm [resolvable:$true] %s59
      %s61 = sshll.u32 [#allocation10], 4
      %s62 = int_to_ptr.vmem [resolvable:$true] %s61
      %67 = dma.hbm_to_vmem [thread:$0]  %s60, 16384, %s62, [#allocation11], 64, 64, 4
    $region21: #{tpu_custom_call.1} parent=1 // pred_fallthru
      _
    // Predicated region
    $region22: #{tpu_custom_call.1} parent=1 // pred_check
      _
    $region23: #{tpu_custom_call.1} parent=1 // pred_check_branch
      %69 = sbr.rel (0) target = $region25
    $region24: #{tpu_custom_call.1} parent=1 // pred_region
      %71 = vsyncadd [#allocation11], 0
      %s72 = sshll.u32 %s5, 4
      %s73 = int_to_ptr.hbm [resolvable:$true] %s72
      %s74 = sshll.u32 [#allocation12], 4
      %s75 = int_to_ptr.vmem [resolvable:$true] %s74
      %80 = dma.hbm_to_vmem [thread:$0]  %s73, 16384, %s75, [#allocation11], 64, 64, 4
    $region25: #{tpu_custom_call.1} parent=1 // pred_fallthru
      _
    // Predicated region
    $region26: #{tpu_custom_call.1} parent=1 // pred_check
      _
    $region27: #{tpu_custom_call.1} parent=1 // pred_check_branch
      %82 = sbr.rel (0) target = $region29
    $region28: #{tpu_custom_call.1} parent=1 // pred_region
      _
    $region29: #{tpu_custom_call.1} parent=1 // pred_fallthru
      _
    // Predicated region
    $region30: #{tpu_custom_call.1} parent=1 // pred_check
      _
    $region31: #{tpu_custom_call.1} parent=1 // pred_check_branch
      %84 = sbr.rel (0) target = $region33
    $region32: #{tpu_custom_call.1} parent=1 // pred_region
      %86 = dma.done [#allocation3], 32
    $region33: #{tpu_custom_call.1} parent=1 // pred_fallthru
      _
    // Predicated region
    $region34: #{tpu_custom_call.1} parent=1 // pred_check
      _
    $region35: #{tpu_custom_call.1} parent=1 // pred_check_branch
      %88 = sbr.rel (0) target = $region37
    $region36: #{tpu_custom_call.1} parent=1 // pred_region
      %90 = dma.done [#allocation5], 64
    $region37: #{tpu_custom_call.1} parent=1 // pred_fallthru
      _
    // Predicated region
    $region38: #{tpu_custom_call.1} parent=1 // pred_check
      _
    $region39: #{tpu_custom_call.1} parent=1 // pred_check_branch
      %92 = sbr.rel (0) target = $region41
    $region40: #{tpu_custom_call.1} parent=1 // pred_region
      %94 = dma.done [#allocation8], 64
    $region41: #{tpu_custom_call.1} parent=1 // pred_fallthru
      _
    // Predicated region
    $region42: #{tpu_custom_call.1} parent=1 // pred_check
      _
    $region43: #{tpu_custom_call.1} parent=1 // pred_check_branch
      %96 = sbr.rel (0) target = $region45
    $region44: #{tpu_custom_call.1} parent=1 // pred_region
      %98 = dma.done [#allocation8], 64
    $region45: #{tpu_custom_call.1} parent=1 // pred_fallthru
      _
    // Predicated region
    $region46: #{tpu_custom_call.1} parent=1 // pred_check
      _
    $region47: #{tpu_custom_call.1} parent=1 // pred_check_branch
      %100 = sbr.rel (0) target = $region49
    $region48: #{tpu_custom_call.1} parent=1 // pred_region
      %102 = dma.done [#allocation11], 16384
    $region49: #{tpu_custom_call.1} parent=1 // pred_fallthru
      _
    // Predicated region
    $region50: #{tpu_custom_call.1} parent=1 // pred_check
      _
    $region51: #{tpu_custom_call.1} parent=1 // pred_check_branch
      %104 = sbr.rel (0) target = $region53
    $region52: #{tpu_custom_call.1} parent=1 // pred_region
      %106 = dma.done [#allocation11], 16384
    $region53: #{tpu_custom_call.1} parent=1 // pred_fallthru
      _
    %107 = sfence
    %v108 = vld [vmem:[#allocation2] sm:$0x3]
    %109 = vrot.lane.b32.xlu0 %v108, 1
    %v110 = vpop.permute.xlu0 %109
    %111 = vrot.lane.b32.xlu0 %v108, 127
    %v112 = vpop.permute.xlu0 %111
    %v113 = vlaneseq
    %v114 = vand.u32 %v113, 127
    %vm115 = vcmp.lt.s32.totalorder %v114, 16
    %v116 = vsel %vm115, 1, 0
    %v117 = vcvt.s32.f32 %v116
    %s118 = sld [smem:[#allocation6]]
    %v119 = vstv %s118
    %v120 = vmul.f32 %v119, %v110
    %s121 = sld [smem:[#allocation6 + $0x80]]
    %v122 = vstv %s121
    %v123 = vmul.f32 %v122, %v108
    %v124 = vadd.f32 %v120, %v123
    %s125 = sld [smem:[#allocation6 + $0x100]]
    %v126 = vstv %s125
    %v127 = vmul.f32 %v126, %v112
    %v128 = vadd.f32 %v124, %v127
    %s129 = sld [smem:[#allocation6 + $0x180]]
    %v130 = vstv %s129
    %v131 = vadd.f32 %v128, %v130
    %v132 = vmax.f32 %v131, 0.0
    %v133 = vmul.f32 %v132, %v117
    %134 = vrot.lane.b32.xlu0 %v133, 1
    %v135 = vpop.permute.xlu0 %134
    %136 = vrot.lane.b32.xlu0 %v133, 127
    %v137 = vpop.permute.xlu0 %136
    %s138 = sld [smem:[#allocation7]]
    %v139 = vstv %s138
    %v140 = vmul.f32 %v139, %v135
    %s141 = sld [smem:[#allocation7 + $0x80]]
    %v142 = vstv %s141
    %v143 = vmul.f32 %v142, %v133
    %v144 = vadd.f32 %v140, %v143
    %s145 = sld [smem:[#allocation7 + $0x100]]
    %v146 = vstv %s145
    %v147 = vmul.f32 %v146, %v137
    %v148 = vadd.f32 %v144, %v147
    %s149 = sld [smem:[#allocation7 + $0x180]]
    %v150 = vstv %s149
    %v151 = vadd.f32 %v148, %v150
    %v152 = vmax.f32 %v151, 0.0
    %s153 = sld [smem:[#allocation9]]
    %v154 = vstv %s153
    %v155 = vmul.f32 %v154, %v135
    %s156 = sld [smem:[#allocation9 + $0x80]]
    %v157 = vstv %s156
    %v158 = vmul.f32 %v157, %v133
    %v159 = vadd.f32 %v155, %v158
    %s160 = sld [smem:[#allocation9 + $0x100]]
    %v161 = vstv %s160
    %v162 = vmul.f32 %v161, %v137
    %v163 = vadd.f32 %v159, %v162
    %s164 = sld [smem:[#allocation9 + $0x180]]
    %v165 = vstv %s164
    %v166 = vadd.f32 %v163, %v165
    %v167 = vmax.f32 %v166, 0.0
    %v168 = vpack.c.bf16 %v152, %v152
    %v169 = vld [vmem:[#allocation10] sm:$0xf]
    %v170 = vld [vmem:[#allocation10 + $0x4] sm:$0xf]
    %v171 = vld [vmem:[#allocation10 + $0x8] sm:$0xf]
    %v172 = vld [vmem:[#allocation10 + $0xc] sm:$0xf]
    %v173 = vld [vmem:[#allocation10 + $0x10] sm:$0xf]
    %v174 = vld [vmem:[#allocation10 + $0x14] sm:$0xf]
    %v175 = vld [vmem:[#allocation10 + $0x18] sm:$0xf]
    %v176 = vld [vmem:[#allocation10 + $0x1c] sm:$0xf]
    %v177 = vld [vmem:[#allocation10 + $0x20] sm:$0xf]
    %v178 = vld [vmem:[#allocation10 + $0x24] sm:$0xf]
    %v179 = vld [vmem:[#allocation10 + $0x28] sm:$0xf]
    %v180 = vld [vmem:[#allocation10 + $0x2c] sm:$0xf]
    %v181 = vld [vmem:[#allocation10 + $0x30] sm:$0xf]
    %v182 = vld [vmem:[#allocation10 + $0x34] sm:$0xf]
    %v183 = vld [vmem:[#allocation10 + $0x38] sm:$0xf]
    %v184 = vld [vmem:[#allocation10 + $0x3c] sm:$0xf]
    %v185 = vpack.c.bf16 %v167, %v167
    %v186 = vld [vmem:[#allocation12] sm:$0xf]
    %v187 = vld [vmem:[#allocation12 + $0x4] sm:$0xf]
    %v188 = vld [vmem:[#allocation12 + $0x8] sm:$0xf]
    %v189 = vld [vmem:[#allocation12 + $0xc] sm:$0xf]
    %v190 = vld [vmem:[#allocation12 + $0x10] sm:$0xf]
    %v191 = vld [vmem:[#allocation12 + $0x14] sm:$0xf]
    %v192 = vld [vmem:[#allocation12 + $0x18] sm:$0xf]
    %v193 = vld [vmem:[#allocation12 + $0x1c] sm:$0xf]
    %v194 = vld [vmem:[#allocation12 + $0x20] sm:$0xf]
    %v195 = vld [vmem:[#allocation12 + $0x24] sm:$0xf]
    %v196 = vld [vmem:[#allocation12 + $0x28] sm:$0xf]
    %v197 = vld [vmem:[#allocation12 + $0x2c] sm:$0xf]
    %v198 = vld [vmem:[#allocation12 + $0x30] sm:$0xf]
    %v199 = vld [vmem:[#allocation12 + $0x34] sm:$0xf]
    %v200 = vld [vmem:[#allocation12 + $0x38] sm:$0xf]
    %v201 = vld [vmem:[#allocation12 + $0x3c] sm:$0xf]
    %v218 = vunpack.c.l.b16 %v186
    %v219 = vunpack.c.l.b16 %v187
    %v220 = vunpack.c.l.b16 %v188
    %v221 = vunpack.c.l.b16 %v189
    %v222 = vunpack.c.l.b16 %v190
    %v223 = vunpack.c.l.b16 %v191
    %v224 = vunpack.c.l.b16 %v192
    %v225 = vunpack.c.l.b16 %v193
    %v226 = vunpack.c.l.b16 %v194
    %v227 = vunpack.c.l.b16 %v195
    %v228 = vunpack.c.l.b16 %v196
    %v229 = vunpack.c.l.b16 %v197
    %v230 = vunpack.c.l.b16 %v198
    %v231 = vunpack.c.l.b16 %v199
    %v232 = vunpack.c.l.b16 %v200
    %v233 = vunpack.c.l.b16 %v201
    %v234 = vpack.c.b16 %v219, %v218
    %v235 = vpack.c.b16 %v221, %v220
    %v236 = vpack.c.b16 %v223, %v222
    %v237 = vpack.c.b16 %v225, %v224
    %v238 = vpack.c.b16 %v227, %v226
    %v239 = vpack.c.b16 %v229, %v228
    %v240 = vpack.c.b16 %v231, %v230
    %v241 = vpack.c.b16 %v233, %v232
    %250 = vmatpush.bf16.msra.mxu0 %v241
    %251 = vmatpush.bf16.msra.mxu0 %v240
    %252 = vmatpush.bf16.msra.mxu0 %v239
    %253 = vmatpush.bf16.msra.mxu0 %v238
    %254 = vmatpush.bf16.msra.mxu0 %v237
    %255 = vmatpush.bf16.msra.mxu0 %v236
    %256 = vmatpush.bf16.msra.mxu0 %v235
    %257 = vmatpush.bf16.msra.mxu0 %v234
    %258 = vmatmul.bf16.gmra.mxu0 %v185
    %v259 = vpop.f32.mrf.mxu0
    %v260 = vadd.f32 0.0, %v259
    %v261 = vpop.f32.mrf.mxu0
    %262 = vdwg.mxu0
    %v279 = vunpack.c.l.b16 %v169
    %v280 = vunpack.c.l.b16 %v170
    %v281 = vunpack.c.l.b16 %v171
    %v282 = vunpack.c.l.b16 %v172
    %v283 = vunpack.c.l.b16 %v173
    %v284 = vunpack.c.l.b16 %v174
    %v285 = vunpack.c.l.b16 %v175
    %v286 = vunpack.c.l.b16 %v176
    %v287 = vunpack.c.l.b16 %v177
    %v288 = vunpack.c.l.b16 %v178
    %v289 = vunpack.c.l.b16 %v179
    %v290 = vunpack.c.l.b16 %v180
    %v291 = vunpack.c.l.b16 %v181
    %v292 = vunpack.c.l.b16 %v182
    %v293 = vunpack.c.l.b16 %v183
    %v294 = vunpack.c.l.b16 %v184
    %v295 = vpack.c.b16 %v280, %v279
    %v296 = vpack.c.b16 %v282, %v281
    %v297 = vpack.c.b16 %v284, %v283
    %v298 = vpack.c.b16 %v286, %v285
    %v299 = vpack.c.b16 %v288, %v287
    %v300 = vpack.c.b16 %v290, %v289
    %v301 = vpack.c.b16 %v292, %v291
    %v302 = vpack.c.b16 %v294, %v293
    %311 = vmatpush.bf16.msra.mxu0 %v302
    %312 = vmatpush.bf16.msra.mxu0 %v301
    %313 = vmatpush.bf16.msra.mxu0 %v300
    %314 = vmatpush.bf16.msra.mxu0 %v299
    %315 = vmatpush.bf16.msra.mxu0 %v298
    %316 = vmatpush.bf16.msra.mxu0 %v297
    %317 = vmatpush.bf16.msra.mxu0 %v296
    %318 = vmatpush.bf16.msra.mxu0 %v295
    %319 = vmatmul.bf16.gmra.mxu0 %v168
    %v320 = vpop.f32.mrf.mxu0
    %v321 = vadd.f32 %v260, %v320
    %v322 = vpop.f32.mrf.mxu0
    %323 = vdwg.mxu0
    %s324 = sld [smem:[#allocation6 + $0x1]]
    %v325 = vstv %s324
    %v326 = vmul.f32 %v325, %v110
    %s327 = sld [smem:[#allocation6 + $0x81]]
    %v328 = vstv %s327
    %v329 = vmul.f32 %v328, %v108
    %v330 = vadd.f32 %v326, %v329
    %s331 = sld [smem:[#allocation6 + $0x101]]
    %v332 = vstv %s331
    %v333 = vmul.f32 %v332, %v112
    %v334 = vadd.f32 %v330, %v333
    %s335 = sld [smem:[#allocation6 + $0x181]]
    %v336 = vstv %s335
    %v337 = vadd.f32 %v334, %v336
    %v338 = vmax.f32 %v337, 0.0
    %v339 = vmul.f32 %v338, %v117
    %340 = vrot.lane.b32.xlu0 %v339, 1
    %v341 = vpop.permute.xlu0 %340
    %342 = vrot.lane.b32.xlu0 %v339, 127
    %v343 = vpop.permute.xlu0 %342
    %s344 = sld [smem:[#allocation7 + $0x1]]
    %v345 = vstv %s344
    %v346 = vmul.f32 %v345, %v341
    %s347 = sld [smem:[#allocation7 + $0x81]]
    %v348 = vstv %s347
    %v349 = vmul.f32 %v348, %v339
    %v350 = vadd.f32 %v346, %v349
    %s351 = sld [smem:[#allocation7 + $0x101]]
    %v352 = vstv %s351
    %v353 = vmul.f32 %v352, %v343
    %v354 = vadd.f32 %v350, %v353
    %s355 = sld [smem:[#allocation7 + $0x181]]
    %v356 = vstv %s355
    %v357 = vadd.f32 %v354, %v356
    %v358 = vmax.f32 %v357, 0.0
    %s359 = sld [smem:[#allocation9 + $0x1]]
    %v360 = vstv %s359
    %v361 = vmul.f32 %v360, %v341
    %s362 = sld [smem:[#allocation9 + $0x81]]
    %v363 = vstv %s362
    %v364 = vmul.f32 %v363, %v339
    %v365 = vadd.f32 %v361, %v364
    %s366 = sld [smem:[#allocation9 + $0x101]]
    %v367 = vstv %s366
    %v368 = vmul.f32 %v367, %v343
    %v369 = vadd.f32 %v365, %v368
    %s370 = sld [smem:[#allocation9 + $0x181]]
    %v371 = vstv %s370
    %v372 = vadd.f32 %v369, %v371
    %v373 = vmax.f32 %v372, 0.0
    %v374 = vpack.c.bf16 %v358, %v358
    %s375 = scalar_lea.vmem [#allocation10], 64
    %v376 = vld [vmem:[%s375] sm:$0xf]
    %v377 = vld [vmem:[%s375 + $0x4] sm:$0xf]
    %v378 = vld [vmem:[%s375 + $0x8] sm:$0xf]
    %v379 = vld [vmem:[%s375 + $0xc] sm:$0xf]
    %v380 = vld [vmem:[%s375 + $0x10] sm:$0xf]
    %v381 = vld [vmem:[%s375 + $0x14] sm:$0xf]
    %v382 = vld [vmem:[%s375 + $0x18] sm:$0xf]
    %v383 = vld [vmem:[%s375 + $0x1c] sm:$0xf]
    %v384 = vld [vmem:[%s375 + $0x20] sm:$0xf]
    %v385 = vld [vmem:[%s375 + $0x24] sm:$0xf]
    %v386 = vld [vmem:[%s375 + $0x28] sm:$0xf]
    %v387 = vld [vmem:[%s375 + $0x2c] sm:$0xf]
    %v388 = vld [vmem:[%s375 + $0x30] sm:$0xf]
    %v389 = vld [vmem:[%s375 + $0x34] sm:$0xf]
    %v390 = vld [vmem:[%s375 + $0x38] sm:$0xf]
    %v391 = vld [vmem:[%s375 + $0x3c] sm:$0xf]
    %v408 = vunpack.c.l.b16 %v376
    %v409 = vunpack.c.l.b16 %v377
    %v410 = vunpack.c.l.b16 %v378
    %v411 = vunpack.c.l.b16 %v379
    %v412 = vunpack.c.l.b16 %v380
    %v413 = vunpack.c.l.b16 %v381
    %v414 = vunpack.c.l.b16 %v382
    %v415 = vunpack.c.l.b16 %v383
    %v416 = vunpack.c.l.b16 %v384
    %v417 = vunpack.c.l.b16 %v385
    %v418 = vunpack.c.l.b16 %v386
    %v419 = vunpack.c.l.b16 %v387
    %v420 = vunpack.c.l.b16 %v388
    %v421 = vunpack.c.l.b16 %v389
    %v422 = vunpack.c.l.b16 %v390
    %v423 = vunpack.c.l.b16 %v391
    %v424 = vpack.c.b16 %v409, %v408
    %v425 = vpack.c.b16 %v411, %v410
    %v426 = vpack.c.b16 %v413, %v412
    %v427 = vpack.c.b16 %v415, %v414
    %v428 = vpack.c.b16 %v417, %v416
    %v429 = vpack.c.b16 %v419, %v418
    %v430 = vpack.c.b16 %v421, %v420
    %v431 = vpack.c.b16 %v423, %v422
    %440 = vmatpush.bf16.msra.mxu0 %v431
    %441 = vmatpush.bf16.msra.mxu0 %v430
    %442 = vmatpush.bf16.msra.mxu0 %v429
    %443 = vmatpush.bf16.msra.mxu0 %v428
    %444 = vmatpush.bf16.msra.mxu0 %v427
    %445 = vmatpush.bf16.msra.mxu0 %v426
    %446 = vmatpush.bf16.msra.mxu0 %v425
    %447 = vmatpush.bf16.msra.mxu0 %v424
    %448 = vmatmul.bf16.gmra.mxu0 %v374
    %v449 = vpop.f32.mrf.mxu0
    %v450 = vadd.f32 0.0, %v449
    %v451 = vpop.f32.mrf.mxu0
    %452 = vdwg.mxu0
    %v453 = vadd.f32 %v321, %v450
    %v454 = vpack.c.bf16 %v373, %v373
    %s455 = scalar_lea.vmem [#allocation12], 64
    %v456 = vld [vmem:[%s455] sm:$0xf]
    %v457 = vld [vmem:[%s455 + $0x4] sm:$0xf]
    %v458 = vld [vmem:[%s455 + $0x8] sm:$0xf]
    %v459 = vld [vmem:[%s455 + $0xc] sm:$0xf]
    %v460 = vld [vmem:[%s455 + $0x10] sm:$0xf]
    %v461 = vld [vmem:[%s455 + $0x14] sm:$0xf]
    %v462 = vld [vmem:[%s455 + $0x18] sm:$0xf]
    %v463 = vld [vmem:[%s455 + $0x1c] sm:$0xf]
    %v464 = vld [vmem:[%s455 + $0x20] sm:$0xf]
    %v465 = vld [vmem:[%s455 + $0x24] sm:$0xf]
    %v466 = vld [vmem:[%s455 + $0x28] sm:$0xf]
    %v467 = vld [vmem:[%s455 + $0x2c] sm:$0xf]
    %v468 = vld [vmem:[%s455 + $0x30] sm:$0xf]
    %v469 = vld [vmem:[%s455 + $0x34] sm:$0xf]
    %v470 = vld [vmem:[%s455 + $0x38] sm:$0xf]
    %v471 = vld [vmem:[%s455 + $0x3c] sm:$0xf]
    %v488 = vunpack.c.l.b16 %v456
    %v489 = vunpack.c.l.b16 %v457
    %v490 = vunpack.c.l.b16 %v458
    %v491 = vunpack.c.l.b16 %v459
    %v492 = vunpack.c.l.b16 %v460
    %v493 = vunpack.c.l.b16 %v461
    %v494 = vunpack.c.l.b16 %v462
    %v495 = vunpack.c.l.b16 %v463
    %v496 = vunpack.c.l.b16 %v464
    %v497 = vunpack.c.l.b16 %v465
    %v498 = vunpack.c.l.b16 %v466
    %v499 = vunpack.c.l.b16 %v467
    %v500 = vunpack.c.l.b16 %v468
    %v501 = vunpack.c.l.b16 %v469
    %v502 = vunpack.c.l.b16 %v470
    %v503 = vunpack.c.l.b16 %v471
    %v504 = vpack.c.b16 %v489, %v488
    %v505 = vpack.c.b16 %v491, %v490
    %v506 = vpack.c.b16 %v493, %v492
    %v507 = vpack.c.b16 %v495, %v494
    %v508 = vpack.c.b16 %v497, %v496
    %v509 = vpack.c.b16 %v499, %v498
    %v510 = vpack.c.b16 %v501, %v500
    %v511 = vpack.c.b16 %v503, %v502
    %520 = vmatpush.bf16.msra.mxu0 %v511
    %521 = vmatpush.bf16.msra.mxu0 %v510
    %522 = vmatpush.bf16.msra.mxu0 %v509
    %523 = vmatpush.bf16.msra.mxu0 %v508
    %524 = vmatpush.bf16.msra.mxu0 %v507
    %525 = vmatpush.bf16.msra.mxu0 %v506
    %526 = vmatpush.bf16.msra.mxu0 %v505
    %527 = vmatpush.bf16.msra.mxu0 %v504
    %528 = vmatmul.bf16.gmra.mxu0 %v454
    %v529 = vpop.f32.mrf.mxu0
    %v530 = vadd.f32 0.0, %v529
    %v531 = vpop.f32.mrf.mxu0
    %532 = vdwg.mxu0
    %v533 = vadd.f32 %v453, %v530
    %s534 = sld [smem:[#allocation6 + $0x2]]
    %v535 = vstv %s534
    %v536 = vmul.f32 %v535, %v110
    %s537 = sld [smem:[#allocation6 + $0x82]]
    %v538 = vstv %s537
    %v539 = vmul.f32 %v538, %v108
    %v540 = vadd.f32 %v536, %v539
    %s541 = sld [smem:[#allocation6 + $0x102]]
    %v542 = vstv %s541
    %v543 = vmul.f32 %v542, %v112
    %v544 = vadd.f32 %v540, %v543
    %s545 = sld [smem:[#allocation6 + $0x182]]
    %v546 = vstv %s545
    %v547 = vadd.f32 %v544, %v546
    %v548 = vmax.f32 %v547, 0.0
    %v549 = vmul.f32 %v548, %v117
    %550 = vrot.lane.b32.xlu0 %v549, 1
    %v551 = vpop.permute.xlu0 %550
    %552 = vrot.lane.b32.xlu0 %v549, 127
    %v553 = vpop.permute.xlu0 %552
    %s554 = sld [smem:[#allocation7 + $0x2]]
    %v555 = vstv %s554
    %v556 = vmul.f32 %v555, %v551
    %s557 = sld [smem:[#allocation7 + $0x82]]
    %v558 = vstv %s557
    %v559 = vmul.f32 %v558, %v549
    %v560 = vadd.f32 %v556, %v559
    %s561 = sld [smem:[#allocation7 + $0x102]]
    %v562 = vstv %s561
    %v563 = vmul.f32 %v562, %v553
    %v564 = vadd.f32 %v560, %v563
    %s565 = sld [smem:[#allocation7 + $0x182]]
    %v566 = vstv %s565
    %v567 = vadd.f32 %v564, %v566
    %v568 = vmax.f32 %v567, 0.0
    %s569 = sld [smem:[#allocation9 + $0x2]]
    %v570 = vstv %s569
    %v571 = vmul.f32 %v570, %v551
    %s572 = sld [smem:[#allocation9 + $0x82]]
    %v573 = vstv %s572
    %v574 = vmul.f32 %v573, %v549
    %v575 = vadd.f32 %v571, %v574
    %s576 = sld [smem:[#allocation9 + $0x102]]
    %v577 = vstv %s576
    %v578 = vmul.f32 %v577, %v553
    %v579 = vadd.f32 %v575, %v578
    %s580 = sld [smem:[#allocation9 + $0x182]]
    %v581 = vstv %s580
    %v582 = vadd.f32 %v579, %v581
    %v583 = vmax.f32 %v582, 0.0
    %v584 = vpack.c.bf16 %v568, %v568
    %s585 = scalar_lea.vmem [#allocation10], 128
    %v586 = vld [vmem:[%s585] sm:$0xf]
    %v587 = vld [vmem:[%s585 + $0x4] sm:$0xf]
    %v588 = vld [vmem:[%s585 + $0x8] sm:$0xf]
    %v589 = vld [vmem:[%s585 + $0xc] sm:$0xf]
    %v590 = vld [vmem:[%s585 + $0x10] sm:$0xf]
    %v591 = vld [vmem:[%s585 + $0x14] sm:$0xf]
    %v592 = vld [vmem:[%s585 + $0x18] sm:$0xf]
    %v593 = vld [vmem:[%s585 + $0x1c] sm:$0xf]
    %v594 = vld [vmem:[%s585 + $0x20] sm:$0xf]
    %v595 = vld [vmem:[%s585 + $0x24] sm:$0xf]
    %v596 = vld [vmem:[%s585 + $0x28] sm:$0xf]
    %v597 = vld [vmem:[%s585 + $0x2c] sm:$0xf]
    %v598 = vld [vmem:[%s585 + $0x30] sm:$0xf]
    %v599 = vld [vmem:[%s585 + $0x34] sm:$0xf]
    %v600 = vld [vmem:[%s585 + $0x38] sm:$0xf]
    %v601 = vld [vmem:[%s585 + $0x3c] sm:$0xf]
    %v618 = vunpack.c.l.b16 %v586
    %v619 = vunpack.c.l.b16 %v587
    %v620 = vunpack.c.l.b16 %v588
    %v621 = vunpack.c.l.b16 %v589
    %v622 = vunpack.c.l.b16 %v590
    %v623 = vunpack.c.l.b16 %v591
    %v624 = vunpack.c.l.b16 %v592
    %v625 = vunpack.c.l.b16 %v593
    %v626 = vunpack.c.l.b16 %v594
    %v627 = vunpack.c.l.b16 %v595
    %v628 = vunpack.c.l.b16 %v596
    %v629 = vunpack.c.l.b16 %v597
    %v630 = vunpack.c.l.b16 %v598
    %v631 = vunpack.c.l.b16 %v599
    %v632 = vunpack.c.l.b16 %v600
    %v633 = vunpack.c.l.b16 %v601
    %v634 = vpack.c.b16 %v619, %v618
    %v635 = vpack.c.b16 %v621, %v620
    %v636 = vpack.c.b16 %v623, %v622
    %v637 = vpack.c.b16 %v625, %v624
    %v638 = vpack.c.b16 %v627, %v626
    %v639 = vpack.c.b16 %v629, %v628
    %v640 = vpack.c.b16 %v631, %v630
    %v641 = vpack.c.b16 %v633, %v632
    %650 = vmatpush.bf16.msra.mxu0 %v641
    %651 = vmatpush.bf16.msra.mxu0 %v640
    %652 = vmatpush.bf16.msra.mxu0 %v639
    %653 = vmatpush.bf16.msra.mxu0 %v638
    %654 = vmatpush.bf16.msra.mxu0 %v637
    %655 = vmatpush.bf16.msra.mxu0 %v636
    %656 = vmatpush.bf16.msra.mxu0 %v635
    %657 = vmatpush.bf16.msra.mxu0 %v634
    %658 = vmatmul.bf16.gmra.mxu0 %v584
    %v659 = vpop.f32.mrf.mxu0
    %v660 = vadd.f32 0.0, %v659
    %v661 = vpop.f32.mrf.mxu0
    %662 = vdwg.mxu0
    %v663 = vadd.f32 %v533, %v660
    %v664 = vpack.c.bf16 %v583, %v583
    %s665 = scalar_lea.vmem [#allocation12], 128
    %v666 = vld [vmem:[%s665] sm:$0xf]
    %v667 = vld [vmem:[%s665 + $0x4] sm:$0xf]
    %v668 = vld [vmem:[%s665 + $0x8] sm:$0xf]
    %v669 = vld [vmem:[%s665 + $0xc] sm:$0xf]
    %v670 = vld [vmem:[%s665 + $0x10] sm:$0xf]
    %v671 = vld [vmem:[%s665 + $0x14] sm:$0xf]
    %v672 = vld [vmem:[%s665 + $0x18] sm:$0xf]
    %v673 = vld [vmem:[%s665 + $0x1c] sm:$0xf]
    %v674 = vld [vmem:[%s665 + $0x20] sm:$0xf]
    %v675 = vld [vmem:[%s665 + $0x24] sm:$0xf]
    %v676 = vld [vmem:[%s665 + $0x28] sm:$0xf]
    %v677 = vld [vmem:[%s665 + $0x2c] sm:$0xf]
    %v678 = vld [vmem:[%s665 + $0x30] sm:$0xf]
    %v679 = vld [vmem:[%s665 + $0x34] sm:$0xf]
    %v680 = vld [vmem:[%s665 + $0x38] sm:$0xf]
    %v681 = vld [vmem:[%s665 + $0x3c] sm:$0xf]
    %v698 = vunpack.c.l.b16 %v666
    %v699 = vunpack.c.l.b16 %v667
    %v700 = vunpack.c.l.b16 %v668
    %v701 = vunpack.c.l.b16 %v669
    %v702 = vunpack.c.l.b16 %v670
    %v703 = vunpack.c.l.b16 %v671
    %v704 = vunpack.c.l.b16 %v672
    %v705 = vunpack.c.l.b16 %v673
    %v706 = vunpack.c.l.b16 %v674
    %v707 = vunpack.c.l.b16 %v675
    %v708 = vunpack.c.l.b16 %v676
    %v709 = vunpack.c.l.b16 %v677
    %v710 = vunpack.c.l.b16 %v678
    %v711 = vunpack.c.l.b16 %v679
    %v712 = vunpack.c.l.b16 %v680
    %v713 = vunpack.c.l.b16 %v681
    %v714 = vpack.c.b16 %v699, %v698
    %v715 = vpack.c.b16 %v701, %v700
    %v716 = vpack.c.b16 %v703, %v702
    %v717 = vpack.c.b16 %v705, %v704
    %v718 = vpack.c.b16 %v707, %v706
    %v719 = vpack.c.b16 %v709, %v708
    %v720 = vpack.c.b16 %v711, %v710
    %v721 = vpack.c.b16 %v713, %v712
    %730 = vmatpush.bf16.msra.mxu0 %v721
    %731 = vmatpush.bf16.msra.mxu0 %v720
    %732 = vmatpush.bf16.msra.mxu0 %v719
    %733 = vmatpush.bf16.msra.mxu0 %v718
    %734 = vmatpush.bf16.msra.mxu0 %v717
    %735 = vmatpush.bf16.msra.mxu0 %v716
    %736 = vmatpush.bf16.msra.mxu0 %v715
    %737 = vmatpush.bf16.msra.mxu0 %v714
    %738 = vmatmul.bf16.gmra.mxu0 %v664
    %v739 = vpop.f32.mrf.mxu0
    %v740 = vadd.f32 0.0, %v739
    %v741 = vpop.f32.mrf.mxu0
    %742 = vdwg.mxu0
    %v743 = vadd.f32 %v663, %v740
    %s744 = sld [smem:[#allocation6 + $0x3]]
    %v745 = vstv %s744
    %v746 = vmul.f32 %v745, %v110
    %s747 = sld [smem:[#allocation6 + $0x83]]
    %v748 = vstv %s747
    %v749 = vmul.f32 %v748, %v108
    %v750 = vadd.f32 %v746, %v749
    %s751 = sld [smem:[#allocation6 + $0x103]]
    %v752 = vstv %s751
    %v753 = vmul.f32 %v752, %v112
    %v754 = vadd.f32 %v750, %v753
    %s755 = sld [smem:[#allocation6 + $0x183]]
    %v756 = vstv %s755
    %v757 = vadd.f32 %v754, %v756
    %v758 = vmax.f32 %v757, 0.0
    %v759 = vmul.f32 %v758, %v117
    %760 = vrot.lane.b32.xlu0 %v759, 1
    %v761 = vpop.permute.xlu0 %760
    %762 = vrot.lane.b32.xlu0 %v759, 127
    %v763 = vpop.permute.xlu0 %762
    %s764 = sld [smem:[#allocation7 + $0x3]]
    %v765 = vstv %s764
    %v766 = vmul.f32 %v765, %v761
    %s767 = sld [smem:[#allocation7 + $0x83]]
    %v768 = vstv %s767
    %v769 = vmul.f32 %v768, %v759
    %v770 = vadd.f32 %v766, %v769
    %s771 = sld [smem:[#allocation7 + $0x103]]
    %v772 = vstv %s771
    %v773 = vmul.f32 %v772, %v763
    %v774 = vadd.f32 %v770, %v773
    %s775 = sld [smem:[#allocation7 + $0x183]]
    %v776 = vstv %s775
    %v777 = vadd.f32 %v774, %v776
    %v778 = vmax.f32 %v777, 0.0
    %s779 = sld [smem:[#allocation9 + $0x3]]
    %v780 = vstv %s779
    %v781 = vmul.f32 %v780, %v761
    %s782 = sld [smem:[#allocation9 + $0x83]]
    %v783 = vstv %s782
    %v784 = vmul.f32 %v783, %v759
    %v785 = vadd.f32 %v781, %v784
    %s786 = sld [smem:[#allocation9 + $0x103]]
    %v787 = vstv %s786
    %v788 = vmul.f32 %v787, %v763
    %v789 = vadd.f32 %v785, %v788
    %s790 = sld [smem:[#allocation9 + $0x183]]
    %v791 = vstv %s790
    %v792 = vadd.f32 %v789, %v791
    %v793 = vmax.f32 %v792, 0.0
    %v794 = vpack.c.bf16 %v778, %v778
    %s795 = scalar_lea.vmem [#allocation10], 192
    %v796 = vld [vmem:[%s795] sm:$0xf]
    %v797 = vld [vmem:[%s795 + $0x4] sm:$0xf]
    %v798 = vld [vmem:[%s795 + $0x8] sm:$0xf]
    %v799 = vld [vmem:[%s795 + $0xc] sm:$0xf]
    %v800 = vld [vmem:[%s795 + $0x10] sm:$0xf]
    %v801 = vld [vmem:[%s795 + $0x14] sm:$0xf]
    %v802 = vld [vmem:[%s795 + $0x18] sm:$0xf]
    %v803 = vld [vmem:[%s795 + $0x1c] sm:$0xf]
    %v804 = vld [vmem:[%s795 + $0x20] sm:$0xf]
    %v805 = vld [vmem:[%s795 + $0x24] sm:$0xf]
    %v806 = vld [vmem:[%s795 + $0x28] sm:$0xf]
    %v807 = vld [vmem:[%s795 + $0x2c] sm:$0xf]
    %v808 = vld [vmem:[%s795 + $0x30] sm:$0xf]
    %v809 = vld [vmem:[%s795 + $0x34] sm:$0xf]
    %v810 = vld [vmem:[%s795 + $0x38] sm:$0xf]
    %v811 = vld [vmem:[%s795 + $0x3c] sm:$0xf]
    %v828 = vunpack.c.l.b16 %v796
    %v829 = vunpack.c.l.b16 %v797
    %v830 = vunpack.c.l.b16 %v798
    %v831 = vunpack.c.l.b16 %v799
    %v832 = vunpack.c.l.b16 %v800
    %v833 = vunpack.c.l.b16 %v801
    %v834 = vunpack.c.l.b16 %v802
    %v835 = vunpack.c.l.b16 %v803
    %v836 = vunpack.c.l.b16 %v804
    %v837 = vunpack.c.l.b16 %v805
    %v838 = vunpack.c.l.b16 %v806
    %v839 = vunpack.c.l.b16 %v807
    %v840 = vunpack.c.l.b16 %v808
    %v841 = vunpack.c.l.b16 %v809
    %v842 = vunpack.c.l.b16 %v810
    %v843 = vunpack.c.l.b16 %v811
    %v844 = vpack.c.b16 %v829, %v828
    %v845 = vpack.c.b16 %v831, %v830
    %v846 = vpack.c.b16 %v833, %v832
    %v847 = vpack.c.b16 %v835, %v834
    %v848 = vpack.c.b16 %v837, %v836
    %v849 = vpack.c.b16 %v839, %v838
    %v850 = vpack.c.b16 %v841, %v840
    %v851 = vpack.c.b16 %v843, %v842
    %860 = vmatpush.bf16.msra.mxu0 %v851
    %861 = vmatpush.bf16.msra.mxu0 %v850
    %862 = vmatpush.bf16.msra.mxu0 %v849
    %863 = vmatpush.bf16.msra.mxu0 %v848
    %864 = vmatpush.bf16.msra.mxu0 %v847
    %865 = vmatpush.bf16.msra.mxu0 %v846
    %866 = vmatpush.bf16.msra.mxu0 %v845
    %867 = vmatpush.bf16.msra.mxu0 %v844
    %868 = vmatmul.bf16.gmra.mxu0 %v794
    %v869 = vpop.f32.mrf.mxu0
    %v870 = vadd.f32 0.0, %v869
    %v871 = vpop.f32.mrf.mxu0
    %872 = vdwg.mxu0
    %v873 = vadd.f32 %v743, %v870
    %v874 = vpack.c.bf16 %v793, %v793
    %s875 = scalar_lea.vmem [#allocation12], 192
    %v876 = vld [vmem:[%s875] sm:$0xf]
    %v877 = vld [vmem:[%s875 + $0x4] sm:$0xf]
    %v878 = vld [vmem:[%s875 + $0x8] sm:$0xf]
    %v879 = vld [vmem:[%s875 + $0xc] sm:$0xf]
    %v880 = vld [vmem:[%s875 + $0x10] sm:$0xf]
    %v881 = vld [vmem:[%s875 + $0x14] sm:$0xf]
    %v882 = vld [vmem:[%s875 + $0x18] sm:$0xf]
    %v883 = vld [vmem:[%s875 + $0x1c] sm:$0xf]
    %v884 = vld [vmem:[%s875 + $0x20] sm:$0xf]
    %v885 = vld [vmem:[%s875 + $0x24] sm:$0xf]
    %v886 = vld [vmem:[%s875 + $0x28] sm:$0xf]
    %v887 = vld [vmem:[%s875 + $0x2c] sm:$0xf]
    %v888 = vld [vmem:[%s875 + $0x30] sm:$0xf]
    %v889 = vld [vmem:[%s875 + $0x34] sm:$0xf]
    %v890 = vld [vmem:[%s875 + $0x38] sm:$0xf]
    %v891 = vld [vmem:[%s875 + $0x3c] sm:$0xf]
    %v908 = vunpack.c.l.b16 %v876
    %v909 = vunpack.c.l.b16 %v877
    %v910 = vunpack.c.l.b16 %v878
    %v911 = vunpack.c.l.b16 %v879
    %v912 = vunpack.c.l.b16 %v880
    %v913 = vunpack.c.l.b16 %v881
    %v914 = vunpack.c.l.b16 %v882
    %v915 = vunpack.c.l.b16 %v883
    %v916 = vunpack.c.l.b16 %v884
    %v917 = vunpack.c.l.b16 %v885
    %v918 = vunpack.c.l.b16 %v886
    %v919 = vunpack.c.l.b16 %v887
    %v920 = vunpack.c.l.b16 %v888
    %v921 = vunpack.c.l.b16 %v889
    %v922 = vunpack.c.l.b16 %v890
    %v923 = vunpack.c.l.b16 %v891
    %v924 = vpack.c.b16 %v909, %v908
    %v925 = vpack.c.b16 %v911, %v910
    %v926 = vpack.c.b16 %v913, %v912
    %v927 = vpack.c.b16 %v915, %v914
    %v928 = vpack.c.b16 %v917, %v916
    %v929 = vpack.c.b16 %v919, %v918
    %v930 = vpack.c.b16 %v921, %v920
    %v931 = vpack.c.b16 %v923, %v922
    %940 = vmatpush.bf16.msra.mxu0 %v931
    %941 = vmatpush.bf16.msra.mxu0 %v930
    %942 = vmatpush.bf16.msra.mxu0 %v929
    %943 = vmatpush.bf16.msra.mxu0 %v928
    %944 = vmatpush.bf16.msra.mxu0 %v927
    %945 = vmatpush.bf16.msra.mxu0 %v926
    %946 = vmatpush.bf16.msra.mxu0 %v925
    %947 = vmatpush.bf16.msra.mxu0 %v924
    %948 = vmatmul.bf16.gmra.mxu0 %v874
    %v949 = vpop.f32.mrf.mxu0
    %v950 = vadd.f32 0.0, %v949
    %v951 = vpop.f32.mrf.mxu0
    %952 = vdwg.mxu0
    %v953 = vadd.f32 %v873, %v950
    %s954 = sld [smem:[#allocation6 + $0x4]]
    %v955 = vstv %s954
    %v956 = vmul.f32 %v955, %v110
    %s957 = sld [smem:[#allocation6 + $0x84]]
    %v958 = vstv %s957
    %v959 = vmul.f32 %v958, %v108
    %v960 = vadd.f32 %v956, %v959
    %s961 = sld [smem:[#allocation6 + $0x104]]
    %v962 = vstv %s961
    %v963 = vmul.f32 %v962, %v112
    %v964 = vadd.f32 %v960, %v963
    %s965 = sld [smem:[#allocation6 + $0x184]]
    %v966 = vstv %s965
    %v967 = vadd.f32 %v964, %v966
    %v968 = vmax.f32 %v967, 0.0
    %v969 = vmul.f32 %v968, %v117
    %970 = vrot.lane.b32.xlu0 %v969, 1
    %v971 = vpop.permute.xlu0 %970
    %972 = vrot.lane.b32.xlu0 %v969, 127
    %v973 = vpop.permute.xlu0 %972
    %s974 = sld [smem:[#allocation7 + $0x4]]
    %v975 = vstv %s974
    %v976 = vmul.f32 %v975, %v971
    %s977 = sld [smem:[#allocation7 + $0x84]]
    %v978 = vstv %s977
    %v979 = vmul.f32 %v978, %v969
    %v980 = vadd.f32 %v976, %v979
    %s981 = sld [smem:[#allocation7 + $0x104]]
    %v982 = vstv %s981
    %v983 = vmul.f32 %v982, %v973
    %v984 = vadd.f32 %v980, %v983
    %s985 = sld [smem:[#allocation7 + $0x184]]
    %v986 = vstv %s985
    %v987 = vadd.f32 %v984, %v986
    %v988 = vmax.f32 %v987, 0.0
    %s989 = sld [smem:[#allocation9 + $0x4]]
    %v990 = vstv %s989
    %v991 = vmul.f32 %v990, %v971
    %s992 = sld [smem:[#allocation9 + $0x84]]
    %v993 = vstv %s992
    %v994 = vmul.f32 %v993, %v969
    %v995 = vadd.f32 %v991, %v994
    %s996 = sld [smem:[#allocation9 + $0x104]]
    %v997 = vstv %s996
    %v998 = vmul.f32 %v997, %v973
    %v999 = vadd.f32 %v995, %v998
    %s1000 = sld [smem:[#allocation9 + $0x184]]
    %v1001 = vstv %s1000
    %v1002 = vadd.f32 %v999, %v1001
    %v1003 = vmax.f32 %v1002, 0.0
    %v1004 = vpack.c.bf16 %v988, %v988
    %s1005 = scalar_lea.vmem [#allocation10], 256
    %v1006 = vld [vmem:[%s1005] sm:$0xf]
    %v1007 = vld [vmem:[%s1005 + $0x4] sm:$0xf]
    %v1008 = vld [vmem:[%s1005 + $0x8] sm:$0xf]
    %v1009 = vld [vmem:[%s1005 + $0xc] sm:$0xf]
    %v1010 = vld [vmem:[%s1005 + $0x10] sm:$0xf]
    %v1011 = vld [vmem:[%s1005 + $0x14] sm:$0xf]
    %v1012 = vld [vmem:[%s1005 + $0x18] sm:$0xf]
    %v1013 = vld [vmem:[%s1005 + $0x1c] sm:$0xf]
    %v1014 = vld [vmem:[%s1005 + $0x20] sm:$0xf]
    %v1015 = vld [vmem:[%s1005 + $0x24] sm:$0xf]
    %v1016 = vld [vmem:[%s1005 + $0x28] sm:$0xf]
    %v1017 = vld [vmem:[%s1005 + $0x2c] sm:$0xf]
    %v1018 = vld [vmem:[%s1005 + $0x30] sm:$0xf]
    %v1019 = vld [vmem:[%s1005 + $0x34] sm:$0xf]
    %v1020 = vld [vmem:[%s1005 + $0x38] sm:$0xf]
    %v1021 = vld [vmem:[%s1005 + $0x3c] sm:$0xf]
    %v1038 = vunpack.c.l.b16 %v1006
    %v1039 = vunpack.c.l.b16 %v1007
    %v1040 = vunpack.c.l.b16 %v1008
    %v1041 = vunpack.c.l.b16 %v1009
    %v1042 = vunpack.c.l.b16 %v1010
    %v1043 = vunpack.c.l.b16 %v1011
    %v1044 = vunpack.c.l.b16 %v1012
    %v1045 = vunpack.c.l.b16 %v1013
    %v1046 = vunpack.c.l.b16 %v1014
    %v1047 = vunpack.c.l.b16 %v1015
    %v1048 = vunpack.c.l.b16 %v1016
    %v1049 = vunpack.c.l.b16 %v1017
    %v1050 = vunpack.c.l.b16 %v1018
    %v1051 = vunpack.c.l.b16 %v1019
    %v1052 = vunpack.c.l.b16 %v1020
    %v1053 = vunpack.c.l.b16 %v1021
    %v1054 = vpack.c.b16 %v1039, %v1038
    %v1055 = vpack.c.b16 %v1041, %v1040
    %v1056 = vpack.c.b16 %v1043, %v1042
    %v1057 = vpack.c.b16 %v1045, %v1044
    %v1058 = vpack.c.b16 %v1047, %v1046
    %v1059 = vpack.c.b16 %v1049, %v1048
    %v1060 = vpack.c.b16 %v1051, %v1050
    %v1061 = vpack.c.b16 %v1053, %v1052
    %1070 = vmatpush.bf16.msra.mxu0 %v1061
    %1071 = vmatpush.bf16.msra.mxu0 %v1060
    %1072 = vmatpush.bf16.msra.mxu0 %v1059
    %1073 = vmatpush.bf16.msra.mxu0 %v1058
    %1074 = vmatpush.bf16.msra.mxu0 %v1057
    %1075 = vmatpush.bf16.msra.mxu0 %v1056
    %1076 = vmatpush.bf16.msra.mxu0 %v1055
    %1077 = vmatpush.bf16.msra.mxu0 %v1054
    %1078 = vmatmul.bf16.gmra.mxu0 %v1004
    %v1079 = vpop.f32.mrf.mxu0
    %v1080 = vadd.f32 0.0, %v1079
    %v1081 = vpop.f32.mrf.mxu0
    %1082 = vdwg.mxu0
    %v1083 = vadd.f32 %v953, %v1080
    %v1084 = vpack.c.bf16 %v1003, %v1003
    %s1085 = scalar_lea.vmem [#allocation12], 256
    %v1086 = vld [vmem:[%s1085] sm:$0xf]
    %v1087 = vld [vmem:[%s1085 + $0x4] sm:$0xf]
    %v1088 = vld [vmem:[%s1085 + $0x8] sm:$0xf]
    %v1089 = vld [vmem:[%s1085 + $0xc] sm:$0xf]
    %v1090 = vld [vmem:[%s1085 + $0x10] sm:$0xf]
    %v1091 = vld [vmem:[%s1085 + $0x14] sm:$0xf]
    %v1092 = vld [vmem:[%s1085 + $0x18] sm:$0xf]
    %v1093 = vld [vmem:[%s1085 + $0x1c] sm:$0xf]
    %v1094 = vld [vmem:[%s1085 + $0x20] sm:$0xf]
    %v1095 = vld [vmem:[%s1085 + $0x24] sm:$0xf]
    %v1096 = vld [vmem:[%s1085 + $0x28] sm:$0xf]
    %v1097 = vld [vmem:[%s1085 + $0x2c] sm:$0xf]
    %v1098 = vld [vmem:[%s1085 + $0x30] sm:$0xf]
    %v1099 = vld [vmem:[%s1085 + $0x34] sm:$0xf]
    %v1100 = vld [vmem:[%s1085 + $0x38] sm:$0xf]
    %v1101 = vld [vmem:[%s1085 + $0x3c] sm:$0xf]
    %v1118 = vunpack.c.l.b16 %v1086
    %v1119 = vunpack.c.l.b16 %v1087
    %v1120 = vunpack.c.l.b16 %v1088
    %v1121 = vunpack.c.l.b16 %v1089
    %v1122 = vunpack.c.l.b16 %v1090
    %v1123 = vunpack.c.l.b16 %v1091
    %v1124 = vunpack.c.l.b16 %v1092
    %v1125 = vunpack.c.l.b16 %v1093
    %v1126 = vunpack.c.l.b16 %v1094
    %v1127 = vunpack.c.l.b16 %v1095
    %v1128 = vunpack.c.l.b16 %v1096
    %v1129 = vunpack.c.l.b16 %v1097
    %v1130 = vunpack.c.l.b16 %v1098
    %v1131 = vunpack.c.l.b16 %v1099
    %v1132 = vunpack.c.l.b16 %v1100
    %v1133 = vunpack.c.l.b16 %v1101
    %v1134 = vpack.c.b16 %v1119, %v1118
    %v1135 = vpack.c.b16 %v1121, %v1120
    %v1136 = vpack.c.b16 %v1123, %v1122
    %v1137 = vpack.c.b16 %v1125, %v1124
    %v1138 = vpack.c.b16 %v1127, %v1126
    %v1139 = vpack.c.b16 %v1129, %v1128
    %v1140 = vpack.c.b16 %v1131, %v1130
    %v1141 = vpack.c.b16 %v1133, %v1132
    %1150 = vmatpush.bf16.msra.mxu0 %v1141
    %1151 = vmatpush.bf16.msra.mxu0 %v1140
    %1152 = vmatpush.bf16.msra.mxu0 %v1139
    %1153 = vmatpush.bf16.msra.mxu0 %v1138
    %1154 = vmatpush.bf16.msra.mxu0 %v1137
    %1155 = vmatpush.bf16.msra.mxu0 %v1136
    %1156 = vmatpush.bf16.msra.mxu0 %v1135
    %1157 = vmatpush.bf16.msra.mxu0 %v1134
    %1158 = vmatmul.bf16.gmra.mxu0 %v1084
    %v1159 = vpop.f32.mrf.mxu0
    %v1160 = vadd.f32 0.0, %v1159
    %v1161 = vpop.f32.mrf.mxu0
    %1162 = vdwg.mxu0
    %v1163 = vadd.f32 %v1083, %v1160
    %s1164 = sld [smem:[#allocation6 + $0x5]]
    %v1165 = vstv %s1164
    %v1166 = vmul.f32 %v1165, %v110
    %s1167 = sld [smem:[#allocation6 + $0x85]]
    %v1168 = vstv %s1167
    %v1169 = vmul.f32 %v1168, %v108
    %v1170 = vadd.f32 %v1166, %v1169
    %s1171 = sld [smem:[#allocation6 + $0x105]]
    %v1172 = vstv %s1171
    %v1173 = vmul.f32 %v1172, %v112
    %v1174 = vadd.f32 %v1170, %v1173
    %s1175 = sld [smem:[#allocation6 + $0x185]]
    %v1176 = vstv %s1175
    %v1177 = vadd.f32 %v1174, %v1176
    %v1178 = vmax.f32 %v1177, 0.0
    %v1179 = vmul.f32 %v1178, %v117
    %1180 = vrot.lane.b32.xlu0 %v1179, 1
    %v1181 = vpop.permute.xlu0 %1180
    %1182 = vrot.lane.b32.xlu0 %v1179, 127
    %v1183 = vpop.permute.xlu0 %1182
    %s1184 = sld [smem:[#allocation7 + $0x5]]
    %v1185 = vstv %s1184
    %v1186 = vmul.f32 %v1185, %v1181
    %s1187 = sld [smem:[#allocation7 + $0x85]]
    %v1188 = vstv %s1187
    %v1189 = vmul.f32 %v1188, %v1179
    %v1190 = vadd.f32 %v1186, %v1189
    %s1191 = sld [smem:[#allocation7 + $0x105]]
    %v1192 = vstv %s1191
    %v1193 = vmul.f32 %v1192, %v1183
    %v1194 = vadd.f32 %v1190, %v1193
    %s1195 = sld [smem:[#allocation7 + $0x185]]
    %v1196 = vstv %s1195
    %v1197 = vadd.f32 %v1194, %v1196
    %v1198 = vmax.f32 %v1197, 0.0
    %s1199 = sld [smem:[#allocation9 + $0x5]]
    %v1200 = vstv %s1199
    %v1201 = vmul.f32 %v1200, %v1181
    %s1202 = sld [smem:[#allocation9 + $0x85]]
    %v1203 = vstv %s1202
    %v1204 = vmul.f32 %v1203, %v1179
    %v1205 = vadd.f32 %v1201, %v1204
    %s1206 = sld [smem:[#allocation9 + $0x105]]
    %v1207 = vstv %s1206
    %v1208 = vmul.f32 %v1207, %v1183
    %v1209 = vadd.f32 %v1205, %v1208
    %s1210 = sld [smem:[#allocation9 + $0x185]]
    %v1211 = vstv %s1210
    %v1212 = vadd.f32 %v1209, %v1211
    %v1213 = vmax.f32 %v1212, 0.0
    %v1214 = vpack.c.bf16 %v1198, %v1198
    %s1215 = scalar_lea.vmem [#allocation10], 320
    %v1216 = vld [vmem:[%s1215] sm:$0xf]
    %v1217 = vld [vmem:[%s1215 + $0x4] sm:$0xf]
    %v1218 = vld [vmem:[%s1215 + $0x8] sm:$0xf]
    %v1219 = vld [vmem:[%s1215 + $0xc] sm:$0xf]
    %v1220 = vld [vmem:[%s1215 + $0x10] sm:$0xf]
    %v1221 = vld [vmem:[%s1215 + $0x14] sm:$0xf]
    %v1222 = vld [vmem:[%s1215 + $0x18] sm:$0xf]
    %v1223 = vld [vmem:[%s1215 + $0x1c] sm:$0xf]
    %v1224 = vld [vmem:[%s1215 + $0x20] sm:$0xf]
    %v1225 = vld [vmem:[%s1215 + $0x24] sm:$0xf]
    %v1226 = vld [vmem:[%s1215 + $0x28] sm:$0xf]
    %v1227 = vld [vmem:[%s1215 + $0x2c] sm:$0xf]
    %v1228 = vld [vmem:[%s1215 + $0x30] sm:$0xf]
    %v1229 = vld [vmem:[%s1215 + $0x34] sm:$0xf]
    %v1230 = vld [vmem:[%s1215 + $0x38] sm:$0xf]
    %v1231 = vld [vmem:[%s1215 + $0x3c] sm:$0xf]
    %v1248 = vunpack.c.l.b16 %v1216
    %v1249 = vunpack.c.l.b16 %v1217
    %v1250 = vunpack.c.l.b16 %v1218
    %v1251 = vunpack.c.l.b16 %v1219
    %v1252 = vunpack.c.l.b16 %v1220
    %v1253 = vunpack.c.l.b16 %v1221
    %v1254 = vunpack.c.l.b16 %v1222
    %v1255 = vunpack.c.l.b16 %v1223
    %v1256 = vunpack.c.l.b16 %v1224
    %v1257 = vunpack.c.l.b16 %v1225
    %v1258 = vunpack.c.l.b16 %v1226
    %v1259 = vunpack.c.l.b16 %v1227
    %v1260 = vunpack.c.l.b16 %v1228
    %v1261 = vunpack.c.l.b16 %v1229
    %v1262 = vunpack.c.l.b16 %v1230
    %v1263 = vunpack.c.l.b16 %v1231
    %v1264 = vpack.c.b16 %v1249, %v1248
    %v1265 = vpack.c.b16 %v1251, %v1250
    %v1266 = vpack.c.b16 %v1253, %v1252
    %v1267 = vpack.c.b16 %v1255, %v1254
    %v1268 = vpack.c.b16 %v1257, %v1256
    %v1269 = vpack.c.b16 %v1259, %v1258
    %v1270 = vpack.c.b16 %v1261, %v1260
    %v1271 = vpack.c.b16 %v1263, %v1262
    %1280 = vmatpush.bf16.msra.mxu0 %v1271
    %1281 = vmatpush.bf16.msra.mxu0 %v1270
    %1282 = vmatpush.bf16.msra.mxu0 %v1269
    %1283 = vmatpush.bf16.msra.mxu0 %v1268
    %1284 = vmatpush.bf16.msra.mxu0 %v1267
    %1285 = vmatpush.bf16.msra.mxu0 %v1266
    %1286 = vmatpush.bf16.msra.mxu0 %v1265
    %1287 = vmatpush.bf16.msra.mxu0 %v1264
    %1288 = vmatmul.bf16.gmra.mxu0 %v1214
    %v1289 = vpop.f32.mrf.mxu0
    %v1290 = vadd.f32 0.0, %v1289
    %v1291 = vpop.f32.mrf.mxu0
    %1292 = vdwg.mxu0
    %v1293 = vadd.f32 %v1163, %v1290
    %v1294 = vpack.c.bf16 %v1213, %v1213
    %s1295 = scalar_lea.vmem [#allocation12], 320
    %v1296 = vld [vmem:[%s1295] sm:$0xf]
    %v1297 = vld [vmem:[%s1295 + $0x4] sm:$0xf]
    %v1298 = vld [vmem:[%s1295 + $0x8] sm:$0xf]
    %v1299 = vld [vmem:[%s1295 + $0xc] sm:$0xf]
    %v1300 = vld [vmem:[%s1295 + $0x10] sm:$0xf]
    %v1301 = vld [vmem:[%s1295 + $0x14] sm:$0xf]
    %v1302 = vld [vmem:[%s1295 + $0x18] sm:$0xf]
    %v1303 = vld [vmem:[%s1295 + $0x1c] sm:$0xf]
    %v1304 = vld [vmem:[%s1295 + $0x20] sm:$0xf]
    %v1305 = vld [vmem:[%s1295 + $0x24] sm:$0xf]
    %v1306 = vld [vmem:[%s1295 + $0x28] sm:$0xf]
    %v1307 = vld [vmem:[%s1295 + $0x2c] sm:$0xf]
    %v1308 = vld [vmem:[%s1295 + $0x30] sm:$0xf]
    %v1309 = vld [vmem:[%s1295 + $0x34] sm:$0xf]
    %v1310 = vld [vmem:[%s1295 + $0x38] sm:$0xf]
    %v1311 = vld [vmem:[%s1295 + $0x3c] sm:$0xf]
    %v1328 = vunpack.c.l.b16 %v1296
    %v1329 = vunpack.c.l.b16 %v1297
    %v1330 = vunpack.c.l.b16 %v1298
    %v1331 = vunpack.c.l.b16 %v1299
    %v1332 = vunpack.c.l.b16 %v1300
    %v1333 = vunpack.c.l.b16 %v1301
    %v1334 = vunpack.c.l.b16 %v1302
    %v1335 = vunpack.c.l.b16 %v1303
    %v1336 = vunpack.c.l.b16 %v1304
    %v1337 = vunpack.c.l.b16 %v1305
    %v1338 = vunpack.c.l.b16 %v1306
    %v1339 = vunpack.c.l.b16 %v1307
    %v1340 = vunpack.c.l.b16 %v1308
    %v1341 = vunpack.c.l.b16 %v1309
    %v1342 = vunpack.c.l.b16 %v1310
    %v1343 = vunpack.c.l.b16 %v1311
    %v1344 = vpack.c.b16 %v1329, %v1328
    %v1345 = vpack.c.b16 %v1331, %v1330
    %v1346 = vpack.c.b16 %v1333, %v1332
    %v1347 = vpack.c.b16 %v1335, %v1334
    %v1348 = vpack.c.b16 %v1337, %v1336
    %v1349 = vpack.c.b16 %v1339, %v1338
    %v1350 = vpack.c.b16 %v1341, %v1340
    %v1351 = vpack.c.b16 %v1343, %v1342
    %1360 = vmatpush.bf16.msra.mxu0 %v1351
    %1361 = vmatpush.bf16.msra.mxu0 %v1350
    %1362 = vmatpush.bf16.msra.mxu0 %v1349
    %1363 = vmatpush.bf16.msra.mxu0 %v1348
    %1364 = vmatpush.bf16.msra.mxu0 %v1347
    %1365 = vmatpush.bf16.msra.mxu0 %v1346
    %1366 = vmatpush.bf16.msra.mxu0 %v1345
    %1367 = vmatpush.bf16.msra.mxu0 %v1344
    %1368 = vmatmul.bf16.gmra.mxu0 %v1294
    %v1369 = vpop.f32.mrf.mxu0
    %v1370 = vadd.f32 0.0, %v1369
    %v1371 = vpop.f32.mrf.mxu0
    %1372 = vdwg.mxu0
    %v1373 = vadd.f32 %v1293, %v1370
    %s1374 = sld [smem:[#allocation6 + $0x6]]
    %v1375 = vstv %s1374
    %v1376 = vmul.f32 %v1375, %v110
    %s1377 = sld [smem:[#allocation6 + $0x86]]
    %v1378 = vstv %s1377
    %v1379 = vmul.f32 %v1378, %v108
    %v1380 = vadd.f32 %v1376, %v1379
    %s1381 = sld [smem:[#allocation6 + $0x106]]
    %v1382 = vstv %s1381
    %v1383 = vmul.f32 %v1382, %v112
    %v1384 = vadd.f32 %v1380, %v1383
    %s1385 = sld [smem:[#allocation6 + $0x186]]
    %v1386 = vstv %s1385
    %v1387 = vadd.f32 %v1384, %v1386
    %v1388 = vmax.f32 %v1387, 0.0
    %v1389 = vmul.f32 %v1388, %v117
    %1390 = vrot.lane.b32.xlu0 %v1389, 1
    %v1391 = vpop.permute.xlu0 %1390
    %1392 = vrot.lane.b32.xlu0 %v1389, 127
    %v1393 = vpop.permute.xlu0 %1392
    %s1394 = sld [smem:[#allocation7 + $0x6]]
    %v1395 = vstv %s1394
    %v1396 = vmul.f32 %v1395, %v1391
    %s1397 = sld [smem:[#allocation7 + $0x86]]
    %v1398 = vstv %s1397
    %v1399 = vmul.f32 %v1398, %v1389
    %v1400 = vadd.f32 %v1396, %v1399
    %s1401 = sld [smem:[#allocation7 + $0x106]]
    %v1402 = vstv %s1401
    %v1403 = vmul.f32 %v1402, %v1393
    %v1404 = vadd.f32 %v1400, %v1403
    %s1405 = sld [smem:[#allocation7 + $0x186]]
    %v1406 = vstv %s1405
    %v1407 = vadd.f32 %v1404, %v1406
    %v1408 = vmax.f32 %v1407, 0.0
    %s1409 = sld [smem:[#allocation9 + $0x6]]
    %v1410 = vstv %s1409
    %v1411 = vmul.f32 %v1410, %v1391
    %s1412 = sld [smem:[#allocation9 + $0x86]]
    %v1413 = vstv %s1412
    %v1414 = vmul.f32 %v1413, %v1389
    %v1415 = vadd.f32 %v1411, %v1414
    %s1416 = sld [smem:[#allocation9 + $0x106]]
    %v1417 = vstv %s1416
    %v1418 = vmul.f32 %v1417, %v1393
    %v1419 = vadd.f32 %v1415, %v1418
    %s1420 = sld [smem:[#allocation9 + $0x186]]
    %v1421 = vstv %s1420
    %v1422 = vadd.f32 %v1419, %v1421
    %v1423 = vmax.f32 %v1422, 0.0
    %v1424 = vpack.c.bf16 %v1408, %v1408
    %s1425 = scalar_lea.vmem [#allocation10], 384
    %v1426 = vld [vmem:[%s1425] sm:$0xf]
    %v1427 = vld [vmem:[%s1425 + $0x4] sm:$0xf]
    %v1428 = vld [vmem:[%s1425 + $0x8] sm:$0xf]
    %v1429 = vld [vmem:[%s1425 + $0xc] sm:$0xf]
    %v1430 = vld [vmem:[%s1425 + $0x10] sm:$0xf]
    %v1431 = vld [vmem:[%s1425 + $0x14] sm:$0xf]
    %v1432 = vld [vmem:[%s1425 + $0x18] sm:$0xf]
    %v1433 = vld [vmem:[%s1425 + $0x1c] sm:$0xf]
    %v1434 = vld [vmem:[%s1425 + $0x20] sm:$0xf]
    %v1435 = vld [vmem:[%s1425 + $0x24] sm:$0xf]
    %v1436 = vld [vmem:[%s1425 + $0x28] sm:$0xf]
    %v1437 = vld [vmem:[%s1425 + $0x2c] sm:$0xf]
    %v1438 = vld [vmem:[%s1425 + $0x30] sm:$0xf]
    %v1439 = vld [vmem:[%s1425 + $0x34] sm:$0xf]
    %v1440 = vld [vmem:[%s1425 + $0x38] sm:$0xf]
    %v1441 = vld [vmem:[%s1425 + $0x3c] sm:$0xf]
    %v1458 = vunpack.c.l.b16 %v1426
    %v1459 = vunpack.c.l.b16 %v1427
    %v1460 = vunpack.c.l.b16 %v1428
    %v1461 = vunpack.c.l.b16 %v1429
    %v1462 = vunpack.c.l.b16 %v1430
    %v1463 = vunpack.c.l.b16 %v1431
    %v1464 = vunpack.c.l.b16 %v1432
    %v1465 = vunpack.c.l.b16 %v1433
    %v1466 = vunpack.c.l.b16 %v1434
    %v1467 = vunpack.c.l.b16 %v1435
    %v1468 = vunpack.c.l.b16 %v1436
    %v1469 = vunpack.c.l.b16 %v1437
    %v1470 = vunpack.c.l.b16 %v1438
    %v1471 = vunpack.c.l.b16 %v1439
    %v1472 = vunpack.c.l.b16 %v1440
    %v1473 = vunpack.c.l.b16 %v1441
    %v1474 = vpack.c.b16 %v1459, %v1458
    %v1475 = vpack.c.b16 %v1461, %v1460
    %v1476 = vpack.c.b16 %v1463, %v1462
    %v1477 = vpack.c.b16 %v1465, %v1464
    %v1478 = vpack.c.b16 %v1467, %v1466
    %v1479 = vpack.c.b16 %v1469, %v1468
    %v1480 = vpack.c.b16 %v1471, %v1470
    %v1481 = vpack.c.b16 %v1473, %v1472
    %1490 = vmatpush.bf16.msra.mxu0 %v1481
    %1491 = vmatpush.bf16.msra.mxu0 %v1480
    %1492 = vmatpush.bf16.msra.mxu0 %v1479
    %1493 = vmatpush.bf16.msra.mxu0 %v1478
    %1494 = vmatpush.bf16.msra.mxu0 %v1477
    %1495 = vmatpush.bf16.msra.mxu0 %v1476
    %1496 = vmatpush.bf16.msra.mxu0 %v1475
    %1497 = vmatpush.bf16.msra.mxu0 %v1474
    %1498 = vmatmul.bf16.gmra.mxu0 %v1424
    %v1499 = vpop.f32.mrf.mxu0
    %v1500 = vadd.f32 0.0, %v1499
    %v1501 = vpop.f32.mrf.mxu0
    %1502 = vdwg.mxu0
    %v1503 = vadd.f32 %v1373, %v1500
    %v1504 = vpack.c.bf16 %v1423, %v1423
    %s1505 = scalar_lea.vmem [#allocation12], 384
    %v1506 = vld [vmem:[%s1505] sm:$0xf]
    %v1507 = vld [vmem:[%s1505 + $0x4] sm:$0xf]
    %v1508 = vld [vmem:[%s1505 + $0x8] sm:$0xf]
    %v1509 = vld [vmem:[%s1505 + $0xc] sm:$0xf]
    %v1510 = vld [vmem:[%s1505 + $0x10] sm:$0xf]
    %v1511 = vld [vmem:[%s1505 + $0x14] sm:$0xf]
    %v1512 = vld [vmem:[%s1505 + $0x18] sm:$0xf]
    %v1513 = vld [vmem:[%s1505 + $0x1c] sm:$0xf]
    %v1514 = vld [vmem:[%s1505 + $0x20] sm:$0xf]
    %v1515 = vld [vmem:[%s1505 + $0x24] sm:$0xf]
    %v1516 = vld [vmem:[%s1505 + $0x28] sm:$0xf]
    %v1517 = vld [vmem:[%s1505 + $0x2c] sm:$0xf]
    %v1518 = vld [vmem:[%s1505 + $0x30] sm:$0xf]
    %v1519 = vld [vmem:[%s1505 + $0x34] sm:$0xf]
    %v1520 = vld [vmem:[%s1505 + $0x38] sm:$0xf]
    %v1521 = vld [vmem:[%s1505 + $0x3c] sm:$0xf]
    %v1538 = vunpack.c.l.b16 %v1506
    %v1539 = vunpack.c.l.b16 %v1507
    %v1540 = vunpack.c.l.b16 %v1508
    %v1541 = vunpack.c.l.b16 %v1509
    %v1542 = vunpack.c.l.b16 %v1510
    %v1543 = vunpack.c.l.b16 %v1511
    %v1544 = vunpack.c.l.b16 %v1512
    %v1545 = vunpack.c.l.b16 %v1513
    %v1546 = vunpack.c.l.b16 %v1514
    %v1547 = vunpack.c.l.b16 %v1515
    %v1548 = vunpack.c.l.b16 %v1516
    %v1549 = vunpack.c.l.b16 %v1517
    %v1550 = vunpack.c.l.b16 %v1518
    %v1551 = vunpack.c.l.b16 %v1519
    %v1552 = vunpack.c.l.b16 %v1520
    %v1553 = vunpack.c.l.b16 %v1521
    %v1554 = vpack.c.b16 %v1539, %v1538
    %v1555 = vpack.c.b16 %v1541, %v1540
    %v1556 = vpack.c.b16 %v1543, %v1542
    %v1557 = vpack.c.b16 %v1545, %v1544
    %v1558 = vpack.c.b16 %v1547, %v1546
    %v1559 = vpack.c.b16 %v1549, %v1548
    %v1560 = vpack.c.b16 %v1551, %v1550
    %v1561 = vpack.c.b16 %v1553, %v1552
    %1570 = vmatpush.bf16.msra.mxu0 %v1561
    %1571 = vmatpush.bf16.msra.mxu0 %v1560
    %1572 = vmatpush.bf16.msra.mxu0 %v1559
    %1573 = vmatpush.bf16.msra.mxu0 %v1558
    %1574 = vmatpush.bf16.msra.mxu0 %v1557
    %1575 = vmatpush.bf16.msra.mxu0 %v1556
    %1576 = vmatpush.bf16.msra.mxu0 %v1555
    %1577 = vmatpush.bf16.msra.mxu0 %v1554
    %1578 = vmatmul.bf16.gmra.mxu0 %v1504
    %v1579 = vpop.f32.mrf.mxu0
    %v1580 = vadd.f32 0.0, %v1579
    %v1581 = vpop.f32.mrf.mxu0
    %1582 = vdwg.mxu0
    %v1583 = vadd.f32 %v1503, %v1580
    %s1584 = sld [smem:[#allocation6 + $0x7]]
    %v1585 = vstv %s1584
    %v1586 = vmul.f32 %v1585, %v110
    %s1587 = sld [smem:[#allocation6 + $0x87]]
    %v1588 = vstv %s1587
    %v1589 = vmul.f32 %v1588, %v108
    %v1590 = vadd.f32 %v1586, %v1589
    %s1591 = sld [smem:[#allocation6 + $0x107]]
    %v1592 = vstv %s1591
    %v1593 = vmul.f32 %v1592, %v112
    %v1594 = vadd.f32 %v1590, %v1593
    %s1595 = sld [smem:[#allocation6 + $0x187]]
    %v1596 = vstv %s1595
    %v1597 = vadd.f32 %v1594, %v1596
    %v1598 = vmax.f32 %v1597, 0.0
    %v1599 = vmul.f32 %v1598, %v117
    %1600 = vrot.lane.b32.xlu0 %v1599, 1
    %v1601 = vpop.permute.xlu0 %1600
    %1602 = vrot.lane.b32.xlu0 %v1599, 127
    %v1603 = vpop.permute.xlu0 %1602
    %s1604 = sld [smem:[#allocation7 + $0x7]]
    %v1605 = vstv %s1604
    %v1606 = vmul.f32 %v1605, %v1601
    %s1607 = sld [smem:[#allocation7 + $0x87]]
    %v1608 = vstv %s1607
    %v1609 = vmul.f32 %v1608, %v1599
    %v1610 = vadd.f32 %v1606, %v1609
    %s1611 = sld [smem:[#allocation7 + $0x107]]
    %v1612 = vstv %s1611
    %v1613 = vmul.f32 %v1612, %v1603
    %v1614 = vadd.f32 %v1610, %v1613
    %s1615 = sld [smem:[#allocation7 + $0x187]]
    %v1616 = vstv %s1615
    %v1617 = vadd.f32 %v1614, %v1616
    %v1618 = vmax.f32 %v1617, 0.0
    %s1619 = sld [smem:[#allocation9 + $0x7]]
    %v1620 = vstv %s1619
    %v1621 = vmul.f32 %v1620, %v1601
    %s1622 = sld [smem:[#allocation9 + $0x87]]
    %v1623 = vstv %s1622
    %v1624 = vmul.f32 %v1623, %v1599
    %v1625 = vadd.f32 %v1621, %v1624
    %s1626 = sld [smem:[#allocation9 + $0x107]]
    %v1627 = vstv %s1626
    %v1628 = vmul.f32 %v1627, %v1603
    %v1629 = vadd.f32 %v1625, %v1628
    %s1630 = sld [smem:[#allocation9 + $0x187]]
    %v1631 = vstv %s1630
    %v1632 = vadd.f32 %v1629, %v1631
    %v1633 = vmax.f32 %v1632, 0.0
    %v1634 = vpack.c.bf16 %v1618, %v1618
    %s1635 = scalar_lea.vmem [#allocation10], 448
    %v1636 = vld [vmem:[%s1635] sm:$0xf]
    %v1637 = vld [vmem:[%s1635 + $0x4] sm:$0xf]
    %v1638 = vld [vmem:[%s1635 + $0x8] sm:$0xf]
    %v1639 = vld [vmem:[%s1635 + $0xc] sm:$0xf]
    %v1640 = vld [vmem:[%s1635 + $0x10] sm:$0xf]
    %v1641 = vld [vmem:[%s1635 + $0x14] sm:$0xf]
    %v1642 = vld [vmem:[%s1635 + $0x18] sm:$0xf]
    %v1643 = vld [vmem:[%s1635 + $0x1c] sm:$0xf]
    %v1644 = vld [vmem:[%s1635 + $0x20] sm:$0xf]
    %v1645 = vld [vmem:[%s1635 + $0x24] sm:$0xf]
    %v1646 = vld [vmem:[%s1635 + $0x28] sm:$0xf]
    %v1647 = vld [vmem:[%s1635 + $0x2c] sm:$0xf]
    %v1648 = vld [vmem:[%s1635 + $0x30] sm:$0xf]
    %v1649 = vld [vmem:[%s1635 + $0x34] sm:$0xf]
    %v1650 = vld [vmem:[%s1635 + $0x38] sm:$0xf]
    %v1651 = vld [vmem:[%s1635 + $0x3c] sm:$0xf]
    %v1668 = vunpack.c.l.b16 %v1636
    %v1669 = vunpack.c.l.b16 %v1637
    %v1670 = vunpack.c.l.b16 %v1638
    %v1671 = vunpack.c.l.b16 %v1639
    %v1672 = vunpack.c.l.b16 %v1640
    %v1673 = vunpack.c.l.b16 %v1641
    %v1674 = vunpack.c.l.b16 %v1642
    %v1675 = vunpack.c.l.b16 %v1643
    %v1676 = vunpack.c.l.b16 %v1644
    %v1677 = vunpack.c.l.b16 %v1645
    %v1678 = vunpack.c.l.b16 %v1646
    %v1679 = vunpack.c.l.b16 %v1647
    %v1680 = vunpack.c.l.b16 %v1648
    %v1681 = vunpack.c.l.b16 %v1649
    %v1682 = vunpack.c.l.b16 %v1650
    %v1683 = vunpack.c.l.b16 %v1651
    %v1684 = vpack.c.b16 %v1669, %v1668
    %v1685 = vpack.c.b16 %v1671, %v1670
    %v1686 = vpack.c.b16 %v1673, %v1672
    %v1687 = vpack.c.b16 %v1675, %v1674
    %v1688 = vpack.c.b16 %v1677, %v1676
    %v1689 = vpack.c.b16 %v1679, %v1678
    %v1690 = vpack.c.b16 %v1681, %v1680
    %v1691 = vpack.c.b16 %v1683, %v1682
    %1700 = vmatpush.bf16.msra.mxu0 %v1691
    %1701 = vmatpush.bf16.msra.mxu0 %v1690
    %1702 = vmatpush.bf16.msra.mxu0 %v1689
    %1703 = vmatpush.bf16.msra.mxu0 %v1688
    %1704 = vmatpush.bf16.msra.mxu0 %v1687
    %1705 = vmatpush.bf16.msra.mxu0 %v1686
    %1706 = vmatpush.bf16.msra.mxu0 %v1685
    %1707 = vmatpush.bf16.msra.mxu0 %v1684
    %1708 = vmatmul.bf16.gmra.mxu0 %v1634
    %v1709 = vpop.f32.mrf.mxu0
    %v1710 = vadd.f32 0.0, %v1709
    %v1711 = vpop.f32.mrf.mxu0
    %1712 = vdwg.mxu0
    %v1713 = vadd.f32 %v1583, %v1710
    %v1714 = vpack.c.bf16 %v1633, %v1633
    %s1715 = scalar_lea.vmem [#allocation12], 448
    %v1716 = vld [vmem:[%s1715] sm:$0xf]
    %v1717 = vld [vmem:[%s1715 + $0x4] sm:$0xf]
    %v1718 = vld [vmem:[%s1715 + $0x8] sm:$0xf]
    %v1719 = vld [vmem:[%s1715 + $0xc] sm:$0xf]
    %v1720 = vld [vmem:[%s1715 + $0x10] sm:$0xf]
    %v1721 = vld [vmem:[%s1715 + $0x14] sm:$0xf]
    %v1722 = vld [vmem:[%s1715 + $0x18] sm:$0xf]
    %v1723 = vld [vmem:[%s1715 + $0x1c] sm:$0xf]
    %v1724 = vld [vmem:[%s1715 + $0x20] sm:$0xf]
    %v1725 = vld [vmem:[%s1715 + $0x24] sm:$0xf]
    %v1726 = vld [vmem:[%s1715 + $0x28] sm:$0xf]
    %v1727 = vld [vmem:[%s1715 + $0x2c] sm:$0xf]
    %v1728 = vld [vmem:[%s1715 + $0x30] sm:$0xf]
    %v1729 = vld [vmem:[%s1715 + $0x34] sm:$0xf]
    %v1730 = vld [vmem:[%s1715 + $0x38] sm:$0xf]
    %v1731 = vld [vmem:[%s1715 + $0x3c] sm:$0xf]
    %v1748 = vunpack.c.l.b16 %v1716
    %v1749 = vunpack.c.l.b16 %v1717
    %v1750 = vunpack.c.l.b16 %v1718
    %v1751 = vunpack.c.l.b16 %v1719
    %v1752 = vunpack.c.l.b16 %v1720
    %v1753 = vunpack.c.l.b16 %v1721
    %v1754 = vunpack.c.l.b16 %v1722
    %v1755 = vunpack.c.l.b16 %v1723
    %v1756 = vunpack.c.l.b16 %v1724
    %v1757 = vunpack.c.l.b16 %v1725
    %v1758 = vunpack.c.l.b16 %v1726
    %v1759 = vunpack.c.l.b16 %v1727
    %v1760 = vunpack.c.l.b16 %v1728
    %v1761 = vunpack.c.l.b16 %v1729
    %v1762 = vunpack.c.l.b16 %v1730
    %v1763 = vunpack.c.l.b16 %v1731
    %v1764 = vpack.c.b16 %v1749, %v1748
    %v1765 = vpack.c.b16 %v1751, %v1750
    %v1766 = vpack.c.b16 %v1753, %v1752
    %v1767 = vpack.c.b16 %v1755, %v1754
    %v1768 = vpack.c.b16 %v1757, %v1756
    %v1769 = vpack.c.b16 %v1759, %v1758
    %v1770 = vpack.c.b16 %v1761, %v1760
    %v1771 = vpack.c.b16 %v1763, %v1762
    %1780 = vmatpush.bf16.msra.mxu0 %v1771
    %1781 = vmatpush.bf16.msra.mxu0 %v1770
    %1782 = vmatpush.bf16.msra.mxu0 %v1769
    %1783 = vmatpush.bf16.msra.mxu0 %v1768
    %1784 = vmatpush.bf16.msra.mxu0 %v1767
    %1785 = vmatpush.bf16.msra.mxu0 %v1766
    %1786 = vmatpush.bf16.msra.mxu0 %v1765
    %1787 = vmatpush.bf16.msra.mxu0 %v1764
    %1788 = vmatmul.bf16.gmra.mxu0 %v1714
    %v1789 = vpop.f32.mrf.mxu0
    %v1790 = vadd.f32 0.0, %v1789
    %v1791 = vpop.f32.mrf.mxu0
    %1792 = vdwg.mxu0
    %v1793 = vadd.f32 %v1713, %v1790
    %s1794 = sld [smem:[#allocation6 + $0x8]]
    %v1795 = vstv %s1794
    %v1796 = vmul.f32 %v1795, %v110
    %s1797 = sld [smem:[#allocation6 + $0x88]]
    %v1798 = vstv %s1797
    %v1799 = vmul.f32 %v1798, %v108
    %v1800 = vadd.f32 %v1796, %v1799
    %s1801 = sld [smem:[#allocation6 + $0x108]]
    %v1802 = vstv %s1801
    %v1803 = vmul.f32 %v1802, %v112
    %v1804 = vadd.f32 %v1800, %v1803
    %s1805 = sld [smem:[#allocation6 + $0x188]]
    %v1806 = vstv %s1805
    %v1807 = vadd.f32 %v1804, %v1806
    %v1808 = vmax.f32 %v1807, 0.0
    %v1809 = vmul.f32 %v1808, %v117
    %1810 = vrot.lane.b32.xlu0 %v1809, 1
    %v1811 = vpop.permute.xlu0 %1810
    %1812 = vrot.lane.b32.xlu0 %v1809, 127
    %v1813 = vpop.permute.xlu0 %1812
    %s1814 = sld [smem:[#allocation7 + $0x8]]
    %v1815 = vstv %s1814
    %v1816 = vmul.f32 %v1815, %v1811
    %s1817 = sld [smem:[#allocation7 + $0x88]]
    %v1818 = vstv %s1817
    %v1819 = vmul.f32 %v1818, %v1809
    %v1820 = vadd.f32 %v1816, %v1819
    %s1821 = sld [smem:[#allocation7 + $0x108]]
    %v1822 = vstv %s1821
    %v1823 = vmul.f32 %v1822, %v1813
    %v1824 = vadd.f32 %v1820, %v1823
    %s1825 = sld [smem:[#allocation7 + $0x188]]
    %v1826 = vstv %s1825
    %v1827 = vadd.f32 %v1824, %v1826
    %v1828 = vmax.f32 %v1827, 0.0
    %s1829 = sld [smem:[#allocation9 + $0x8]]
    %v1830 = vstv %s1829
    %v1831 = vmul.f32 %v1830, %v1811
    %s1832 = sld [smem:[#allocation9 + $0x88]]
    %v1833 = vstv %s1832
    %v1834 = vmul.f32 %v1833, %v1809
    %v1835 = vadd.f32 %v1831, %v1834
    %s1836 = sld [smem:[#allocation9 + $0x108]]
    %v1837 = vstv %s1836
    %v1838 = vmul.f32 %v1837, %v1813
    %v1839 = vadd.f32 %v1835, %v1838
    %s1840 = sld [smem:[#allocation9 + $0x188]]
    %v1841 = vstv %s1840
    %v1842 = vadd.f32 %v1839, %v1841
    %v1843 = vmax.f32 %v1842, 0.0
    %v1844 = vpack.c.bf16 %v1828, %v1828
    %s1845 = scalar_lea.vmem [#allocation10], 512
    %v1846 = vld [vmem:[%s1845] sm:$0xf]
    %v1847 = vld [vmem:[%s1845 + $0x4] sm:$0xf]
    %v1848 = vld [vmem:[%s1845 + $0x8] sm:$0xf]
    %v1849 = vld [vmem:[%s1845 + $0xc] sm:$0xf]
    %v1850 = vld [vmem:[%s1845 + $0x10] sm:$0xf]
    %v1851 = vld [vmem:[%s1845 + $0x14] sm:$0xf]
    %v1852 = vld [vmem:[%s1845 + $0x18] sm:$0xf]
    %v1853 = vld [vmem:[%s1845 + $0x1c] sm:$0xf]
    %v1854 = vld [vmem:[%s1845 + $0x20] sm:$0xf]
    %v1855 = vld [vmem:[%s1845 + $0x24] sm:$0xf]
    %v1856 = vld [vmem:[%s1845 + $0x28] sm:$0xf]
    %v1857 = vld [vmem:[%s1845 + $0x2c] sm:$0xf]
    %v1858 = vld [vmem:[%s1845 + $0x30] sm:$0xf]
    %v1859 = vld [vmem:[%s1845 + $0x34] sm:$0xf]
    %v1860 = vld [vmem:[%s1845 + $0x38] sm:$0xf]
    %v1861 = vld [vmem:[%s1845 + $0x3c] sm:$0xf]
    %v1878 = vunpack.c.l.b16 %v1846
    %v1879 = vunpack.c.l.b16 %v1847
    %v1880 = vunpack.c.l.b16 %v1848
    %v1881 = vunpack.c.l.b16 %v1849
    %v1882 = vunpack.c.l.b16 %v1850
    %v1883 = vunpack.c.l.b16 %v1851
    %v1884 = vunpack.c.l.b16 %v1852
    %v1885 = vunpack.c.l.b16 %v1853
    %v1886 = vunpack.c.l.b16 %v1854
    %v1887 = vunpack.c.l.b16 %v1855
    %v1888 = vunpack.c.l.b16 %v1856
    %v1889 = vunpack.c.l.b16 %v1857
    %v1890 = vunpack.c.l.b16 %v1858
    %v1891 = vunpack.c.l.b16 %v1859
    %v1892 = vunpack.c.l.b16 %v1860
    %v1893 = vunpack.c.l.b16 %v1861
    %v1894 = vpack.c.b16 %v1879, %v1878
    %v1895 = vpack.c.b16 %v1881, %v1880
    %v1896 = vpack.c.b16 %v1883, %v1882
    %v1897 = vpack.c.b16 %v1885, %v1884
    %v1898 = vpack.c.b16 %v1887, %v1886
    %v1899 = vpack.c.b16 %v1889, %v1888
    %v1900 = vpack.c.b16 %v1891, %v1890
    %v1901 = vpack.c.b16 %v1893, %v1892
    %1910 = vmatpush.bf16.msra.mxu0 %v1901
    %1911 = vmatpush.bf16.msra.mxu0 %v1900
    %1912 = vmatpush.bf16.msra.mxu0 %v1899
    %1913 = vmatpush.bf16.msra.mxu0 %v1898
    %1914 = vmatpush.bf16.msra.mxu0 %v1897
    %1915 = vmatpush.bf16.msra.mxu0 %v1896
    %1916 = vmatpush.bf16.msra.mxu0 %v1895
    %1917 = vmatpush.bf16.msra.mxu0 %v1894
    %1918 = vmatmul.bf16.gmra.mxu0 %v1844
    %v1919 = vpop.f32.mrf.mxu0
    %v1920 = vadd.f32 0.0, %v1919
    %v1921 = vpop.f32.mrf.mxu0
    %1922 = vdwg.mxu0
    %v1923 = vadd.f32 %v1793, %v1920
    %v1924 = vpack.c.bf16 %v1843, %v1843
    %s1925 = scalar_lea.vmem [#allocation12], 512
    %v1926 = vld [vmem:[%s1925] sm:$0xf]
    %v1927 = vld [vmem:[%s1925 + $0x4] sm:$0xf]
    %v1928 = vld [vmem:[%s1925 + $0x8] sm:$0xf]
    %v1929 = vld [vmem:[%s1925 + $0xc] sm:$0xf]
    %v1930 = vld [vmem:[%s1925 + $0x10] sm:$0xf]
    %v1931 = vld [vmem:[%s1925 + $0x14] sm:$0xf]
    %v1932 = vld [vmem:[%s1925 + $0x18] sm:$0xf]
    %v1933 = vld [vmem:[%s1925 + $0x1c] sm:$0xf]
    %v1934 = vld [vmem:[%s1925 + $0x20] sm:$0xf]
    %v1935 = vld [vmem:[%s1925 + $0x24] sm:$0xf]
    %v1936 = vld [vmem:[%s1925 + $0x28] sm:$0xf]
    %v1937 = vld [vmem:[%s1925 + $0x2c] sm:$0xf]
    %v1938 = vld [vmem:[%s1925 + $0x30] sm:$0xf]
    %v1939 = vld [vmem:[%s1925 + $0x34] sm:$0xf]
    %v1940 = vld [vmem:[%s1925 + $0x38] sm:$0xf]
    %v1941 = vld [vmem:[%s1925 + $0x3c] sm:$0xf]
    %v1958 = vunpack.c.l.b16 %v1926
    %v1959 = vunpack.c.l.b16 %v1927
    %v1960 = vunpack.c.l.b16 %v1928
    %v1961 = vunpack.c.l.b16 %v1929
    %v1962 = vunpack.c.l.b16 %v1930
    %v1963 = vunpack.c.l.b16 %v1931
    %v1964 = vunpack.c.l.b16 %v1932
    %v1965 = vunpack.c.l.b16 %v1933
    %v1966 = vunpack.c.l.b16 %v1934
    %v1967 = vunpack.c.l.b16 %v1935
    %v1968 = vunpack.c.l.b16 %v1936
    %v1969 = vunpack.c.l.b16 %v1937
    %v1970 = vunpack.c.l.b16 %v1938
    %v1971 = vunpack.c.l.b16 %v1939
    %v1972 = vunpack.c.l.b16 %v1940
    %v1973 = vunpack.c.l.b16 %v1941
    %v1974 = vpack.c.b16 %v1959, %v1958
    %v1975 = vpack.c.b16 %v1961, %v1960
    %v1976 = vpack.c.b16 %v1963, %v1962
    %v1977 = vpack.c.b16 %v1965, %v1964
    %v1978 = vpack.c.b16 %v1967, %v1966
    %v1979 = vpack.c.b16 %v1969, %v1968
    %v1980 = vpack.c.b16 %v1971, %v1970
    %v1981 = vpack.c.b16 %v1973, %v1972
    %1990 = vmatpush.bf16.msra.mxu0 %v1981
    %1991 = vmatpush.bf16.msra.mxu0 %v1980
    %1992 = vmatpush.bf16.msra.mxu0 %v1979
    %1993 = vmatpush.bf16.msra.mxu0 %v1978
    %1994 = vmatpush.bf16.msra.mxu0 %v1977
    %1995 = vmatpush.bf16.msra.mxu0 %v1976
    %1996 = vmatpush.bf16.msra.mxu0 %v1975
    %1997 = vmatpush.bf16.msra.mxu0 %v1974
    %1998 = vmatmul.bf16.gmra.mxu0 %v1924
    %v1999 = vpop.f32.mrf.mxu0
    %v2000 = vadd.f32 0.0, %v1999
    %v2001 = vpop.f32.mrf.mxu0
    %2002 = vdwg.mxu0
    %v2003 = vadd.f32 %v1923, %v2000
    %s2004 = sld [smem:[#allocation6 + $0x9]]
    %v2005 = vstv %s2004
    %v2006 = vmul.f32 %v2005, %v110
    %s2007 = sld [smem:[#allocation6 + $0x89]]
    %v2008 = vstv %s2007
    %v2009 = vmul.f32 %v2008, %v108
    %v2010 = vadd.f32 %v2006, %v2009
    %s2011 = sld [smem:[#allocation6 + $0x109]]
    %v2012 = vstv %s2011
    %v2013 = vmul.f32 %v2012, %v112
    %v2014 = vadd.f32 %v2010, %v2013
    %s2015 = sld [smem:[#allocation6 + $0x189]]
    %v2016 = vstv %s2015
    %v2017 = vadd.f32 %v2014, %v2016
    %v2018 = vmax.f32 %v2017, 0.0
    %v2019 = vmul.f32 %v2018, %v117
    %2020 = vrot.lane.b32.xlu0 %v2019, 1
    %v2021 = vpop.permute.xlu0 %2020
    %2022 = vrot.lane.b32.xlu0 %v2019, 127
    %v2023 = vpop.permute.xlu0 %2022
    %s2024 = sld [smem:[#allocation7 + $0x9]]
    %v2025 = vstv %s2024
    %v2026 = vmul.f32 %v2025, %v2021
    %s2027 = sld [smem:[#allocation7 + $0x89]]
    %v2028 = vstv %s2027
    %v2029 = vmul.f32 %v2028, %v2019
    %v2030 = vadd.f32 %v2026, %v2029
    %s2031 = sld [smem:[#allocation7 + $0x109]]
    %v2032 = vstv %s2031
    %v2033 = vmul.f32 %v2032, %v2023
    %v2034 = vadd.f32 %v2030, %v2033
    %s2035 = sld [smem:[#allocation7 + $0x189]]
    %v2036 = vstv %s2035
    %v2037 = vadd.f32 %v2034, %v2036
    %v2038 = vmax.f32 %v2037, 0.0
    %s2039 = sld [smem:[#allocation9 + $0x9]]
    %v2040 = vstv %s2039
    %v2041 = vmul.f32 %v2040, %v2021
    %s2042 = sld [smem:[#allocation9 + $0x89]]
    %v2043 = vstv %s2042
    %v2044 = vmul.f32 %v2043, %v2019
    %v2045 = vadd.f32 %v2041, %v2044
    %s2046 = sld [smem:[#allocation9 + $0x109]]
    %v2047 = vstv %s2046
    %v2048 = vmul.f32 %v2047, %v2023
    %v2049 = vadd.f32 %v2045, %v2048
    %s2050 = sld [smem:[#allocation9 + $0x189]]
    %v2051 = vstv %s2050
    %v2052 = vadd.f32 %v2049, %v2051
    %v2053 = vmax.f32 %v2052, 0.0
    %v2054 = vpack.c.bf16 %v2038, %v2038
    %s2055 = scalar_lea.vmem [#allocation10], 576
    %v2056 = vld [vmem:[%s2055] sm:$0xf]
    %v2057 = vld [vmem:[%s2055 + $0x4] sm:$0xf]
    %v2058 = vld [vmem:[%s2055 + $0x8] sm:$0xf]
    %v2059 = vld [vmem:[%s2055 + $0xc] sm:$0xf]
    %v2060 = vld [vmem:[%s2055 + $0x10] sm:$0xf]
    %v2061 = vld [vmem:[%s2055 + $0x14] sm:$0xf]
    %v2062 = vld [vmem:[%s2055 + $0x18] sm:$0xf]
    %v2063 = vld [vmem:[%s2055 + $0x1c] sm:$0xf]
    %v2064 = vld [vmem:[%s2055 + $0x20] sm:$0xf]
    %v2065 = vld [vmem:[%s2055 + $0x24] sm:$0xf]
    %v2066 = vld [vmem:[%s2055 + $0x28] sm:$0xf]
    %v2067 = vld [vmem:[%s2055 + $0x2c] sm:$0xf]
    %v2068 = vld [vmem:[%s2055 + $0x30] sm:$0xf]
    %v2069 = vld [vmem:[%s2055 + $0x34] sm:$0xf]
    %v2070 = vld [vmem:[%s2055 + $0x38] sm:$0xf]
    %v2071 = vld [vmem:[%s2055 + $0x3c] sm:$0xf]
    %v2088 = vunpack.c.l.b16 %v2056
    %v2089 = vunpack.c.l.b16 %v2057
    %v2090 = vunpack.c.l.b16 %v2058
    %v2091 = vunpack.c.l.b16 %v2059
    %v2092 = vunpack.c.l.b16 %v2060
    %v2093 = vunpack.c.l.b16 %v2061
    %v2094 = vunpack.c.l.b16 %v2062
    %v2095 = vunpack.c.l.b16 %v2063
    %v2096 = vunpack.c.l.b16 %v2064
    %v2097 = vunpack.c.l.b16 %v2065
    %v2098 = vunpack.c.l.b16 %v2066
    %v2099 = vunpack.c.l.b16 %v2067
    %v2100 = vunpack.c.l.b16 %v2068
    %v2101 = vunpack.c.l.b16 %v2069
    %v2102 = vunpack.c.l.b16 %v2070
    %v2103 = vunpack.c.l.b16 %v2071
    %v2104 = vpack.c.b16 %v2089, %v2088
    %v2105 = vpack.c.b16 %v2091, %v2090
    %v2106 = vpack.c.b16 %v2093, %v2092
    %v2107 = vpack.c.b16 %v2095, %v2094
    %v2108 = vpack.c.b16 %v2097, %v2096
    %v2109 = vpack.c.b16 %v2099, %v2098
    %v2110 = vpack.c.b16 %v2101, %v2100
    %v2111 = vpack.c.b16 %v2103, %v2102
    %2120 = vmatpush.bf16.msra.mxu0 %v2111
    %2121 = vmatpush.bf16.msra.mxu0 %v2110
    %2122 = vmatpush.bf16.msra.mxu0 %v2109
    %2123 = vmatpush.bf16.msra.mxu0 %v2108
    %2124 = vmatpush.bf16.msra.mxu0 %v2107
    %2125 = vmatpush.bf16.msra.mxu0 %v2106
    %2126 = vmatpush.bf16.msra.mxu0 %v2105
    %2127 = vmatpush.bf16.msra.mxu0 %v2104
    %2128 = vmatmul.bf16.gmra.mxu0 %v2054
    %v2129 = vpop.f32.mrf.mxu0
    %v2130 = vadd.f32 0.0, %v2129
    %v2131 = vpop.f32.mrf.mxu0
    %2132 = vdwg.mxu0
    %v2133 = vadd.f32 %v2003, %v2130
    %v2134 = vpack.c.bf16 %v2053, %v2053
    %s2135 = scalar_lea.vmem [#allocation12], 576
    %v2136 = vld [vmem:[%s2135] sm:$0xf]
    %v2137 = vld [vmem:[%s2135 + $0x4] sm:$0xf]
    %v2138 = vld [vmem:[%s2135 + $0x8] sm:$0xf]
    %v2139 = vld [vmem:[%s2135 + $0xc] sm:$0xf]
    %v2140 = vld [vmem:[%s2135 + $0x10] sm:$0xf]
    %v2141 = vld [vmem:[%s2135 + $0x14] sm:$0xf]
    %v2142 = vld [vmem:[%s2135 + $0x18] sm:$0xf]
    %v2143 = vld [vmem:[%s2135 + $0x1c] sm:$0xf]
    %v2144 = vld [vmem:[%s2135 + $0x20] sm:$0xf]
    %v2145 = vld [vmem:[%s2135 + $0x24] sm:$0xf]
    %v2146 = vld [vmem:[%s2135 + $0x28] sm:$0xf]
    %v2147 = vld [vmem:[%s2135 + $0x2c] sm:$0xf]
    %v2148 = vld [vmem:[%s2135 + $0x30] sm:$0xf]
    %v2149 = vld [vmem:[%s2135 + $0x34] sm:$0xf]
    %v2150 = vld [vmem:[%s2135 + $0x38] sm:$0xf]
    %v2151 = vld [vmem:[%s2135 + $0x3c] sm:$0xf]
    %v2168 = vunpack.c.l.b16 %v2136
    %v2169 = vunpack.c.l.b16 %v2137
    %v2170 = vunpack.c.l.b16 %v2138
    %v2171 = vunpack.c.l.b16 %v2139
    %v2172 = vunpack.c.l.b16 %v2140
    %v2173 = vunpack.c.l.b16 %v2141
    %v2174 = vunpack.c.l.b16 %v2142
    %v2175 = vunpack.c.l.b16 %v2143
    %v2176 = vunpack.c.l.b16 %v2144
    %v2177 = vunpack.c.l.b16 %v2145
    %v2178 = vunpack.c.l.b16 %v2146
    %v2179 = vunpack.c.l.b16 %v2147
    %v2180 = vunpack.c.l.b16 %v2148
    %v2181 = vunpack.c.l.b16 %v2149
    %v2182 = vunpack.c.l.b16 %v2150
    %v2183 = vunpack.c.l.b16 %v2151
    %v2184 = vpack.c.b16 %v2169, %v2168
    %v2185 = vpack.c.b16 %v2171, %v2170
    %v2186 = vpack.c.b16 %v2173, %v2172
    %v2187 = vpack.c.b16 %v2175, %v2174
    %v2188 = vpack.c.b16 %v2177, %v2176
    %v2189 = vpack.c.b16 %v2179, %v2178
    %v2190 = vpack.c.b16 %v2181, %v2180
    %v2191 = vpack.c.b16 %v2183, %v2182
    %2200 = vmatpush.bf16.msra.mxu0 %v2191
    %2201 = vmatpush.bf16.msra.mxu0 %v2190
    %2202 = vmatpush.bf16.msra.mxu0 %v2189
    %2203 = vmatpush.bf16.msra.mxu0 %v2188
    %2204 = vmatpush.bf16.msra.mxu0 %v2187
    %2205 = vmatpush.bf16.msra.mxu0 %v2186
    %2206 = vmatpush.bf16.msra.mxu0 %v2185
    %2207 = vmatpush.bf16.msra.mxu0 %v2184
    %2208 = vmatmul.bf16.gmra.mxu0 %v2134
    %v2209 = vpop.f32.mrf.mxu0
    %v2210 = vadd.f32 0.0, %v2209
    %v2211 = vpop.f32.mrf.mxu0
    %2212 = vdwg.mxu0
    %v2213 = vadd.f32 %v2133, %v2210
    %s2214 = sld [smem:[#allocation6 + $0xa]]
    %v2215 = vstv %s2214
    %v2216 = vmul.f32 %v2215, %v110
    %s2217 = sld [smem:[#allocation6 + $0x8a]]
    %v2218 = vstv %s2217
    %v2219 = vmul.f32 %v2218, %v108
    %v2220 = vadd.f32 %v2216, %v2219
    %s2221 = sld [smem:[#allocation6 + $0x10a]]
    %v2222 = vstv %s2221
    %v2223 = vmul.f32 %v2222, %v112
    %v2224 = vadd.f32 %v2220, %v2223
    %s2225 = sld [smem:[#allocation6 + $0x18a]]
    %v2226 = vstv %s2225
    %v2227 = vadd.f32 %v2224, %v2226
    %v2228 = vmax.f32 %v2227, 0.0
    %v2229 = vmul.f32 %v2228, %v117
    %2230 = vrot.lane.b32.xlu0 %v2229, 1
    %v2231 = vpop.permute.xlu0 %2230
    %2232 = vrot.lane.b32.xlu0 %v2229, 127
    %v2233 = vpop.permute.xlu0 %2232
    %s2234 = sld [smem:[#allocation7 + $0xa]]
    %v2235 = vstv %s2234
    %v2236 = vmul.f32 %v2235, %v2231
    %s2237 = sld [smem:[#allocation7 + $0x8a]]
    %v2238 = vstv %s2237
    %v2239 = vmul.f32 %v2238, %v2229
    %v2240 = vadd.f32 %v2236, %v2239
    %s2241 = sld [smem:[#allocation7 + $0x10a]]
    %v2242 = vstv %s2241
    %v2243 = vmul.f32 %v2242, %v2233
    %v2244 = vadd.f32 %v2240, %v2243
    %s2245 = sld [smem:[#allocation7 + $0x18a]]
    %v2246 = vstv %s2245
    %v2247 = vadd.f32 %v2244, %v2246
    %v2248 = vmax.f32 %v2247, 0.0
    %s2249 = sld [smem:[#allocation9 + $0xa]]
    %v2250 = vstv %s2249
    %v2251 = vmul.f32 %v2250, %v2231
    %s2252 = sld [smem:[#allocation9 + $0x8a]]
    %v2253 = vstv %s2252
    %v2254 = vmul.f32 %v2253, %v2229
    %v2255 = vadd.f32 %v2251, %v2254
    %s2256 = sld [smem:[#allocation9 + $0x10a]]
    %v2257 = vstv %s2256
    %v2258 = vmul.f32 %v2257, %v2233
    %v2259 = vadd.f32 %v2255, %v2258
    %s2260 = sld [smem:[#allocation9 + $0x18a]]
    %v2261 = vstv %s2260
    %v2262 = vadd.f32 %v2259, %v2261
    %v2263 = vmax.f32 %v2262, 0.0
    %v2264 = vpack.c.bf16 %v2248, %v2248
    %s2265 = scalar_lea.vmem [#allocation10], 640
    %v2266 = vld [vmem:[%s2265] sm:$0xf]
    %v2267 = vld [vmem:[%s2265 + $0x4] sm:$0xf]
    %v2268 = vld [vmem:[%s2265 + $0x8] sm:$0xf]
    %v2269 = vld [vmem:[%s2265 + $0xc] sm:$0xf]
    %v2270 = vld [vmem:[%s2265 + $0x10] sm:$0xf]
    %v2271 = vld [vmem:[%s2265 + $0x14] sm:$0xf]
    %v2272 = vld [vmem:[%s2265 + $0x18] sm:$0xf]
    %v2273 = vld [vmem:[%s2265 + $0x1c] sm:$0xf]
    %v2274 = vld [vmem:[%s2265 + $0x20] sm:$0xf]
    %v2275 = vld [vmem:[%s2265 + $0x24] sm:$0xf]
    %v2276 = vld [vmem:[%s2265 + $0x28] sm:$0xf]
    %v2277 = vld [vmem:[%s2265 + $0x2c] sm:$0xf]
    %v2278 = vld [vmem:[%s2265 + $0x30] sm:$0xf]
    %v2279 = vld [vmem:[%s2265 + $0x34] sm:$0xf]
    %v2280 = vld [vmem:[%s2265 + $0x38] sm:$0xf]
    %v2281 = vld [vmem:[%s2265 + $0x3c] sm:$0xf]
    %v2298 = vunpack.c.l.b16 %v2266
    %v2299 = vunpack.c.l.b16 %v2267
    %v2300 = vunpack.c.l.b16 %v2268
    %v2301 = vunpack.c.l.b16 %v2269
    %v2302 = vunpack.c.l.b16 %v2270
    %v2303 = vunpack.c.l.b16 %v2271
    %v2304 = vunpack.c.l.b16 %v2272
    %v2305 = vunpack.c.l.b16 %v2273
    %v2306 = vunpack.c.l.b16 %v2274
    %v2307 = vunpack.c.l.b16 %v2275
    %v2308 = vunpack.c.l.b16 %v2276
    %v2309 = vunpack.c.l.b16 %v2277
    %v2310 = vunpack.c.l.b16 %v2278
    %v2311 = vunpack.c.l.b16 %v2279
    %v2312 = vunpack.c.l.b16 %v2280
    %v2313 = vunpack.c.l.b16 %v2281
    %v2314 = vpack.c.b16 %v2299, %v2298
    %v2315 = vpack.c.b16 %v2301, %v2300
    %v2316 = vpack.c.b16 %v2303, %v2302
    %v2317 = vpack.c.b16 %v2305, %v2304
    %v2318 = vpack.c.b16 %v2307, %v2306
    %v2319 = vpack.c.b16 %v2309, %v2308
    %v2320 = vpack.c.b16 %v2311, %v2310
    %v2321 = vpack.c.b16 %v2313, %v2312
    %2330 = vmatpush.bf16.msra.mxu0 %v2321
    %2331 = vmatpush.bf16.msra.mxu0 %v2320
    %2332 = vmatpush.bf16.msra.mxu0 %v2319
    %2333 = vmatpush.bf16.msra.mxu0 %v2318
    %2334 = vmatpush.bf16.msra.mxu0 %v2317
    %2335 = vmatpush.bf16.msra.mxu0 %v2316
    %2336 = vmatpush.bf16.msra.mxu0 %v2315
    %2337 = vmatpush.bf16.msra.mxu0 %v2314
    %2338 = vmatmul.bf16.gmra.mxu0 %v2264
    %v2339 = vpop.f32.mrf.mxu0
    %v2340 = vadd.f32 0.0, %v2339
    %v2341 = vpop.f32.mrf.mxu0
    %2342 = vdwg.mxu0
    %v2343 = vadd.f32 %v2213, %v2340
    %v2344 = vpack.c.bf16 %v2263, %v2263
    %s2345 = scalar_lea.vmem [#allocation12], 640
    %v2346 = vld [vmem:[%s2345] sm:$0xf]
    %v2347 = vld [vmem:[%s2345 + $0x4] sm:$0xf]
    %v2348 = vld [vmem:[%s2345 + $0x8] sm:$0xf]
    %v2349 = vld [vmem:[%s2345 + $0xc] sm:$0xf]
    %v2350 = vld [vmem:[%s2345 + $0x10] sm:$0xf]
    %v2351 = vld [vmem:[%s2345 + $0x14] sm:$0xf]
    %v2352 = vld [vmem:[%s2345 + $0x18] sm:$0xf]
    %v2353 = vld [vmem:[%s2345 + $0x1c] sm:$0xf]
    %v2354 = vld [vmem:[%s2345 + $0x20] sm:$0xf]
    %v2355 = vld [vmem:[%s2345 + $0x24] sm:$0xf]
    %v2356 = vld [vmem:[%s2345 + $0x28] sm:$0xf]
    %v2357 = vld [vmem:[%s2345 + $0x2c] sm:$0xf]
    %v2358 = vld [vmem:[%s2345 + $0x30] sm:$0xf]
    %v2359 = vld [vmem:[%s2345 + $0x34] sm:$0xf]
    %v2360 = vld [vmem:[%s2345 + $0x38] sm:$0xf]
    %v2361 = vld [vmem:[%s2345 + $0x3c] sm:$0xf]
    %v2378 = vunpack.c.l.b16 %v2346
    %v2379 = vunpack.c.l.b16 %v2347
    %v2380 = vunpack.c.l.b16 %v2348
    %v2381 = vunpack.c.l.b16 %v2349
    %v2382 = vunpack.c.l.b16 %v2350
    %v2383 = vunpack.c.l.b16 %v2351
    %v2384 = vunpack.c.l.b16 %v2352
    %v2385 = vunpack.c.l.b16 %v2353
    %v2386 = vunpack.c.l.b16 %v2354
    %v2387 = vunpack.c.l.b16 %v2355
    %v2388 = vunpack.c.l.b16 %v2356
    %v2389 = vunpack.c.l.b16 %v2357
    %v2390 = vunpack.c.l.b16 %v2358
    %v2391 = vunpack.c.l.b16 %v2359
    %v2392 = vunpack.c.l.b16 %v2360
    %v2393 = vunpack.c.l.b16 %v2361
    %v2394 = vpack.c.b16 %v2379, %v2378
    %v2395 = vpack.c.b16 %v2381, %v2380
    %v2396 = vpack.c.b16 %v2383, %v2382
    %v2397 = vpack.c.b16 %v2385, %v2384
    %v2398 = vpack.c.b16 %v2387, %v2386
    %v2399 = vpack.c.b16 %v2389, %v2388
    %v2400 = vpack.c.b16 %v2391, %v2390
    %v2401 = vpack.c.b16 %v2393, %v2392
    %2410 = vmatpush.bf16.msra.mxu0 %v2401
    %2411 = vmatpush.bf16.msra.mxu0 %v2400
    %2412 = vmatpush.bf16.msra.mxu0 %v2399
    %2413 = vmatpush.bf16.msra.mxu0 %v2398
    %2414 = vmatpush.bf16.msra.mxu0 %v2397
    %2415 = vmatpush.bf16.msra.mxu0 %v2396
    %2416 = vmatpush.bf16.msra.mxu0 %v2395
    %2417 = vmatpush.bf16.msra.mxu0 %v2394
    %2418 = vmatmul.bf16.gmra.mxu0 %v2344
    %v2419 = vpop.f32.mrf.mxu0
    %v2420 = vadd.f32 0.0, %v2419
    %v2421 = vpop.f32.mrf.mxu0
    %2422 = vdwg.mxu0
    %v2423 = vadd.f32 %v2343, %v2420
    %s2424 = sld [smem:[#allocation6 + $0xb]]
    %v2425 = vstv %s2424
    %v2426 = vmul.f32 %v2425, %v110
    %s2427 = sld [smem:[#allocation6 + $0x8b]]
    %v2428 = vstv %s2427
    %v2429 = vmul.f32 %v2428, %v108
    %v2430 = vadd.f32 %v2426, %v2429
    %s2431 = sld [smem:[#allocation6 + $0x10b]]
    %v2432 = vstv %s2431
    %v2433 = vmul.f32 %v2432, %v112
    %v2434 = vadd.f32 %v2430, %v2433
    %s2435 = sld [smem:[#allocation6 + $0x18b]]
    %v2436 = vstv %s2435
    %v2437 = vadd.f32 %v2434, %v2436
    %v2438 = vmax.f32 %v2437, 0.0
    %v2439 = vmul.f32 %v2438, %v117
    %2440 = vrot.lane.b32.xlu0 %v2439, 1
    %v2441 = vpop.permute.xlu0 %2440
    %2442 = vrot.lane.b32.xlu0 %v2439, 127
    %v2443 = vpop.permute.xlu0 %2442
    %s2444 = sld [smem:[#allocation7 + $0xb]]
    %v2445 = vstv %s2444
    %v2446 = vmul.f32 %v2445, %v2441
    %s2447 = sld [smem:[#allocation7 + $0x8b]]
    %v2448 = vstv %s2447
    %v2449 = vmul.f32 %v2448, %v2439
    %v2450 = vadd.f32 %v2446, %v2449
    %s2451 = sld [smem:[#allocation7 + $0x10b]]
    %v2452 = vstv %s2451
    %v2453 = vmul.f32 %v2452, %v2443
    %v2454 = vadd.f32 %v2450, %v2453
    %s2455 = sld [smem:[#allocation7 + $0x18b]]
    %v2456 = vstv %s2455
    %v2457 = vadd.f32 %v2454, %v2456
    %v2458 = vmax.f32 %v2457, 0.0
    %s2459 = sld [smem:[#allocation9 + $0xb]]
    %v2460 = vstv %s2459
    %v2461 = vmul.f32 %v2460, %v2441
    %s2462 = sld [smem:[#allocation9 + $0x8b]]
    %v2463 = vstv %s2462
    %v2464 = vmul.f32 %v2463, %v2439
    %v2465 = vadd.f32 %v2461, %v2464
    %s2466 = sld [smem:[#allocation9 + $0x10b]]
    %v2467 = vstv %s2466
    %v2468 = vmul.f32 %v2467, %v2443
    %v2469 = vadd.f32 %v2465, %v2468
    %s2470 = sld [smem:[#allocation9 + $0x18b]]
    %v2471 = vstv %s2470
    %v2472 = vadd.f32 %v2469, %v2471
    %v2473 = vmax.f32 %v2472, 0.0
    %v2474 = vpack.c.bf16 %v2458, %v2458
    %s2475 = scalar_lea.vmem [#allocation10], 704
    %v2476 = vld [vmem:[%s2475] sm:$0xf]
    %v2477 = vld [vmem:[%s2475 + $0x4] sm:$0xf]
    %v2478 = vld [vmem:[%s2475 + $0x8] sm:$0xf]
    %v2479 = vld [vmem:[%s2475 + $0xc] sm:$0xf]
    %v2480 = vld [vmem:[%s2475 + $0x10] sm:$0xf]
    %v2481 = vld [vmem:[%s2475 + $0x14] sm:$0xf]
    %v2482 = vld [vmem:[%s2475 + $0x18] sm:$0xf]
    %v2483 = vld [vmem:[%s2475 + $0x1c] sm:$0xf]
    %v2484 = vld [vmem:[%s2475 + $0x20] sm:$0xf]
    %v2485 = vld [vmem:[%s2475 + $0x24] sm:$0xf]
    %v2486 = vld [vmem:[%s2475 + $0x28] sm:$0xf]
    %v2487 = vld [vmem:[%s2475 + $0x2c] sm:$0xf]
    %v2488 = vld [vmem:[%s2475 + $0x30] sm:$0xf]
    %v2489 = vld [vmem:[%s2475 + $0x34] sm:$0xf]
    %v2490 = vld [vmem:[%s2475 + $0x38] sm:$0xf]
    %v2491 = vld [vmem:[%s2475 + $0x3c] sm:$0xf]
    %v2508 = vunpack.c.l.b16 %v2476
    %v2509 = vunpack.c.l.b16 %v2477
    %v2510 = vunpack.c.l.b16 %v2478
    %v2511 = vunpack.c.l.b16 %v2479
    %v2512 = vunpack.c.l.b16 %v2480
    %v2513 = vunpack.c.l.b16 %v2481
    %v2514 = vunpack.c.l.b16 %v2482
    %v2515 = vunpack.c.l.b16 %v2483
    %v2516 = vunpack.c.l.b16 %v2484
    %v2517 = vunpack.c.l.b16 %v2485
    %v2518 = vunpack.c.l.b16 %v2486
    %v2519 = vunpack.c.l.b16 %v2487
    %v2520 = vunpack.c.l.b16 %v2488
    %v2521 = vunpack.c.l.b16 %v2489
    %v2522 = vunpack.c.l.b16 %v2490
    %v2523 = vunpack.c.l.b16 %v2491
    %v2524 = vpack.c.b16 %v2509, %v2508
    %v2525 = vpack.c.b16 %v2511, %v2510
    %v2526 = vpack.c.b16 %v2513, %v2512
    %v2527 = vpack.c.b16 %v2515, %v2514
    %v2528 = vpack.c.b16 %v2517, %v2516
    %v2529 = vpack.c.b16 %v2519, %v2518
    %v2530 = vpack.c.b16 %v2521, %v2520
    %v2531 = vpack.c.b16 %v2523, %v2522
    %2540 = vmatpush.bf16.msra.mxu0 %v2531
    %2541 = vmatpush.bf16.msra.mxu0 %v2530
    %2542 = vmatpush.bf16.msra.mxu0 %v2529
    %2543 = vmatpush.bf16.msra.mxu0 %v2528
    %2544 = vmatpush.bf16.msra.mxu0 %v2527
    %2545 = vmatpush.bf16.msra.mxu0 %v2526
    %2546 = vmatpush.bf16.msra.mxu0 %v2525
    %2547 = vmatpush.bf16.msra.mxu0 %v2524
    %2548 = vmatmul.bf16.gmra.mxu0 %v2474
    %v2549 = vpop.f32.mrf.mxu0
    %v2550 = vadd.f32 0.0, %v2549
    %v2551 = vpop.f32.mrf.mxu0
    %2552 = vdwg.mxu0
    %v2553 = vadd.f32 %v2423, %v2550
    %v2554 = vpack.c.bf16 %v2473, %v2473
    %s2555 = scalar_lea.vmem [#allocation12], 704
    %v2556 = vld [vmem:[%s2555] sm:$0xf]
    %v2557 = vld [vmem:[%s2555 + $0x4] sm:$0xf]
    %v2558 = vld [vmem:[%s2555 + $0x8] sm:$0xf]
    %v2559 = vld [vmem:[%s2555 + $0xc] sm:$0xf]
    %v2560 = vld [vmem:[%s2555 + $0x10] sm:$0xf]
    %v2561 = vld [vmem:[%s2555 + $0x14] sm:$0xf]
    %v2562 = vld [vmem:[%s2555 + $0x18] sm:$0xf]
    %v2563 = vld [vmem:[%s2555 + $0x1c] sm:$0xf]
    %v2564 = vld [vmem:[%s2555 + $0x20] sm:$0xf]
    %v2565 = vld [vmem:[%s2555 + $0x24] sm:$0xf]
    %v2566 = vld [vmem:[%s2555 + $0x28] sm:$0xf]
    %v2567 = vld [vmem:[%s2555 + $0x2c] sm:$0xf]
    %v2568 = vld [vmem:[%s2555 + $0x30] sm:$0xf]
    %v2569 = vld [vmem:[%s2555 + $0x34] sm:$0xf]
    %v2570 = vld [vmem:[%s2555 + $0x38] sm:$0xf]
    %v2571 = vld [vmem:[%s2555 + $0x3c] sm:$0xf]
    %v2588 = vunpack.c.l.b16 %v2556
    %v2589 = vunpack.c.l.b16 %v2557
    %v2590 = vunpack.c.l.b16 %v2558
    %v2591 = vunpack.c.l.b16 %v2559
    %v2592 = vunpack.c.l.b16 %v2560
    %v2593 = vunpack.c.l.b16 %v2561
    %v2594 = vunpack.c.l.b16 %v2562
    %v2595 = vunpack.c.l.b16 %v2563
    %v2596 = vunpack.c.l.b16 %v2564
    %v2597 = vunpack.c.l.b16 %v2565
    %v2598 = vunpack.c.l.b16 %v2566
    %v2599 = vunpack.c.l.b16 %v2567
    %v2600 = vunpack.c.l.b16 %v2568
    %v2601 = vunpack.c.l.b16 %v2569
    %v2602 = vunpack.c.l.b16 %v2570
    %v2603 = vunpack.c.l.b16 %v2571
    %v2604 = vpack.c.b16 %v2589, %v2588
    %v2605 = vpack.c.b16 %v2591, %v2590
    %v2606 = vpack.c.b16 %v2593, %v2592
    %v2607 = vpack.c.b16 %v2595, %v2594
    %v2608 = vpack.c.b16 %v2597, %v2596
    %v2609 = vpack.c.b16 %v2599, %v2598
    %v2610 = vpack.c.b16 %v2601, %v2600
    %v2611 = vpack.c.b16 %v2603, %v2602
    %2620 = vmatpush.bf16.msra.mxu0 %v2611
    %2621 = vmatpush.bf16.msra.mxu0 %v2610
    %2622 = vmatpush.bf16.msra.mxu0 %v2609
    %2623 = vmatpush.bf16.msra.mxu0 %v2608
    %2624 = vmatpush.bf16.msra.mxu0 %v2607
    %2625 = vmatpush.bf16.msra.mxu0 %v2606
    %2626 = vmatpush.bf16.msra.mxu0 %v2605
    %2627 = vmatpush.bf16.msra.mxu0 %v2604
    %2628 = vmatmul.bf16.gmra.mxu0 %v2554
    %v2629 = vpop.f32.mrf.mxu0
    %v2630 = vadd.f32 0.0, %v2629
    %v2631 = vpop.f32.mrf.mxu0
    %2632 = vdwg.mxu0
    %v2633 = vadd.f32 %v2553, %v2630
    %s2634 = sld [smem:[#allocation6 + $0xc]]
    %v2635 = vstv %s2634
    %v2636 = vmul.f32 %v2635, %v110
    %s2637 = sld [smem:[#allocation6 + $0x8c]]
    %v2638 = vstv %s2637
    %v2639 = vmul.f32 %v2638, %v108
    %v2640 = vadd.f32 %v2636, %v2639
    %s2641 = sld [smem:[#allocation6 + $0x10c]]
    %v2642 = vstv %s2641
    %v2643 = vmul.f32 %v2642, %v112
    %v2644 = vadd.f32 %v2640, %v2643
    %s2645 = sld [smem:[#allocation6 + $0x18c]]
    %v2646 = vstv %s2645
    %v2647 = vadd.f32 %v2644, %v2646
    %v2648 = vmax.f32 %v2647, 0.0
    %v2649 = vmul.f32 %v2648, %v117
    %2650 = vrot.lane.b32.xlu0 %v2649, 1
    %v2651 = vpop.permute.xlu0 %2650
    %2652 = vrot.lane.b32.xlu0 %v2649, 127
    %v2653 = vpop.permute.xlu0 %2652
    %s2654 = sld [smem:[#allocation7 + $0xc]]
    %v2655 = vstv %s2654
    %v2656 = vmul.f32 %v2655, %v2651
    %s2657 = sld [smem:[#allocation7 + $0x8c]]
    %v2658 = vstv %s2657
    %v2659 = vmul.f32 %v2658, %v2649
    %v2660 = vadd.f32 %v2656, %v2659
    %s2661 = sld [smem:[#allocation7 + $0x10c]]
    %v2662 = vstv %s2661
    %v2663 = vmul.f32 %v2662, %v2653
    %v2664 = vadd.f32 %v2660, %v2663
    %s2665 = sld [smem:[#allocation7 + $0x18c]]
    %v2666 = vstv %s2665
    %v2667 = vadd.f32 %v2664, %v2666
    %v2668 = vmax.f32 %v2667, 0.0
    %s2669 = sld [smem:[#allocation9 + $0xc]]
    %v2670 = vstv %s2669
    %v2671 = vmul.f32 %v2670, %v2651
    %s2672 = sld [smem:[#allocation9 + $0x8c]]
    %v2673 = vstv %s2672
    %v2674 = vmul.f32 %v2673, %v2649
    %v2675 = vadd.f32 %v2671, %v2674
    %s2676 = sld [smem:[#allocation9 + $0x10c]]
    %v2677 = vstv %s2676
    %v2678 = vmul.f32 %v2677, %v2653
    %v2679 = vadd.f32 %v2675, %v2678
    %s2680 = sld [smem:[#allocation9 + $0x18c]]
    %v2681 = vstv %s2680
    %v2682 = vadd.f32 %v2679, %v2681
    %v2683 = vmax.f32 %v2682, 0.0
    %v2684 = vpack.c.bf16 %v2668, %v2668
    %s2685 = scalar_lea.vmem [#allocation10], 768
    %v2686 = vld [vmem:[%s2685] sm:$0xf]
    %v2687 = vld [vmem:[%s2685 + $0x4] sm:$0xf]
    %v2688 = vld [vmem:[%s2685 + $0x8] sm:$0xf]
    %v2689 = vld [vmem:[%s2685 + $0xc] sm:$0xf]
    %v2690 = vld [vmem:[%s2685 + $0x10] sm:$0xf]
    %v2691 = vld [vmem:[%s2685 + $0x14] sm:$0xf]
    %v2692 = vld [vmem:[%s2685 + $0x18] sm:$0xf]
    %v2693 = vld [vmem:[%s2685 + $0x1c] sm:$0xf]
    %v2694 = vld [vmem:[%s2685 + $0x20] sm:$0xf]
    %v2695 = vld [vmem:[%s2685 + $0x24] sm:$0xf]
    %v2696 = vld [vmem:[%s2685 + $0x28] sm:$0xf]
    %v2697 = vld [vmem:[%s2685 + $0x2c] sm:$0xf]
    %v2698 = vld [vmem:[%s2685 + $0x30] sm:$0xf]
    %v2699 = vld [vmem:[%s2685 + $0x34] sm:$0xf]
    %v2700 = vld [vmem:[%s2685 + $0x38] sm:$0xf]
    %v2701 = vld [vmem:[%s2685 + $0x3c] sm:$0xf]
    %v2718 = vunpack.c.l.b16 %v2686
    %v2719 = vunpack.c.l.b16 %v2687
    %v2720 = vunpack.c.l.b16 %v2688
    %v2721 = vunpack.c.l.b16 %v2689
    %v2722 = vunpack.c.l.b16 %v2690
    %v2723 = vunpack.c.l.b16 %v2691
    %v2724 = vunpack.c.l.b16 %v2692
    %v2725 = vunpack.c.l.b16 %v2693
    %v2726 = vunpack.c.l.b16 %v2694
    %v2727 = vunpack.c.l.b16 %v2695
    %v2728 = vunpack.c.l.b16 %v2696
    %v2729 = vunpack.c.l.b16 %v2697
    %v2730 = vunpack.c.l.b16 %v2698
    %v2731 = vunpack.c.l.b16 %v2699
    %v2732 = vunpack.c.l.b16 %v2700
    %v2733 = vunpack.c.l.b16 %v2701
    %v2734 = vpack.c.b16 %v2719, %v2718
    %v2735 = vpack.c.b16 %v2721, %v2720
    %v2736 = vpack.c.b16 %v2723, %v2722
    %v2737 = vpack.c.b16 %v2725, %v2724
    %v2738 = vpack.c.b16 %v2727, %v2726
    %v2739 = vpack.c.b16 %v2729, %v2728
    %v2740 = vpack.c.b16 %v2731, %v2730
    %v2741 = vpack.c.b16 %v2733, %v2732
    %2750 = vmatpush.bf16.msra.mxu0 %v2741
    %2751 = vmatpush.bf16.msra.mxu0 %v2740
    %2752 = vmatpush.bf16.msra.mxu0 %v2739
    %2753 = vmatpush.bf16.msra.mxu0 %v2738
    %2754 = vmatpush.bf16.msra.mxu0 %v2737
    %2755 = vmatpush.bf16.msra.mxu0 %v2736
    %2756 = vmatpush.bf16.msra.mxu0 %v2735
    %2757 = vmatpush.bf16.msra.mxu0 %v2734
    %2758 = vmatmul.bf16.gmra.mxu0 %v2684
    %v2759 = vpop.f32.mrf.mxu0
    %v2760 = vadd.f32 0.0, %v2759
    %v2761 = vpop.f32.mrf.mxu0
    %2762 = vdwg.mxu0
    %v2763 = vadd.f32 %v2633, %v2760
    %v2764 = vpack.c.bf16 %v2683, %v2683
    %s2765 = scalar_lea.vmem [#allocation12], 768
    %v2766 = vld [vmem:[%s2765] sm:$0xf]
    %v2767 = vld [vmem:[%s2765 + $0x4] sm:$0xf]
    %v2768 = vld [vmem:[%s2765 + $0x8] sm:$0xf]
    %v2769 = vld [vmem:[%s2765 + $0xc] sm:$0xf]
    %v2770 = vld [vmem:[%s2765 + $0x10] sm:$0xf]
    %v2771 = vld [vmem:[%s2765 + $0x14] sm:$0xf]
    %v2772 = vld [vmem:[%s2765 + $0x18] sm:$0xf]
    %v2773 = vld [vmem:[%s2765 + $0x1c] sm:$0xf]
    %v2774 = vld [vmem:[%s2765 + $0x20] sm:$0xf]
    %v2775 = vld [vmem:[%s2765 + $0x24] sm:$0xf]
    %v2776 = vld [vmem:[%s2765 + $0x28] sm:$0xf]
    %v2777 = vld [vmem:[%s2765 + $0x2c] sm:$0xf]
    %v2778 = vld [vmem:[%s2765 + $0x30] sm:$0xf]
    %v2779 = vld [vmem:[%s2765 + $0x34] sm:$0xf]
    %v2780 = vld [vmem:[%s2765 + $0x38] sm:$0xf]
    %v2781 = vld [vmem:[%s2765 + $0x3c] sm:$0xf]
    %v2798 = vunpack.c.l.b16 %v2766
    %v2799 = vunpack.c.l.b16 %v2767
    %v2800 = vunpack.c.l.b16 %v2768
    %v2801 = vunpack.c.l.b16 %v2769
    %v2802 = vunpack.c.l.b16 %v2770
    %v2803 = vunpack.c.l.b16 %v2771
    %v2804 = vunpack.c.l.b16 %v2772
    %v2805 = vunpack.c.l.b16 %v2773
    %v2806 = vunpack.c.l.b16 %v2774
    %v2807 = vunpack.c.l.b16 %v2775
    %v2808 = vunpack.c.l.b16 %v2776
    %v2809 = vunpack.c.l.b16 %v2777
    %v2810 = vunpack.c.l.b16 %v2778
    %v2811 = vunpack.c.l.b16 %v2779
    %v2812 = vunpack.c.l.b16 %v2780
    %v2813 = vunpack.c.l.b16 %v2781
    %v2814 = vpack.c.b16 %v2799, %v2798
    %v2815 = vpack.c.b16 %v2801, %v2800
    %v2816 = vpack.c.b16 %v2803, %v2802
    %v2817 = vpack.c.b16 %v2805, %v2804
    %v2818 = vpack.c.b16 %v2807, %v2806
    %v2819 = vpack.c.b16 %v2809, %v2808
    %v2820 = vpack.c.b16 %v2811, %v2810
    %v2821 = vpack.c.b16 %v2813, %v2812
    %2830 = vmatpush.bf16.msra.mxu0 %v2821
    %2831 = vmatpush.bf16.msra.mxu0 %v2820
    %2832 = vmatpush.bf16.msra.mxu0 %v2819
    %2833 = vmatpush.bf16.msra.mxu0 %v2818
    %2834 = vmatpush.bf16.msra.mxu0 %v2817
    %2835 = vmatpush.bf16.msra.mxu0 %v2816
    %2836 = vmatpush.bf16.msra.mxu0 %v2815
    %2837 = vmatpush.bf16.msra.mxu0 %v2814
    %2838 = vmatmul.bf16.gmra.mxu0 %v2764
    %v2839 = vpop.f32.mrf.mxu0
    %v2840 = vadd.f32 0.0, %v2839
    %v2841 = vpop.f32.mrf.mxu0
    %2842 = vdwg.mxu0
    %v2843 = vadd.f32 %v2763, %v2840
    %s2844 = sld [smem:[#allocation6 + $0xd]]
    %v2845 = vstv %s2844
    %v2846 = vmul.f32 %v2845, %v110
    %s2847 = sld [smem:[#allocation6 + $0x8d]]
    %v2848 = vstv %s2847
    %v2849 = vmul.f32 %v2848, %v108
    %v2850 = vadd.f32 %v2846, %v2849
    %s2851 = sld [smem:[#allocation6 + $0x10d]]
    %v2852 = vstv %s2851
    %v2853 = vmul.f32 %v2852, %v112
    %v2854 = vadd.f32 %v2850, %v2853
    %s2855 = sld [smem:[#allocation6 + $0x18d]]
    %v2856 = vstv %s2855
    %v2857 = vadd.f32 %v2854, %v2856
    %v2858 = vmax.f32 %v2857, 0.0
    %v2859 = vmul.f32 %v2858, %v117
    %2860 = vrot.lane.b32.xlu0 %v2859, 1
    %v2861 = vpop.permute.xlu0 %2860
    %2862 = vrot.lane.b32.xlu0 %v2859, 127
    %v2863 = vpop.permute.xlu0 %2862
    %s2864 = sld [smem:[#allocation7 + $0xd]]
    %v2865 = vstv %s2864
    %v2866 = vmul.f32 %v2865, %v2861
    %s2867 = sld [smem:[#allocation7 + $0x8d]]
    %v2868 = vstv %s2867
    %v2869 = vmul.f32 %v2868, %v2859
    %v2870 = vadd.f32 %v2866, %v2869
    %s2871 = sld [smem:[#allocation7 + $0x10d]]
    %v2872 = vstv %s2871
    %v2873 = vmul.f32 %v2872, %v2863
    %v2874 = vadd.f32 %v2870, %v2873
    %s2875 = sld [smem:[#allocation7 + $0x18d]]
    %v2876 = vstv %s2875
    %v2877 = vadd.f32 %v2874, %v2876
    %v2878 = vmax.f32 %v2877, 0.0
    %s2879 = sld [smem:[#allocation9 + $0xd]]
    %v2880 = vstv %s2879
    %v2881 = vmul.f32 %v2880, %v2861
    %s2882 = sld [smem:[#allocation9 + $0x8d]]
    %v2883 = vstv %s2882
    %v2884 = vmul.f32 %v2883, %v2859
    %v2885 = vadd.f32 %v2881, %v2884
    %s2886 = sld [smem:[#allocation9 + $0x10d]]
    %v2887 = vstv %s2886
    %v2888 = vmul.f32 %v2887, %v2863
    %v2889 = vadd.f32 %v2885, %v2888
    %s2890 = sld [smem:[#allocation9 + $0x18d]]
    %v2891 = vstv %s2890
    %v2892 = vadd.f32 %v2889, %v2891
    %v2893 = vmax.f32 %v2892, 0.0
    %v2894 = vpack.c.bf16 %v2878, %v2878
    %s2895 = scalar_lea.vmem [#allocation10], 832
    %v2896 = vld [vmem:[%s2895] sm:$0xf]
    %v2897 = vld [vmem:[%s2895 + $0x4] sm:$0xf]
    %v2898 = vld [vmem:[%s2895 + $0x8] sm:$0xf]
    %v2899 = vld [vmem:[%s2895 + $0xc] sm:$0xf]
    %v2900 = vld [vmem:[%s2895 + $0x10] sm:$0xf]
    %v2901 = vld [vmem:[%s2895 + $0x14] sm:$0xf]
    %v2902 = vld [vmem:[%s2895 + $0x18] sm:$0xf]
    %v2903 = vld [vmem:[%s2895 + $0x1c] sm:$0xf]
    %v2904 = vld [vmem:[%s2895 + $0x20] sm:$0xf]
    %v2905 = vld [vmem:[%s2895 + $0x24] sm:$0xf]
    %v2906 = vld [vmem:[%s2895 + $0x28] sm:$0xf]
    %v2907 = vld [vmem:[%s2895 + $0x2c] sm:$0xf]
    %v2908 = vld [vmem:[%s2895 + $0x30] sm:$0xf]
    %v2909 = vld [vmem:[%s2895 + $0x34] sm:$0xf]
    %v2910 = vld [vmem:[%s2895 + $0x38] sm:$0xf]
    %v2911 = vld [vmem:[%s2895 + $0x3c] sm:$0xf]
    %v2928 = vunpack.c.l.b16 %v2896
    %v2929 = vunpack.c.l.b16 %v2897
    %v2930 = vunpack.c.l.b16 %v2898
    %v2931 = vunpack.c.l.b16 %v2899
    %v2932 = vunpack.c.l.b16 %v2900
    %v2933 = vunpack.c.l.b16 %v2901
    %v2934 = vunpack.c.l.b16 %v2902
    %v2935 = vunpack.c.l.b16 %v2903
    %v2936 = vunpack.c.l.b16 %v2904
    %v2937 = vunpack.c.l.b16 %v2905
    %v2938 = vunpack.c.l.b16 %v2906
    %v2939 = vunpack.c.l.b16 %v2907
    %v2940 = vunpack.c.l.b16 %v2908
    %v2941 = vunpack.c.l.b16 %v2909
    %v2942 = vunpack.c.l.b16 %v2910
    %v2943 = vunpack.c.l.b16 %v2911
    %v2944 = vpack.c.b16 %v2929, %v2928
    %v2945 = vpack.c.b16 %v2931, %v2930
    %v2946 = vpack.c.b16 %v2933, %v2932
    %v2947 = vpack.c.b16 %v2935, %v2934
    %v2948 = vpack.c.b16 %v2937, %v2936
    %v2949 = vpack.c.b16 %v2939, %v2938
    %v2950 = vpack.c.b16 %v2941, %v2940
    %v2951 = vpack.c.b16 %v2943, %v2942
    %2960 = vmatpush.bf16.msra.mxu0 %v2951
    %2961 = vmatpush.bf16.msra.mxu0 %v2950
    %2962 = vmatpush.bf16.msra.mxu0 %v2949
    %2963 = vmatpush.bf16.msra.mxu0 %v2948
    %2964 = vmatpush.bf16.msra.mxu0 %v2947
    %2965 = vmatpush.bf16.msra.mxu0 %v2946
    %2966 = vmatpush.bf16.msra.mxu0 %v2945
    %2967 = vmatpush.bf16.msra.mxu0 %v2944
    %2968 = vmatmul.bf16.gmra.mxu0 %v2894
    %v2969 = vpop.f32.mrf.mxu0
    %v2970 = vadd.f32 0.0, %v2969
    %v2971 = vpop.f32.mrf.mxu0
    %2972 = vdwg.mxu0
    %v2973 = vadd.f32 %v2843, %v2970
    %v2974 = vpack.c.bf16 %v2893, %v2893
    %s2975 = scalar_lea.vmem [#allocation12], 832
    %v2976 = vld [vmem:[%s2975] sm:$0xf]
    %v2977 = vld [vmem:[%s2975 + $0x4] sm:$0xf]
    %v2978 = vld [vmem:[%s2975 + $0x8] sm:$0xf]
    %v2979 = vld [vmem:[%s2975 + $0xc] sm:$0xf]
    %v2980 = vld [vmem:[%s2975 + $0x10] sm:$0xf]
    %v2981 = vld [vmem:[%s2975 + $0x14] sm:$0xf]
    %v2982 = vld [vmem:[%s2975 + $0x18] sm:$0xf]
    %v2983 = vld [vmem:[%s2975 + $0x1c] sm:$0xf]
    %v2984 = vld [vmem:[%s2975 + $0x20] sm:$0xf]
    %v2985 = vld [vmem:[%s2975 + $0x24] sm:$0xf]
    %v2986 = vld [vmem:[%s2975 + $0x28] sm:$0xf]
    %v2987 = vld [vmem:[%s2975 + $0x2c] sm:$0xf]
    %v2988 = vld [vmem:[%s2975 + $0x30] sm:$0xf]
    %v2989 = vld [vmem:[%s2975 + $0x34] sm:$0xf]
    %v2990 = vld [vmem:[%s2975 + $0x38] sm:$0xf]
    %v2991 = vld [vmem:[%s2975 + $0x3c] sm:$0xf]
    %v3008 = vunpack.c.l.b16 %v2976
    %v3009 = vunpack.c.l.b16 %v2977
    %v3010 = vunpack.c.l.b16 %v2978
    %v3011 = vunpack.c.l.b16 %v2979
    %v3012 = vunpack.c.l.b16 %v2980
    %v3013 = vunpack.c.l.b16 %v2981
    %v3014 = vunpack.c.l.b16 %v2982
    %v3015 = vunpack.c.l.b16 %v2983
    %v3016 = vunpack.c.l.b16 %v2984
    %v3017 = vunpack.c.l.b16 %v2985
    %v3018 = vunpack.c.l.b16 %v2986
    %v3019 = vunpack.c.l.b16 %v2987
    %v3020 = vunpack.c.l.b16 %v2988
    %v3021 = vunpack.c.l.b16 %v2989
    %v3022 = vunpack.c.l.b16 %v2990
    %v3023 = vunpack.c.l.b16 %v2991
    %v3024 = vpack.c.b16 %v3009, %v3008
    %v3025 = vpack.c.b16 %v3011, %v3010
    %v3026 = vpack.c.b16 %v3013, %v3012
    %v3027 = vpack.c.b16 %v3015, %v3014
    %v3028 = vpack.c.b16 %v3017, %v3016
    %v3029 = vpack.c.b16 %v3019, %v3018
    %v3030 = vpack.c.b16 %v3021, %v3020
    %v3031 = vpack.c.b16 %v3023, %v3022
    %3040 = vmatpush.bf16.msra.mxu0 %v3031
    %3041 = vmatpush.bf16.msra.mxu0 %v3030
    %3042 = vmatpush.bf16.msra.mxu0 %v3029
    %3043 = vmatpush.bf16.msra.mxu0 %v3028
    %3044 = vmatpush.bf16.msra.mxu0 %v3027
    %3045 = vmatpush.bf16.msra.mxu0 %v3026
    %3046 = vmatpush.bf16.msra.mxu0 %v3025
    %3047 = vmatpush.bf16.msra.mxu0 %v3024
    %3048 = vmatmul.bf16.gmra.mxu0 %v2974
    %v3049 = vpop.f32.mrf.mxu0
    %v3050 = vadd.f32 0.0, %v3049
    %v3051 = vpop.f32.mrf.mxu0
    %3052 = vdwg.mxu0
    %v3053 = vadd.f32 %v2973, %v3050
    %s3054 = sld [smem:[#allocation6 + $0xe]]
    %v3055 = vstv %s3054
    %v3056 = vmul.f32 %v3055, %v110
    %s3057 = sld [smem:[#allocation6 + $0x8e]]
    %v3058 = vstv %s3057
    %v3059 = vmul.f32 %v3058, %v108
    %v3060 = vadd.f32 %v3056, %v3059
    %s3061 = sld [smem:[#allocation6 + $0x10e]]
    %v3062 = vstv %s3061
    %v3063 = vmul.f32 %v3062, %v112
    %v3064 = vadd.f32 %v3060, %v3063
    %s3065 = sld [smem:[#allocation6 + $0x18e]]
    %v3066 = vstv %s3065
    %v3067 = vadd.f32 %v3064, %v3066
    %v3068 = vmax.f32 %v3067, 0.0
    %v3069 = vmul.f32 %v3068, %v117
    %3070 = vrot.lane.b32.xlu0 %v3069, 1
    %v3071 = vpop.permute.xlu0 %3070
    %3072 = vrot.lane.b32.xlu0 %v3069, 127
    %v3073 = vpop.permute.xlu0 %3072
    %s3074 = sld [smem:[#allocation7 + $0xe]]
    %v3075 = vstv %s3074
    %v3076 = vmul.f32 %v3075, %v3071
    %s3077 = sld [smem:[#allocation7 + $0x8e]]
    %v3078 = vstv %s3077
    %v3079 = vmul.f32 %v3078, %v3069
    %v3080 = vadd.f32 %v3076, %v3079
    %s3081 = sld [smem:[#allocation7 + $0x10e]]
    %v3082 = vstv %s3081
    %v3083 = vmul.f32 %v3082, %v3073
    %v3084 = vadd.f32 %v3080, %v3083
    %s3085 = sld [smem:[#allocation7 + $0x18e]]
    %v3086 = vstv %s3085
    %v3087 = vadd.f32 %v3084, %v3086
    %v3088 = vmax.f32 %v3087, 0.0
    %s3089 = sld [smem:[#allocation9 + $0xe]]
    %v3090 = vstv %s3089
    %v3091 = vmul.f32 %v3090, %v3071
    %s3092 = sld [smem:[#allocation9 + $0x8e]]
    %v3093 = vstv %s3092
    %v3094 = vmul.f32 %v3093, %v3069
    %v3095 = vadd.f32 %v3091, %v3094
    %s3096 = sld [smem:[#allocation9 + $0x10e]]
    %v3097 = vstv %s3096
    %v3098 = vmul.f32 %v3097, %v3073
    %v3099 = vadd.f32 %v3095, %v3098
    %s3100 = sld [smem:[#allocation9 + $0x18e]]
    %v3101 = vstv %s3100
    %v3102 = vadd.f32 %v3099, %v3101
    %v3103 = vmax.f32 %v3102, 0.0
    %v3104 = vpack.c.bf16 %v3088, %v3088
    %s3105 = scalar_lea.vmem [#allocation10], 896
    %v3106 = vld [vmem:[%s3105] sm:$0xf]
    %v3107 = vld [vmem:[%s3105 + $0x4] sm:$0xf]
    %v3108 = vld [vmem:[%s3105 + $0x8] sm:$0xf]
    %v3109 = vld [vmem:[%s3105 + $0xc] sm:$0xf]
    %v3110 = vld [vmem:[%s3105 + $0x10] sm:$0xf]
    %v3111 = vld [vmem:[%s3105 + $0x14] sm:$0xf]
    %v3112 = vld [vmem:[%s3105 + $0x18] sm:$0xf]
    %v3113 = vld [vmem:[%s3105 + $0x1c] sm:$0xf]
    %v3114 = vld [vmem:[%s3105 + $0x20] sm:$0xf]
    %v3115 = vld [vmem:[%s3105 + $0x24] sm:$0xf]
    %v3116 = vld [vmem:[%s3105 + $0x28] sm:$0xf]
    %v3117 = vld [vmem:[%s3105 + $0x2c] sm:$0xf]
    %v3118 = vld [vmem:[%s3105 + $0x30] sm:$0xf]
    %v3119 = vld [vmem:[%s3105 + $0x34] sm:$0xf]
    %v3120 = vld [vmem:[%s3105 + $0x38] sm:$0xf]
    %v3121 = vld [vmem:[%s3105 + $0x3c] sm:$0xf]
    %v3138 = vunpack.c.l.b16 %v3106
    %v3139 = vunpack.c.l.b16 %v3107
    %v3140 = vunpack.c.l.b16 %v3108
    %v3141 = vunpack.c.l.b16 %v3109
    %v3142 = vunpack.c.l.b16 %v3110
    %v3143 = vunpack.c.l.b16 %v3111
    %v3144 = vunpack.c.l.b16 %v3112
    %v3145 = vunpack.c.l.b16 %v3113
    %v3146 = vunpack.c.l.b16 %v3114
    %v3147 = vunpack.c.l.b16 %v3115
    %v3148 = vunpack.c.l.b16 %v3116
    %v3149 = vunpack.c.l.b16 %v3117
    %v3150 = vunpack.c.l.b16 %v3118
    %v3151 = vunpack.c.l.b16 %v3119
    %v3152 = vunpack.c.l.b16 %v3120
    %v3153 = vunpack.c.l.b16 %v3121
    %v3154 = vpack.c.b16 %v3139, %v3138
    %v3155 = vpack.c.b16 %v3141, %v3140
    %v3156 = vpack.c.b16 %v3143, %v3142
    %v3157 = vpack.c.b16 %v3145, %v3144
    %v3158 = vpack.c.b16 %v3147, %v3146
    %v3159 = vpack.c.b16 %v3149, %v3148
    %v3160 = vpack.c.b16 %v3151, %v3150
    %v3161 = vpack.c.b16 %v3153, %v3152
    %3170 = vmatpush.bf16.msra.mxu0 %v3161
    %3171 = vmatpush.bf16.msra.mxu0 %v3160
    %3172 = vmatpush.bf16.msra.mxu0 %v3159
    %3173 = vmatpush.bf16.msra.mxu0 %v3158
    %3174 = vmatpush.bf16.msra.mxu0 %v3157
    %3175 = vmatpush.bf16.msra.mxu0 %v3156
    %3176 = vmatpush.bf16.msra.mxu0 %v3155
    %3177 = vmatpush.bf16.msra.mxu0 %v3154
    %3178 = vmatmul.bf16.gmra.mxu0 %v3104
    %v3179 = vpop.f32.mrf.mxu0
    %v3180 = vadd.f32 0.0, %v3179
    %v3181 = vpop.f32.mrf.mxu0
    %3182 = vdwg.mxu0
    %v3183 = vadd.f32 %v3053, %v3180
    %v3184 = vpack.c.bf16 %v3103, %v3103
    %s3185 = scalar_lea.vmem [#allocation12], 896
    %v3186 = vld [vmem:[%s3185] sm:$0xf]
    %v3187 = vld [vmem:[%s3185 + $0x4] sm:$0xf]
    %v3188 = vld [vmem:[%s3185 + $0x8] sm:$0xf]
    %v3189 = vld [vmem:[%s3185 + $0xc] sm:$0xf]
    %v3190 = vld [vmem:[%s3185 + $0x10] sm:$0xf]
    %v3191 = vld [vmem:[%s3185 + $0x14] sm:$0xf]
    %v3192 = vld [vmem:[%s3185 + $0x18] sm:$0xf]
    %v3193 = vld [vmem:[%s3185 + $0x1c] sm:$0xf]
    %v3194 = vld [vmem:[%s3185 + $0x20] sm:$0xf]
    %v3195 = vld [vmem:[%s3185 + $0x24] sm:$0xf]
    %v3196 = vld [vmem:[%s3185 + $0x28] sm:$0xf]
    %v3197 = vld [vmem:[%s3185 + $0x2c] sm:$0xf]
    %v3198 = vld [vmem:[%s3185 + $0x30] sm:$0xf]
    %v3199 = vld [vmem:[%s3185 + $0x34] sm:$0xf]
    %v3200 = vld [vmem:[%s3185 + $0x38] sm:$0xf]
    %v3201 = vld [vmem:[%s3185 + $0x3c] sm:$0xf]
    %v3218 = vunpack.c.l.b16 %v3186
    %v3219 = vunpack.c.l.b16 %v3187
    %v3220 = vunpack.c.l.b16 %v3188
    %v3221 = vunpack.c.l.b16 %v3189
    %v3222 = vunpack.c.l.b16 %v3190
    %v3223 = vunpack.c.l.b16 %v3191
    %v3224 = vunpack.c.l.b16 %v3192
    %v3225 = vunpack.c.l.b16 %v3193
    %v3226 = vunpack.c.l.b16 %v3194
    %v3227 = vunpack.c.l.b16 %v3195
    %v3228 = vunpack.c.l.b16 %v3196
    %v3229 = vunpack.c.l.b16 %v3197
    %v3230 = vunpack.c.l.b16 %v3198
    %v3231 = vunpack.c.l.b16 %v3199
    %v3232 = vunpack.c.l.b16 %v3200
    %v3233 = vunpack.c.l.b16 %v3201
    %v3234 = vpack.c.b16 %v3219, %v3218
    %v3235 = vpack.c.b16 %v3221, %v3220
    %v3236 = vpack.c.b16 %v3223, %v3222
    %v3237 = vpack.c.b16 %v3225, %v3224
    %v3238 = vpack.c.b16 %v3227, %v3226
    %v3239 = vpack.c.b16 %v3229, %v3228
    %v3240 = vpack.c.b16 %v3231, %v3230
    %v3241 = vpack.c.b16 %v3233, %v3232
    %3250 = vmatpush.bf16.msra.mxu0 %v3241
    %3251 = vmatpush.bf16.msra.mxu0 %v3240
    %3252 = vmatpush.bf16.msra.mxu0 %v3239
    %3253 = vmatpush.bf16.msra.mxu0 %v3238
    %3254 = vmatpush.bf16.msra.mxu0 %v3237
    %3255 = vmatpush.bf16.msra.mxu0 %v3236
    %3256 = vmatpush.bf16.msra.mxu0 %v3235
    %3257 = vmatpush.bf16.msra.mxu0 %v3234
    %3258 = vmatmul.bf16.gmra.mxu0 %v3184
    %v3259 = vpop.f32.mrf.mxu0
    %v3260 = vadd.f32 0.0, %v3259
    %v3261 = vpop.f32.mrf.mxu0
    %3262 = vdwg.mxu0
    %v3263 = vadd.f32 %v3183, %v3260
    %s3264 = sld [smem:[#allocation6 + $0xf]]
    %v3265 = vstv %s3264
    %v3266 = vmul.f32 %v3265, %v110
    %s3267 = sld [smem:[#allocation6 + $0x8f]]
    %v3268 = vstv %s3267
    %v3269 = vmul.f32 %v3268, %v108
    %v3270 = vadd.f32 %v3266, %v3269
    %s3271 = sld [smem:[#allocation6 + $0x10f]]
    %v3272 = vstv %s3271
    %v3273 = vmul.f32 %v3272, %v112
    %v3274 = vadd.f32 %v3270, %v3273
    %s3275 = sld [smem:[#allocation6 + $0x18f]]
    %v3276 = vstv %s3275
    %v3277 = vadd.f32 %v3274, %v3276
    %v3278 = vmax.f32 %v3277, 0.0
    %v3279 = vmul.f32 %v3278, %v117
    %3280 = vrot.lane.b32.xlu0 %v3279, 1
    %v3281 = vpop.permute.xlu0 %3280
    %3282 = vrot.lane.b32.xlu0 %v3279, 127
    %v3283 = vpop.permute.xlu0 %3282
    %s3284 = sld [smem:[#allocation7 + $0xf]]
    %v3285 = vstv %s3284
    %v3286 = vmul.f32 %v3285, %v3281
    %s3287 = sld [smem:[#allocation7 + $0x8f]]
    %v3288 = vstv %s3287
    %v3289 = vmul.f32 %v3288, %v3279
    %v3290 = vadd.f32 %v3286, %v3289
    %s3291 = sld [smem:[#allocation7 + $0x10f]]
    %v3292 = vstv %s3291
    %v3293 = vmul.f32 %v3292, %v3283
    %v3294 = vadd.f32 %v3290, %v3293
    %s3295 = sld [smem:[#allocation7 + $0x18f]]
    %v3296 = vstv %s3295
    %v3297 = vadd.f32 %v3294, %v3296
    %v3298 = vmax.f32 %v3297, 0.0
    %s3299 = sld [smem:[#allocation9 + $0xf]]
    %v3300 = vstv %s3299
    %v3301 = vmul.f32 %v3300, %v3281
    %s3302 = sld [smem:[#allocation9 + $0x8f]]
    %v3303 = vstv %s3302
    %v3304 = vmul.f32 %v3303, %v3279
    %v3305 = vadd.f32 %v3301, %v3304
    %s3306 = sld [smem:[#allocation9 + $0x10f]]
    %v3307 = vstv %s3306
    %v3308 = vmul.f32 %v3307, %v3283
    %v3309 = vadd.f32 %v3305, %v3308
    %s3310 = sld [smem:[#allocation9 + $0x18f]]
    %v3311 = vstv %s3310
    %v3312 = vadd.f32 %v3309, %v3311
    %v3313 = vmax.f32 %v3312, 0.0
    %v3314 = vpack.c.bf16 %v3298, %v3298
    %s3315 = scalar_lea.vmem [#allocation10], 960
    %v3316 = vld [vmem:[%s3315] sm:$0xf]
    %v3317 = vld [vmem:[%s3315 + $0x4] sm:$0xf]
    %v3318 = vld [vmem:[%s3315 + $0x8] sm:$0xf]
    %v3319 = vld [vmem:[%s3315 + $0xc] sm:$0xf]
    %v3320 = vld [vmem:[%s3315 + $0x10] sm:$0xf]
    %v3321 = vld [vmem:[%s3315 + $0x14] sm:$0xf]
    %v3322 = vld [vmem:[%s3315 + $0x18] sm:$0xf]
    %v3323 = vld [vmem:[%s3315 + $0x1c] sm:$0xf]
    %v3324 = vld [vmem:[%s3315 + $0x20] sm:$0xf]
    %v3325 = vld [vmem:[%s3315 + $0x24] sm:$0xf]
    %v3326 = vld [vmem:[%s3315 + $0x28] sm:$0xf]
    %v3327 = vld [vmem:[%s3315 + $0x2c] sm:$0xf]
    %v3328 = vld [vmem:[%s3315 + $0x30] sm:$0xf]
    %v3329 = vld [vmem:[%s3315 + $0x34] sm:$0xf]
    %v3330 = vld [vmem:[%s3315 + $0x38] sm:$0xf]
    %v3331 = vld [vmem:[%s3315 + $0x3c] sm:$0xf]
    %v3348 = vunpack.c.l.b16 %v3316
    %v3349 = vunpack.c.l.b16 %v3317
    %v3350 = vunpack.c.l.b16 %v3318
    %v3351 = vunpack.c.l.b16 %v3319
    %v3352 = vunpack.c.l.b16 %v3320
    %v3353 = vunpack.c.l.b16 %v3321
    %v3354 = vunpack.c.l.b16 %v3322
    %v3355 = vunpack.c.l.b16 %v3323
    %v3356 = vunpack.c.l.b16 %v3324
    %v3357 = vunpack.c.l.b16 %v3325
    %v3358 = vunpack.c.l.b16 %v3326
    %v3359 = vunpack.c.l.b16 %v3327
    %v3360 = vunpack.c.l.b16 %v3328
    %v3361 = vunpack.c.l.b16 %v3329
    %v3362 = vunpack.c.l.b16 %v3330
    %v3363 = vunpack.c.l.b16 %v3331
    %v3364 = vpack.c.b16 %v3349, %v3348
    %v3365 = vpack.c.b16 %v3351, %v3350
    %v3366 = vpack.c.b16 %v3353, %v3352
    %v3367 = vpack.c.b16 %v3355, %v3354
    %v3368 = vpack.c.b16 %v3357, %v3356
    %v3369 = vpack.c.b16 %v3359, %v3358
    %v3370 = vpack.c.b16 %v3361, %v3360
    %v3371 = vpack.c.b16 %v3363, %v3362
    %3380 = vmatpush.bf16.msra.mxu0 %v3371
    %3381 = vmatpush.bf16.msra.mxu0 %v3370
    %3382 = vmatpush.bf16.msra.mxu0 %v3369
    %3383 = vmatpush.bf16.msra.mxu0 %v3368
    %3384 = vmatpush.bf16.msra.mxu0 %v3367
    %3385 = vmatpush.bf16.msra.mxu0 %v3366
    %3386 = vmatpush.bf16.msra.mxu0 %v3365
    %3387 = vmatpush.bf16.msra.mxu0 %v3364
    %3388 = vmatmul.bf16.gmra.mxu0 %v3314
    %v3389 = vpop.f32.mrf.mxu0
    %v3390 = vadd.f32 0.0, %v3389
    %v3391 = vpop.f32.mrf.mxu0
    %3392 = vdwg.mxu0
    %v3393 = vadd.f32 %v3263, %v3390
    %v3394 = vpack.c.bf16 %v3313, %v3313
    %s3395 = scalar_lea.vmem [#allocation12], 960
    %v3396 = vld [vmem:[%s3395] sm:$0xf]
    %v3397 = vld [vmem:[%s3395 + $0x4] sm:$0xf]
    %v3398 = vld [vmem:[%s3395 + $0x8] sm:$0xf]
    %v3399 = vld [vmem:[%s3395 + $0xc] sm:$0xf]
    %v3400 = vld [vmem:[%s3395 + $0x10] sm:$0xf]
    %v3401 = vld [vmem:[%s3395 + $0x14] sm:$0xf]
    %v3402 = vld [vmem:[%s3395 + $0x18] sm:$0xf]
    %v3403 = vld [vmem:[%s3395 + $0x1c] sm:$0xf]
    %v3404 = vld [vmem:[%s3395 + $0x20] sm:$0xf]
    %v3405 = vld [vmem:[%s3395 + $0x24] sm:$0xf]
    %v3406 = vld [vmem:[%s3395 + $0x28] sm:$0xf]
    %v3407 = vld [vmem:[%s3395 + $0x2c] sm:$0xf]
    %v3408 = vld [vmem:[%s3395 + $0x30] sm:$0xf]
    %v3409 = vld [vmem:[%s3395 + $0x34] sm:$0xf]
    %v3410 = vld [vmem:[%s3395 + $0x38] sm:$0xf]
    %v3411 = vld [vmem:[%s3395 + $0x3c] sm:$0xf]
    %v3428 = vunpack.c.l.b16 %v3396
    %v3429 = vunpack.c.l.b16 %v3397
    %v3430 = vunpack.c.l.b16 %v3398
    %v3431 = vunpack.c.l.b16 %v3399
    %v3432 = vunpack.c.l.b16 %v3400
    %v3433 = vunpack.c.l.b16 %v3401
    %v3434 = vunpack.c.l.b16 %v3402
    %v3435 = vunpack.c.l.b16 %v3403
    %v3436 = vunpack.c.l.b16 %v3404
    %v3437 = vunpack.c.l.b16 %v3405
    %v3438 = vunpack.c.l.b16 %v3406
    %v3439 = vunpack.c.l.b16 %v3407
    %v3440 = vunpack.c.l.b16 %v3408
    %v3441 = vunpack.c.l.b16 %v3409
    %v3442 = vunpack.c.l.b16 %v3410
    %v3443 = vunpack.c.l.b16 %v3411
    %v3444 = vpack.c.b16 %v3429, %v3428
    %v3445 = vpack.c.b16 %v3431, %v3430
    %v3446 = vpack.c.b16 %v3433, %v3432
    %v3447 = vpack.c.b16 %v3435, %v3434
    %v3448 = vpack.c.b16 %v3437, %v3436
    %v3449 = vpack.c.b16 %v3439, %v3438
    %v3450 = vpack.c.b16 %v3441, %v3440
    %v3451 = vpack.c.b16 %v3443, %v3442
    %3460 = vmatpush.bf16.msra.mxu0 %v3451
    %3461 = vmatpush.bf16.msra.mxu0 %v3450
    %3462 = vmatpush.bf16.msra.mxu0 %v3449
    %3463 = vmatpush.bf16.msra.mxu0 %v3448
    %3464 = vmatpush.bf16.msra.mxu0 %v3447
    %3465 = vmatpush.bf16.msra.mxu0 %v3446
    %3466 = vmatpush.bf16.msra.mxu0 %v3445
    %3467 = vmatpush.bf16.msra.mxu0 %v3444
    %3468 = vmatmul.bf16.gmra.mxu0 %v3394
    %v3469 = vpop.f32.mrf.mxu0
    %v3470 = vadd.f32 0.0, %v3469
    %v3471 = vpop.f32.mrf.mxu0
    %3472 = vdwg.mxu0
    %v3473 = vadd.f32 %v3393, %v3470
    %v3474 = vld [vmem:[%s6] sm:$0x1]
    %v3476 = vperm.slane %v3474, 0
    %v3478 = vadd.f32 %v3473, %v3476
    %3479 = vst [vmem:[#allocation13] sm:$0x3] %v3478
    // Predicated region
    $region54: #{tpu_custom_call.1} parent=1 // pred_check
      _
    $region55: #{tpu_custom_call.1} parent=1 // pred_check_branch
      %3481 = sbr.rel (0) target = $region57
    $region56: #{tpu_custom_call.1} parent=1 // pred_region
      %3483 = vsyncadd [#allocation4], 0
      %s3485 = sshll.u32 [#allocation13], 4
      %s3486 = int_to_ptr.vmem [resolvable:$true] %s3485
      %s3487 = sshll.u32 %s7, 4
      %s3488 = int_to_ptr.hbm [resolvable:$true] %s3487
      %3490 = dma.vmem_to_hbm [thread:$0]  %s3486, 32, %s3488, [#allocation4]
    $region57: #{tpu_custom_call.1} parent=1 // pred_fallthru
      _
    // Predicated region
    $region58: #{tpu_custom_call.1} parent=1 // pred_check
      _
    $region59: #{tpu_custom_call.1} parent=1 // pred_check_branch
      %3492 = sbr.rel (0) target = $region61
    $region60: #{tpu_custom_call.1} parent=1 // pred_region
      %3494 = dma.done [#allocation4], 32
    $region61: #{tpu_custom_call.1} parent=1 // pred_fallthru
      _
    %3495 = vsyncpa [#allocation3], 1
    %3496 = vsyncpa [#allocation11], 1
    %3497 = vsyncpa [#allocation4], 1
    %3498 = vsyncpa [#allocation5], 1
    %3499 = vsyncpa [#allocation8], 1

</llo_original>
